<compile_context>
chip_gen: v6e
topology: v6e:2x2x1
jax: 0.10.0
libtpu: 0.0.40
codegen_flags: <defaults>
</compile_context>

<pallas_src>
import jax
import jax.numpy as jnp
from jax.experimental import pallas as pl
from jax.experimental.pallas import tpu as pltpu


def _conv3x3_bn_relu(inp, w_ref, scale, shift):
    """3x3 'same' conv + folded BN + ReLU on one sample.

    inp:    (C_i, Hp, Wp) float32 value (already in VMEM/registers)
    w_ref:  (9, C_o, C_i) ref, tap-major (tap t = dh*3 + dw)
    scale:  (C_o, 1) value  -- gamma / sqrt(var + eps)
    shift:  (C_o, 1) value  -- beta + (conv_bias - mean) * scale
    returns (C_o, Hp * Wp) float32
    """
    C_i, Hp, Wp = inp.shape
    C_o = w_ref.shape[1]

    # Zero padding built in-VMEM (no HBM pad copies).
    zrow = jnp.zeros((C_i, 1, Wp), jnp.float32)
    zcol = jnp.zeros((C_i, Hp + 2, 1), jnp.float32)
    xp = jnp.concatenate([zrow, inp, zrow], axis=1)   # (C_i, Hp+2, Wp)
    xp = jnp.concatenate([zcol, xp, zcol], axis=2)    # (C_i, Hp+2, Wp+2)

    acc = jnp.zeros((C_o, Hp * Wp), jnp.float32)
    for t in range(9):
        dh, dw = t // 3, t % 3
        # Shifted tap, flattened so spatial sits on the lane axis.
        tap = xp[:, dh:dh + Hp, dw:dw + Wp].reshape(C_i, Hp * Wp)
        wt = w_ref[t]                                  # (C_o, C_i)
        for ci in range(C_i):
            # Outer-product FMA on the VPU: (C_o,1) * (1, Hp*Wp).
            acc = acc + wt[:, ci:ci + 1] * tap[ci:ci + 1, :]

    # Folded (inference) BatchNorm + ReLU.
    return jnp.maximum(acc * scale + shift, 0.0)


def _down_kernel(x_ref, w1_ref, s1_ref, t1_ref, w2_ref, s2_ref, t2_ref, o_ref):
    _, C_in, H, W = x_ref.shape
    Hp, Wp = H // 2, W // 2
    C_mid = w1_ref.shape[1]

    # ---- MaxPool2d(2) ----
    x = x_ref[0]                                              # (C_in, H, W)
    a = jnp.max(x.reshape(C_in, H, Wp, 2), axis=3)            # pool along W
    pooled = jnp.max(a.reshape(C_in, Hp, 2, Wp), axis=2)      # pool along H

    # ---- Conv3x3 + BN + ReLU (x2), all resident in VMEM ----
    h1 = _conv3x3_bn_relu(pooled, w1_ref, s1_ref[...], t1_ref[...])  # (C_mid, Hp*Wp)
    h1_3d = h1.reshape(C_mid, Hp, Wp)
    y = _conv3x3_bn_relu(h1_3d, w2_ref, s2_ref[...], t2_ref[...])    # (C_out, Hp*Wp)

    o_ref[0] = y.astype(o_ref.dtype)


def down_forward(x,
                 conv1_w, conv1_b, bn1_g, bn1_b, bn1_m, bn1_v,
                 conv2_w, conv2_b, bn2_g, bn2_b, bn2_m, bn2_v,
                 *, eps=1e-5):
    """Forward pass of Down(in_ch, out_ch) (inference-mode BatchNorm).

    x:       (N, C_in, H, W) float32, NCHW (H, W even)
    conv*_w: (C_out, C_in, 3, 3) / (C_out, C_out, 3, 3)
    returns  (N, C_out, H//2, W//2) float32, NCHW
    """
    N, C_in, H, W = x.shape
    C_mid = conv1_w.shape[0]
    C_out = conv2_w.shape[0]
    assert H % 2 == 0 and W % 2 == 0, "MaxPool2d(2) expects even H, W here"
    Hp, Wp = H // 2, W // 2

    # Fold conv bias + inference BatchNorm into per-channel scale/shift.
    s1 = bn1_g / jnp.sqrt(bn1_v + eps)
    t1 = bn1_b + (conv1_b - bn1_m) * s1
    s2 = bn2_g / jnp.sqrt(bn2_v + eps)
    t2 = bn2_b + (conv2_b - bn2_m) * s2

    # Repack weights tap-major: (C_o, C_i, 3, 3) -> (9, C_o, C_i).  Tiny,
    # one-time, outside the hot path; lets the kernel load a clean (C_o, C_i)
    # tile per tap.
    w1_k = jnp.transpose(conv1_w.reshape(C_mid, C_in, 9), (2, 0, 1))
    w2_k = jnp.transpose(conv2_w.reshape(C_out, C_mid, 9), (2, 0, 1))

    s1 = s1.reshape(C_mid, 1).astype(jnp.float32)
    t1 = t1.reshape(C_mid, 1).astype(jnp.float32)
    s2 = s2.reshape(C_out, 1).astype(jnp.float32)
    t2 = t2.reshape(C_out, 1).astype(jnp.float32)

    out_flat = pl.pallas_call(
        _down_kernel,
        out_shape=jax.ShapeDtypeStruct((N, C_out, Hp * Wp), x.dtype),
        grid_spec=pltpu.PrefetchScalarGridSpec(
            num_scalar_prefetch=0,
            grid=(N,),
            in_specs=[
                # One full sample per grid step (whole image + all channels).
                pl.BlockSpec((1, C_in, H, W), lambda n: (n, 0, 0, 0)),
                # Weights / BN params: constant index_map -> VMEM-resident.
                pl.BlockSpec((9, C_mid, C_in), lambda n: (0, 0, 0)),
                pl.BlockSpec((C_mid, 1), lambda n: (0, 0)),
                pl.BlockSpec((C_mid, 1), lambda n: (0, 0)),
                pl.BlockSpec((9, C_out, C_mid), lambda n: (0, 0, 0)),
                pl.BlockSpec((C_out, 1), lambda n: (0, 0)),
                pl.BlockSpec((C_out, 1), lambda n: (0, 0)),
            ],
            # Lane-dense output block: spatial flattened onto the lane axis.
            out_specs=pl.BlockSpec((1, C_out, Hp * Wp), lambda n: (n, 0, 0)),
        ),
        compiler_params=pltpu.CompilerParams(
            dimension_semantics=("parallel",)),
    )(x, w1_k, s1, t1, w2_k, s2, t2)

    # Free, contiguous reshape back to NCHW (no transpose, no extra HBM pass).
    return out_flat.reshape(N, C_out, Hp, Wp)


def _reference_down(x, w1, b1, g1, be1, m1, v1, w2, b2, g2, be2, m2, v2, eps=1e-5):
    """Plain-JAX reference matching PyTorch Down in eval mode."""
    N, C, H, W = x.shape
    p = jnp.max(x.reshape(N, C, H // 2, 2, W // 2, 2), axis=(3, 5))

    def conv_bn_relu(z, w, b, g, be, m, v):
        z = jax.lax.conv_general_dilated(
            z, w, window_strides=(1, 1), padding=((1, 1), (1, 1)),
            dimension_numbers=("NCHW", "OIHW", "NCHW"),
            precision=jax.lax.Precision.HIGHEST)
        z = z + b[None, :, None, None]
        z = (z - m[None, :, None, None]) / jnp.sqrt(v[None, :, None, None] + eps)
        z = z * g[None, :, None, None] + be[None, :, None, None]
        return jnp.maximum(z, 0.0)

    h = conv_bn_relu(p, w1, b1, g1, be1, m1, v1)
    return conv_bn_relu(h, w2, b2, g2, be2, m2, v2)


if __name__ == "__main__":
    batch, in_ch, out_ch, spatial = 2, 4, 8, 16

    key = jax.random.PRNGKey(0)
    keys = jax.random.split(key, 12)

    x = jax.random.normal(keys[0], (batch, in_ch, spatial, spatial), jnp.float32)

    # PyTorch-style Conv2d init: U(-1/sqrt(fan_in), 1/sqrt(fan_in)).
    fan1 = in_ch * 9
    b1_bound = 1.0 / (fan1 ** 0.5)
    conv1_w = jax.random.uniform(keys[1], (out_ch, in_ch, 3, 3), jnp.float32,
                                 -b1_bound, b1_bound)
    conv1_b = jax.random.uniform(keys[2], (out_ch,), jnp.float32, -b1_bound, b1_bound)

    fan2 = out_ch * 9
    b2_bound = 1.0 / (fan2 ** 0.5)
    conv2_w = jax.random.uniform(keys[3], (out_ch, out_ch, 3, 3), jnp.float32,
                                 -b2_bound, b2_bound)
    conv2_b = jax.random.uniform(keys[4], (out_ch,), jnp.float32, -b2_bound, b2_bound)

    # BatchNorm (inference) params: randomized to exercise the folding path.
    bn1_g = jax.random.uniform(keys[5], (out_ch,), jnp.float32, 0.5, 1.5)
    bn1_b = 0.1 * jax.random.normal(keys[6], (out_ch,), jnp.float32)
    bn1_m = 0.1 * jax.random.normal(keys[7], (out_ch,), jnp.float32)
    bn1_v = jax.random.uniform(keys[8], (out_ch,), jnp.float32, 0.5, 1.5)
    bn2_g = jax.random.uniform(keys[9], (out_ch,), jnp.float32, 0.5, 1.5)
    bn2_b = 0.1 * jax.random.normal(keys[10], (out_ch,), jnp.float32)
    bn2_m = 0.1 * jax.random.normal(keys[11], (out_ch,), jnp.float32)
    bn2_v = jnp.ones((out_ch,), jnp.float32)

    y = down_forward(x,
                     conv1_w, conv1_b, bn1_g, bn1_b, bn1_m, bn1_v,
                     conv2_w, conv2_b, bn2_g, bn2_b, bn2_m, bn2_v)
    jax.block_until_ready(y)

    ref = _reference_down(x,
                          conv1_w, conv1_b, bn1_g, bn1_b, bn1_m, bn1_v,
                          conv2_w, conv2_b, bn2_g, bn2_b, bn2_m, bn2_v)

    assert y.shape == (batch, out_ch, spatial // 2, spatial // 2)
    assert jnp.allclose(y, ref, atol=1e-4, rtol=1e-4), (
        float(jnp.max(jnp.abs(y - ref))))

    print("KERNEL_OK")
</pallas_src>

<mosaic_0001>
module attributes {stable_mosaic.version = 11 : i64} {
  func.func @_down_kernel(%arg0: i32, %arg1: memref<1x4x16x16xf32, #tpu.memory_space<vmem>>, %arg2: memref<9x8x4xf32, #tpu.memory_space<vmem>>, %arg3: memref<8x1xf32, #tpu.memory_space<vmem>>, %arg4: memref<8x1xf32, #tpu.memory_space<vmem>>, %arg5: memref<9x8x8xf32, #tpu.memory_space<vmem>>, %arg6: memref<8x1xf32, #tpu.memory_space<vmem>>, %arg7: memref<8x1xf32, #tpu.memory_space<vmem>>, %arg8: memref<1x8x64xf32, #tpu.memory_space<vmem>>) attributes {dimension_semantics = [#tpu.dimension_semantics<parallel>], iteration_bounds = array<i64: 2>, scalar_prefetch = 0 : i64, scratch_operands = 0 : i64, tpu.core_type = #tpu.core_type<tc>, window_params = [{transform_indices = @transform_0, window_bounds = array<i64: 1, 4, 16, 16>}, {pipeline_mode = #tpu.pipeline_mode<synchronous>, transform_indices = @transform_1, window_bounds = array<i64: 9, 8, 4>}, {pipeline_mode = #tpu.pipeline_mode<synchronous>, transform_indices = @transform_2, window_bounds = array<i64: 8, 1>}, {pipeline_mode = #tpu.pipeline_mode<synchronous>, transform_indices = @transform_3, window_bounds = array<i64: 8, 1>}, {pipeline_mode = #tpu.pipeline_mode<synchronous>, transform_indices = @transform_4, window_bounds = array<i64: 9, 8, 8>}, {pipeline_mode = #tpu.pipeline_mode<synchronous>, transform_indices = @transform_5, window_bounds = array<i64: 8, 1>}, {pipeline_mode = #tpu.pipeline_mode<synchronous>, transform_indices = @transform_6, window_bounds = array<i64: 8, 1>}, {transform_indices = @transform_7, window_bounds = array<i64: 1, 8, 64>}]} {
    %c0 = arith.constant 0 : index
    %c0_0 = arith.constant 0 : index
    %c0_1 = arith.constant 0 : index
    %c0_2 = arith.constant 0 : index
    %0 = vector.load %arg1[%c0, %c0_0, %c0_1, %c0_2] : memref<1x4x16x16xf32, #tpu.memory_space<vmem>>, vector<1x4x16x16xf32>
    %1 = vector.shape_cast %0 : vector<1x4x16x16xf32> to vector<4x16x16xf32>
    %2 = vector.shape_cast %1 : vector<4x16x16xf32> to vector<4x16x8x2xf32>
    %cst = arith.constant dense<0xFF800000> : vector<4x16x8xf32>
    %3 = vector.multi_reduction <maximumf>, %2, %cst [3] : vector<4x16x8x2xf32> to vector<4x16x8xf32>
    %4 = vector.shape_cast %3 : vector<4x16x8xf32> to vector<4x8x2x8xf32>
    %cst_3 = arith.constant dense<0xFF800000> : vector<4x8x8xf32>
    %5 = vector.multi_reduction <maximumf>, %4, %cst_3 [2] : vector<4x8x2x8xf32> to vector<4x8x8xf32>
    %c0_4 = arith.constant 0 : index
    %c0_5 = arith.constant 0 : index
    %6 = vector.load %arg3[%c0_4, %c0_5] : memref<8x1xf32, #tpu.memory_space<vmem>>, vector<8x1xf32>
    %c0_6 = arith.constant 0 : index
    %c0_7 = arith.constant 0 : index
    %7 = vector.load %arg4[%c0_6, %c0_7] : memref<8x1xf32, #tpu.memory_space<vmem>>, vector<8x1xf32>
    %cst_8 = arith.constant 0.000000e+00 : f32
    %8 = vector.broadcast %cst_8 : f32 to vector<4x1x8xf32>
    %cst_9 = arith.constant 0.000000e+00 : f32
    %9 = vector.broadcast %cst_9 : f32 to vector<4x10x1xf32>
    %10 = tpu.concatenate %8, %5, %8 in 1 : vector<4x1x8xf32>, vector<4x8x8xf32>, vector<4x1x8xf32> -> vector<4x10x8xf32>
    %11 = tpu.concatenate %9, %10, %9 in 2 : vector<4x10x1xf32>, vector<4x10x8xf32>, vector<4x10x1xf32> -> vector<4x10x10xf32>
    %cst_10 = arith.constant 0.000000e+00 : f32
    %12 = vector.broadcast %cst_10 : f32 to vector<8x64xf32>
    %13 = vector.extract_strided_slice %11 {offsets = [0, 0, 0], sizes = [4, 8, 8], strides = [1, 1, 1]} : vector<4x10x10xf32> to vector<4x8x8xf32>
    %14 = vector.shape_cast %13 : vector<4x8x8xf32> to vector<4x64xf32>
    %c0_11 = arith.constant 0 : index
    %c0_12 = arith.constant 0 : index
    %c0_13 = arith.constant 0 : index
    %15 = vector.load %arg2[%c0_11, %c0_12, %c0_13] : memref<9x8x4xf32, #tpu.memory_space<vmem>>, vector<1x8x4xf32>
    %16 = vector.shape_cast %15 : vector<1x8x4xf32> to vector<8x4xf32>
    %17 = vector.extract_strided_slice %16 {offsets = [0, 0], sizes = [8, 1], strides = [1, 1]} : vector<8x4xf32> to vector<8x1xf32>
    %18 = vector.extract_strided_slice %14 {offsets = [0, 0], sizes = [1, 64], strides = [1, 1]} : vector<4x64xf32> to vector<1x64xf32>
    %19 = vector.broadcast %17 : vector<8x1xf32> to vector<8x64xf32>
    %20 = vector.broadcast %18 : vector<1x64xf32> to vector<8x64xf32>
    %21 = arith.mulf %19, %20 : vector<8x64xf32>
    %22 = arith.addf %12, %21 : vector<8x64xf32>
    %23 = vector.extract_strided_slice %16 {offsets = [0, 1], sizes = [8, 1], strides = [1, 1]} : vector<8x4xf32> to vector<8x1xf32>
    %24 = vector.extract_strided_slice %14 {offsets = [1, 0], sizes = [1, 64], strides = [1, 1]} : vector<4x64xf32> to vector<1x64xf32>
    %25 = vector.broadcast %23 : vector<8x1xf32> to vector<8x64xf32>
    %26 = vector.broadcast %24 : vector<1x64xf32> to vector<8x64xf32>
    %27 = arith.mulf %25, %26 : vector<8x64xf32>
    %28 = arith.addf %22, %27 : vector<8x64xf32>
    %29 = vector.extract_strided_slice %16 {offsets = [0, 2], sizes = [8, 1], strides = [1, 1]} : vector<8x4xf32> to vector<8x1xf32>
    %30 = vector.extract_strided_slice %14 {offsets = [2, 0], sizes = [1, 64], strides = [1, 1]} : vector<4x64xf32> to vector<1x64xf32>
    %31 = vector.broadcast %29 : vector<8x1xf32> to vector<8x64xf32>
    %32 = vector.broadcast %30 : vector<1x64xf32> to vector<8x64xf32>
    %33 = arith.mulf %31, %32 : vector<8x64xf32>
    %34 = arith.addf %28, %33 : vector<8x64xf32>
    %35 = vector.extract_strided_slice %16 {offsets = [0, 3], sizes = [8, 1], strides = [1, 1]} : vector<8x4xf32> to vector<8x1xf32>
    %36 = vector.extract_strided_slice %14 {offsets = [3, 0], sizes = [1, 64], strides = [1, 1]} : vector<4x64xf32> to vector<1x64xf32>
    %37 = vector.broadcast %35 : vector<8x1xf32> to vector<8x64xf32>
    %38 = vector.broadcast %36 : vector<1x64xf32> to vector<8x64xf32>
    %39 = arith.mulf %37, %38 : vector<8x64xf32>
    %40 = arith.addf %34, %39 : vector<8x64xf32>
    %41 = vector.extract_strided_slice %11 {offsets = [0, 0, 1], sizes = [4, 8, 8], strides = [1, 1, 1]} : vector<4x10x10xf32> to vector<4x8x8xf32>
    %42 = vector.shape_cast %41 : vector<4x8x8xf32> to vector<4x64xf32>
    %c1 = arith.constant 1 : index
    %c0_14 = arith.constant 0 : index
    %c0_15 = arith.constant 0 : index
    %43 = vector.load %arg2[%c1, %c0_14, %c0_15] : memref<9x8x4xf32, #tpu.memory_space<vmem>>, vector<1x8x4xf32>
    %44 = vector.shape_cast %43 : vector<1x8x4xf32> to vector<8x4xf32>
    %45 = vector.extract_strided_slice %44 {offsets = [0, 0], sizes = [8, 1], strides = [1, 1]} : vector<8x4xf32> to vector<8x1xf32>
    %46 = vector.extract_strided_slice %42 {offsets = [0, 0], sizes = [1, 64], strides = [1, 1]} : vector<4x64xf32> to vector<1x64xf32>
    %47 = vector.broadcast %45 : vector<8x1xf32> to vector<8x64xf32>
    %48 = vector.broadcast %46 : vector<1x64xf32> to vector<8x64xf32>
    %49 = arith.mulf %47, %48 : vector<8x64xf32>
    %50 = arith.addf %40, %49 : vector<8x64xf32>
    %51 = vector.extract_strided_slice %44 {offsets = [0, 1], sizes = [8, 1], strides = [1, 1]} : vector<8x4xf32> to vector<8x1xf32>
    %52 = vector.extract_strided_slice %42 {offsets = [1, 0], sizes = [1, 64], strides = [1, 1]} : vector<4x64xf32> to vector<1x64xf32>
    %53 = vector.broadcast %51 : vector<8x1xf32> to vector<8x64xf32>
    %54 = vector.broadcast %52 : vector<1x64xf32> to vector<8x64xf32>
    %55 = arith.mulf %53, %54 : vector<8x64xf32>
    %56 = arith.addf %50, %55 : vector<8x64xf32>
    %57 = vector.extract_strided_slice %44 {offsets = [0, 2], sizes = [8, 1], strides = [1, 1]} : vector<8x4xf32> to vector<8x1xf32>
    %58 = vector.extract_strided_slice %42 {offsets = [2, 0], sizes = [1, 64], strides = [1, 1]} : vector<4x64xf32> to vector<1x64xf32>
    %59 = vector.broadcast %57 : vector<8x1xf32> to vector<8x64xf32>
    %60 = vector.broadcast %58 : vector<1x64xf32> to vector<8x64xf32>
    %61 = arith.mulf %59, %60 : vector<8x64xf32>
    %62 = arith.addf %56, %61 : vector<8x64xf32>
    %63 = vector.extract_strided_slice %44 {offsets = [0, 3], sizes = [8, 1], strides = [1, 1]} : vector<8x4xf32> to vector<8x1xf32>
    %64 = vector.extract_strided_slice %42 {offsets = [3, 0], sizes = [1, 64], strides = [1, 1]} : vector<4x64xf32> to vector<1x64xf32>
    %65 = vector.broadcast %63 : vector<8x1xf32> to vector<8x64xf32>
    %66 = vector.broadcast %64 : vector<1x64xf32> to vector<8x64xf32>
    %67 = arith.mulf %65, %66 : vector<8x64xf32>
    %68 = arith.addf %62, %67 : vector<8x64xf32>
    %69 = vector.extract_strided_slice %11 {offsets = [0, 0, 2], sizes = [4, 8, 8], strides = [1, 1, 1]} : vector<4x10x10xf32> to vector<4x8x8xf32>
    %70 = vector.shape_cast %69 : vector<4x8x8xf32> to vector<4x64xf32>
    %c2 = arith.constant 2 : index
    %c0_16 = arith.constant 0 : index
    %c0_17 = arith.constant 0 : index
    %71 = vector.load %arg2[%c2, %c0_16, %c0_17] : memref<9x8x4xf32, #tpu.memory_space<vmem>>, vector<1x8x4xf32>
    %72 = vector.shape_cast %71 : vector<1x8x4xf32> to vector<8x4xf32>
    %73 = vector.extract_strided_slice %72 {offsets = [0, 0], sizes = [8, 1], strides = [1, 1]} : vector<8x4xf32> to vector<8x1xf32>
    %74 = vector.extract_strided_slice %70 {offsets = [0, 0], sizes = [1, 64], strides = [1, 1]} : vector<4x64xf32> to vector<1x64xf32>
    %75 = vector.broadcast %73 : vector<8x1xf32> to vector<8x64xf32>
    %76 = vector.broadcast %74 : vector<1x64xf32> to vector<8x64xf32>
    %77 = arith.mulf %75, %76 : vector<8x64xf32>
    %78 = arith.addf %68, %77 : vector<8x64xf32>
    %79 = vector.extract_strided_slice %72 {offsets = [0, 1], sizes = [8, 1], strides = [1, 1]} : vector<8x4xf32> to vector<8x1xf32>
    %80 = vector.extract_strided_slice %70 {offsets = [1, 0], sizes = [1, 64], strides = [1, 1]} : vector<4x64xf32> to vector<1x64xf32>
    %81 = vector.broadcast %79 : vector<8x1xf32> to vector<8x64xf32>
    %82 = vector.broadcast %80 : vector<1x64xf32> to vector<8x64xf32>
    %83 = arith.mulf %81, %82 : vector<8x64xf32>
    %84 = arith.addf %78, %83 : vector<8x64xf32>
    %85 = vector.extract_strided_slice %72 {offsets = [0, 2], sizes = [8, 1], strides = [1, 1]} : vector<8x4xf32> to vector<8x1xf32>
    %86 = vector.extract_strided_slice %70 {offsets = [2, 0], sizes = [1, 64], strides = [1, 1]} : vector<4x64xf32> to vector<1x64xf32>
    %87 = vector.broadcast %85 : vector<8x1xf32> to vector<8x64xf32>
    %88 = vector.broadcast %86 : vector<1x64xf32> to vector<8x64xf32>
    %89 = arith.mulf %87, %88 : vector<8x64xf32>
    %90 = arith.addf %84, %89 : vector<8x64xf32>
    %91 = vector.extract_strided_slice %72 {offsets = [0, 3], sizes = [8, 1], strides = [1, 1]} : vector<8x4xf32> to vector<8x1xf32>
    %92 = vector.extract_strided_slice %70 {offsets = [3, 0], sizes = [1, 64], strides = [1, 1]} : vector<4x64xf32> to vector<1x64xf32>
    %93 = vector.broadcast %91 : vector<8x1xf32> to vector<8x64xf32>
    %94 = vector.broadcast %92 : vector<1x64xf32> to vector<8x64xf32>
    %95 = arith.mulf %93, %94 : vector<8x64xf32>
    %96 = arith.addf %90, %95 : vector<8x64xf32>
    %97 = vector.extract_strided_slice %11 {offsets = [0, 1, 0], sizes = [4, 8, 8], strides = [1, 1, 1]} : vector<4x10x10xf32> to vector<4x8x8xf32>
    %98 = vector.shape_cast %97 : vector<4x8x8xf32> to vector<4x64xf32>
    %c3 = arith.constant 3 : index
    %c0_18 = arith.constant 0 : index
    %c0_19 = arith.constant 0 : index
    %99 = vector.load %arg2[%c3, %c0_18, %c0_19] : memref<9x8x4xf32, #tpu.memory_space<vmem>>, vector<1x8x4xf32>
    %100 = vector.shape_cast %99 : vector<1x8x4xf32> to vector<8x4xf32>
    %101 = vector.extract_strided_slice %100 {offsets = [0, 0], sizes = [8, 1], strides = [1, 1]} : vector<8x4xf32> to vector<8x1xf32>
    %102 = vector.extract_strided_slice %98 {offsets = [0, 0], sizes = [1, 64], strides = [1, 1]} : vector<4x64xf32> to vector<1x64xf32>
    %103 = vector.broadcast %101 : vector<8x1xf32> to vector<8x64xf32>
    %104 = vector.broadcast %102 : vector<1x64xf32> to vector<8x64xf32>
    %105 = arith.mulf %103, %104 : vector<8x64xf32>
    %106 = arith.addf %96, %105 : vector<8x64xf32>
    %107 = vector.extract_strided_slice %100 {offsets = [0, 1], sizes = [8, 1], strides = [1, 1]} : vector<8x4xf32> to vector<8x1xf32>
    %108 = vector.extract_strided_slice %98 {offsets = [1, 0], sizes = [1, 64], strides = [1, 1]} : vector<4x64xf32> to vector<1x64xf32>
    %109 = vector.broadcast %107 : vector<8x1xf32> to vector<8x64xf32>
    %110 = vector.broadcast %108 : vector<1x64xf32> to vector<8x64xf32>
    %111 = arith.mulf %109, %110 : vector<8x64xf32>
    %112 = arith.addf %106, %111 : vector<8x64xf32>
    %113 = vector.extract_strided_slice %100 {offsets = [0, 2], sizes = [8, 1], strides = [1, 1]} : vector<8x4xf32> to vector<8x1xf32>
    %114 = vector.extract_strided_slice %98 {offsets = [2, 0], sizes = [1, 64], strides = [1, 1]} : vector<4x64xf32> to vector<1x64xf32>
    %115 = vector.broadcast %113 : vector<8x1xf32> to vector<8x64xf32>
    %116 = vector.broadcast %114 : vector<1x64xf32> to vector<8x64xf32>
    %117 = arith.mulf %115, %116 : vector<8x64xf32>
    %118 = arith.addf %112, %117 : vector<8x64xf32>
    %119 = vector.extract_strided_slice %100 {offsets = [0, 3], sizes = [8, 1], strides = [1, 1]} : vector<8x4xf32> to vector<8x1xf32>
    %120 = vector.extract_strided_slice %98 {offsets = [3, 0], sizes = [1, 64], strides = [1, 1]} : vector<4x64xf32> to vector<1x64xf32>
    %121 = vector.broadcast %119 : vector<8x1xf32> to vector<8x64xf32>
    %122 = vector.broadcast %120 : vector<1x64xf32> to vector<8x64xf32>
    %123 = arith.mulf %121, %122 : vector<8x64xf32>
    %124 = arith.addf %118, %123 : vector<8x64xf32>
    %125 = vector.extract_strided_slice %11 {offsets = [0, 1, 1], sizes = [4, 8, 8], strides = [1, 1, 1]} : vector<4x10x10xf32> to vector<4x8x8xf32>
    %126 = vector.shape_cast %125 : vector<4x8x8xf32> to vector<4x64xf32>
    %c4 = arith.constant 4 : index
    %c0_20 = arith.constant 0 : index
    %c0_21 = arith.constant 0 : index
    %127 = vector.load %arg2[%c4, %c0_20, %c0_21] : memref<9x8x4xf32, #tpu.memory_space<vmem>>, vector<1x8x4xf32>
    %128 = vector.shape_cast %127 : vector<1x8x4xf32> to vector<8x4xf32>
    %129 = vector.extract_strided_slice %128 {offsets = [0, 0], sizes = [8, 1], strides = [1, 1]} : vector<8x4xf32> to vector<8x1xf32>
    %130 = vector.extract_strided_slice %126 {offsets = [0, 0], sizes = [1, 64], strides = [1, 1]} : vector<4x64xf32> to vector<1x64xf32>
    %131 = vector.broadcast %129 : vector<8x1xf32> to vector<8x64xf32>
    %132 = vector.broadcast %130 : vector<1x64xf32> to vector<8x64xf32>
    %133 = arith.mulf %131, %132 : vector<8x64xf32>
    %134 = arith.addf %124, %133 : vector<8x64xf32>
    %135 = vector.extract_strided_slice %128 {offsets = [0, 1], sizes = [8, 1], strides = [1, 1]} : vector<8x4xf32> to vector<8x1xf32>
    %136 = vector.extract_strided_slice %126 {offsets = [1, 0], sizes = [1, 64], strides = [1, 1]} : vector<4x64xf32> to vector<1x64xf32>
    %137 = vector.broadcast %135 : vector<8x1xf32> to vector<8x64xf32>
    %138 = vector.broadcast %136 : vector<1x64xf32> to vector<8x64xf32>
    %139 = arith.mulf %137, %138 : vector<8x64xf32>
    %140 = arith.addf %134, %139 : vector<8x64xf32>
    %141 = vector.extract_strided_slice %128 {offsets = [0, 2], sizes = [8, 1], strides = [1, 1]} : vector<8x4xf32> to vector<8x1xf32>
    %142 = vector.extract_strided_slice %126 {offsets = [2, 0], sizes = [1, 64], strides = [1, 1]} : vector<4x64xf32> to vector<1x64xf32>
    %143 = vector.broadcast %141 : vector<8x1xf32> to vector<8x64xf32>
    %144 = vector.broadcast %142 : vector<1x64xf32> to vector<8x64xf32>
    %145 = arith.mulf %143, %144 : vector<8x64xf32>
    %146 = arith.addf %140, %145 : vector<8x64xf32>
    %147 = vector.extract_strided_slice %128 {offsets = [0, 3], sizes = [8, 1], strides = [1, 1]} : vector<8x4xf32> to vector<8x1xf32>
    %148 = vector.extract_strided_slice %126 {offsets = [3, 0], sizes = [1, 64], strides = [1, 1]} : vector<4x64xf32> to vector<1x64xf32>
    %149 = vector.broadcast %147 : vector<8x1xf32> to vector<8x64xf32>
    %150 = vector.broadcast %148 : vector<1x64xf32> to vector<8x64xf32>
    %151 = arith.mulf %149, %150 : vector<8x64xf32>
    %152 = arith.addf %146, %151 : vector<8x64xf32>
    %153 = vector.extract_strided_slice %11 {offsets = [0, 1, 2], sizes = [4, 8, 8], strides = [1, 1, 1]} : vector<4x10x10xf32> to vector<4x8x8xf32>
    %154 = vector.shape_cast %153 : vector<4x8x8xf32> to vector<4x64xf32>
    %c5 = arith.constant 5 : index
    %c0_22 = arith.constant 0 : index
    %c0_23 = arith.constant 0 : index
    %155 = vector.load %arg2[%c5, %c0_22, %c0_23] : memref<9x8x4xf32, #tpu.memory_space<vmem>>, vector<1x8x4xf32>
    %156 = vector.shape_cast %155 : vector<1x8x4xf32> to vector<8x4xf32>
    %157 = vector.extract_strided_slice %156 {offsets = [0, 0], sizes = [8, 1], strides = [1, 1]} : vector<8x4xf32> to vector<8x1xf32>
    %158 = vector.extract_strided_slice %154 {offsets = [0, 0], sizes = [1, 64], strides = [1, 1]} : vector<4x64xf32> to vector<1x64xf32>
    %159 = vector.broadcast %157 : vector<8x1xf32> to vector<8x64xf32>
    %160 = vector.broadcast %158 : vector<1x64xf32> to vector<8x64xf32>
    %161 = arith.mulf %159, %160 : vector<8x64xf32>
    %162 = arith.addf %152, %161 : vector<8x64xf32>
    %163 = vector.extract_strided_slice %156 {offsets = [0, 1], sizes = [8, 1], strides = [1, 1]} : vector<8x4xf32> to vector<8x1xf32>
    %164 = vector.extract_strided_slice %154 {offsets = [1, 0], sizes = [1, 64], strides = [1, 1]} : vector<4x64xf32> to vector<1x64xf32>
    %165 = vector.broadcast %163 : vector<8x1xf32> to vector<8x64xf32>
    %166 = vector.broadcast %164 : vector<1x64xf32> to vector<8x64xf32>
    %167 = arith.mulf %165, %166 : vector<8x64xf32>
    %168 = arith.addf %162, %167 : vector<8x64xf32>
    %169 = vector.extract_strided_slice %156 {offsets = [0, 2], sizes = [8, 1], strides = [1, 1]} : vector<8x4xf32> to vector<8x1xf32>
    %170 = vector.extract_strided_slice %154 {offsets = [2, 0], sizes = [1, 64], strides = [1, 1]} : vector<4x64xf32> to vector<1x64xf32>
    %171 = vector.broadcast %169 : vector<8x1xf32> to vector<8x64xf32>
    %172 = vector.broadcast %170 : vector<1x64xf32> to vector<8x64xf32>
    %173 = arith.mulf %171, %172 : vector<8x64xf32>
    %174 = arith.addf %168, %173 : vector<8x64xf32>
    %175 = vector.extract_strided_slice %156 {offsets = [0, 3], sizes = [8, 1], strides = [1, 1]} : vector<8x4xf32> to vector<8x1xf32>
    %176 = vector.extract_strided_slice %154 {offsets = [3, 0], sizes = [1, 64], strides = [1, 1]} : vector<4x64xf32> to vector<1x64xf32>
    %177 = vector.broadcast %175 : vector<8x1xf32> to vector<8x64xf32>
    %178 = vector.broadcast %176 : vector<1x64xf32> to vector<8x64xf32>
    %179 = arith.mulf %177, %178 : vector<8x64xf32>
    %180 = arith.addf %174, %179 : vector<8x64xf32>
    %181 = vector.extract_strided_slice %11 {offsets = [0, 2, 0], sizes = [4, 8, 8], strides = [1, 1, 1]} : vector<4x10x10xf32> to vector<4x8x8xf32>
    %182 = vector.shape_cast %181 : vector<4x8x8xf32> to vector<4x64xf32>
    %c6 = arith.constant 6 : index
    %c0_24 = arith.constant 0 : index
    %c0_25 = arith.constant 0 : index
    %183 = vector.load %arg2[%c6, %c0_24, %c0_25] : memref<9x8x4xf32, #tpu.memory_space<vmem>>, vector<1x8x4xf32>
    %184 = vector.shape_cast %183 : vector<1x8x4xf32> to vector<8x4xf32>
    %185 = vector.extract_strided_slice %184 {offsets = [0, 0], sizes = [8, 1], strides = [1, 1]} : vector<8x4xf32> to vector<8x1xf32>
    %186 = vector.extract_strided_slice %182 {offsets = [0, 0], sizes = [1, 64], strides = [1, 1]} : vector<4x64xf32> to vector<1x64xf32>
    %187 = vector.broadcast %185 : vector<8x1xf32> to vector<8x64xf32>
    %188 = vector.broadcast %186 : vector<1x64xf32> to vector<8x64xf32>
    %189 = arith.mulf %187, %188 : vector<8x64xf32>
    %190 = arith.addf %180, %189 : vector<8x64xf32>
    %191 = vector.extract_strided_slice %184 {offsets = [0, 1], sizes = [8, 1], strides = [1, 1]} : vector<8x4xf32> to vector<8x1xf32>
    %192 = vector.extract_strided_slice %182 {offsets = [1, 0], sizes = [1, 64], strides = [1, 1]} : vector<4x64xf32> to vector<1x64xf32>
    %193 = vector.broadcast %191 : vector<8x1xf32> to vector<8x64xf32>
    %194 = vector.broadcast %192 : vector<1x64xf32> to vector<8x64xf32>
    %195 = arith.mulf %193, %194 : vector<8x64xf32>
    %196 = arith.addf %190, %195 : vector<8x64xf32>
    %197 = vector.extract_strided_slice %184 {offsets = [0, 2], sizes = [8, 1], strides = [1, 1]} : vector<8x4xf32> to vector<8x1xf32>
    %198 = vector.extract_strided_slice %182 {offsets = [2, 0], sizes = [1, 64], strides = [1, 1]} : vector<4x64xf32> to vector<1x64xf32>
    %199 = vector.broadcast %197 : vector<8x1xf32> to vector<8x64xf32>
    %200 = vector.broadcast %198 : vector<1x64xf32> to vector<8x64xf32>
    %201 = arith.mulf %199, %200 : vector<8x64xf32>
    %202 = arith.addf %196, %201 : vector<8x64xf32>
    %203 = vector.extract_strided_slice %184 {offsets = [0, 3], sizes = [8, 1], strides = [1, 1]} : vector<8x4xf32> to vector<8x1xf32>
    %204 = vector.extract_strided_slice %182 {offsets = [3, 0], sizes = [1, 64], strides = [1, 1]} : vector<4x64xf32> to vector<1x64xf32>
    %205 = vector.broadcast %203 : vector<8x1xf32> to vector<8x64xf32>
    %206 = vector.broadcast %204 : vector<1x64xf32> to vector<8x64xf32>
    %207 = arith.mulf %205, %206 : vector<8x64xf32>
    %208 = arith.addf %202, %207 : vector<8x64xf32>
    %209 = vector.extract_strided_slice %11 {offsets = [0, 2, 1], sizes = [4, 8, 8], strides = [1, 1, 1]} : vector<4x10x10xf32> to vector<4x8x8xf32>
    %210 = vector.shape_cast %209 : vector<4x8x8xf32> to vector<4x64xf32>
    %c7 = arith.constant 7 : index
    %c0_26 = arith.constant 0 : index
    %c0_27 = arith.constant 0 : index
    %211 = vector.load %arg2[%c7, %c0_26, %c0_27] : memref<9x8x4xf32, #tpu.memory_space<vmem>>, vector<1x8x4xf32>
    %212 = vector.shape_cast %211 : vector<1x8x4xf32> to vector<8x4xf32>
    %213 = vector.extract_strided_slice %212 {offsets = [0, 0], sizes = [8, 1], strides = [1, 1]} : vector<8x4xf32> to vector<8x1xf32>
    %214 = vector.extract_strided_slice %210 {offsets = [0, 0], sizes = [1, 64], strides = [1, 1]} : vector<4x64xf32> to vector<1x64xf32>
    %215 = vector.broadcast %213 : vector<8x1xf32> to vector<8x64xf32>
    %216 = vector.broadcast %214 : vector<1x64xf32> to vector<8x64xf32>
    %217 = arith.mulf %215, %216 : vector<8x64xf32>
    %218 = arith.addf %208, %217 : vector<8x64xf32>
    %219 = vector.extract_strided_slice %212 {offsets = [0, 1], sizes = [8, 1], strides = [1, 1]} : vector<8x4xf32> to vector<8x1xf32>
    %220 = vector.extract_strided_slice %210 {offsets = [1, 0], sizes = [1, 64], strides = [1, 1]} : vector<4x64xf32> to vector<1x64xf32>
    %221 = vector.broadcast %219 : vector<8x1xf32> to vector<8x64xf32>
    %222 = vector.broadcast %220 : vector<1x64xf32> to vector<8x64xf32>
    %223 = arith.mulf %221, %222 : vector<8x64xf32>
    %224 = arith.addf %218, %223 : vector<8x64xf32>
    %225 = vector.extract_strided_slice %212 {offsets = [0, 2], sizes = [8, 1], strides = [1, 1]} : vector<8x4xf32> to vector<8x1xf32>
    %226 = vector.extract_strided_slice %210 {offsets = [2, 0], sizes = [1, 64], strides = [1, 1]} : vector<4x64xf32> to vector<1x64xf32>
    %227 = vector.broadcast %225 : vector<8x1xf32> to vector<8x64xf32>
    %228 = vector.broadcast %226 : vector<1x64xf32> to vector<8x64xf32>
    %229 = arith.mulf %227, %228 : vector<8x64xf32>
    %230 = arith.addf %224, %229 : vector<8x64xf32>
    %231 = vector.extract_strided_slice %212 {offsets = [0, 3], sizes = [8, 1], strides = [1, 1]} : vector<8x4xf32> to vector<8x1xf32>
    %232 = vector.extract_strided_slice %210 {offsets = [3, 0], sizes = [1, 64], strides = [1, 1]} : vector<4x64xf32> to vector<1x64xf32>
    %233 = vector.broadcast %231 : vector<8x1xf32> to vector<8x64xf32>
    %234 = vector.broadcast %232 : vector<1x64xf32> to vector<8x64xf32>
    %235 = arith.mulf %233, %234 : vector<8x64xf32>
    %236 = arith.addf %230, %235 : vector<8x64xf32>
    %237 = vector.extract_strided_slice %11 {offsets = [0, 2, 2], sizes = [4, 8, 8], strides = [1, 1, 1]} : vector<4x10x10xf32> to vector<4x8x8xf32>
    %238 = vector.shape_cast %237 : vector<4x8x8xf32> to vector<4x64xf32>
    %c8 = arith.constant 8 : index
    %c0_28 = arith.constant 0 : index
    %c0_29 = arith.constant 0 : index
    %239 = vector.load %arg2[%c8, %c0_28, %c0_29] : memref<9x8x4xf32, #tpu.memory_space<vmem>>, vector<1x8x4xf32>
    %240 = vector.shape_cast %239 : vector<1x8x4xf32> to vector<8x4xf32>
    %241 = vector.extract_strided_slice %240 {offsets = [0, 0], sizes = [8, 1], strides = [1, 1]} : vector<8x4xf32> to vector<8x1xf32>
    %242 = vector.extract_strided_slice %238 {offsets = [0, 0], sizes = [1, 64], strides = [1, 1]} : vector<4x64xf32> to vector<1x64xf32>
    %243 = vector.broadcast %241 : vector<8x1xf32> to vector<8x64xf32>
    %244 = vector.broadcast %242 : vector<1x64xf32> to vector<8x64xf32>
    %245 = arith.mulf %243, %244 : vector<8x64xf32>
    %246 = arith.addf %236, %245 : vector<8x64xf32>
    %247 = vector.extract_strided_slice %240 {offsets = [0, 1], sizes = [8, 1], strides = [1, 1]} : vector<8x4xf32> to vector<8x1xf32>
    %248 = vector.extract_strided_slice %238 {offsets = [1, 0], sizes = [1, 64], strides = [1, 1]} : vector<4x64xf32> to vector<1x64xf32>
    %249 = vector.broadcast %247 : vector<8x1xf32> to vector<8x64xf32>
    %250 = vector.broadcast %248 : vector<1x64xf32> to vector<8x64xf32>
    %251 = arith.mulf %249, %250 : vector<8x64xf32>
    %252 = arith.addf %246, %251 : vector<8x64xf32>
    %253 = vector.extract_strided_slice %240 {offsets = [0, 2], sizes = [8, 1], strides = [1, 1]} : vector<8x4xf32> to vector<8x1xf32>
    %254 = vector.extract_strided_slice %238 {offsets = [2, 0], sizes = [1, 64], strides = [1, 1]} : vector<4x64xf32> to vector<1x64xf32>
    %255 = vector.broadcast %253 : vector<8x1xf32> to vector<8x64xf32>
    %256 = vector.broadcast %254 : vector<1x64xf32> to vector<8x64xf32>
    %257 = arith.mulf %255, %256 : vector<8x64xf32>
    %258 = arith.addf %252, %257 : vector<8x64xf32>
    %259 = vector.extract_strided_slice %240 {offsets = [0, 3], sizes = [8, 1], strides = [1, 1]} : vector<8x4xf32> to vector<8x1xf32>
    %260 = vector.extract_strided_slice %238 {offsets = [3, 0], sizes = [1, 64], strides = [1, 1]} : vector<4x64xf32> to vector<1x64xf32>
    %261 = vector.broadcast %259 : vector<8x1xf32> to vector<8x64xf32>
    %262 = vector.broadcast %260 : vector<1x64xf32> to vector<8x64xf32>
    %263 = arith.mulf %261, %262 : vector<8x64xf32>
    %264 = arith.addf %258, %263 : vector<8x64xf32>
    %265 = vector.broadcast %6 : vector<8x1xf32> to vector<8x64xf32>
    %266 = arith.mulf %264, %265 : vector<8x64xf32>
    %267 = vector.broadcast %7 : vector<8x1xf32> to vector<8x64xf32>
    %268 = arith.addf %266, %267 : vector<8x64xf32>
    %cst_30 = arith.constant 0.000000e+00 : f32
    %269 = vector.broadcast %cst_30 : f32 to vector<8x64xf32>
    %270 = arith.maximumf %268, %269 : vector<8x64xf32>
    %271 = vector.shape_cast %270 : vector<8x64xf32> to vector<8x8x8xf32>
    %c0_31 = arith.constant 0 : index
    %c0_32 = arith.constant 0 : index
    %272 = vector.load %arg6[%c0_31, %c0_32] : memref<8x1xf32, #tpu.memory_space<vmem>>, vector<8x1xf32>
    %c0_33 = arith.constant 0 : index
    %c0_34 = arith.constant 0 : index
    %273 = vector.load %arg7[%c0_33, %c0_34] : memref<8x1xf32, #tpu.memory_space<vmem>>, vector<8x1xf32>
    %cst_35 = arith.constant 0.000000e+00 : f32
    %274 = vector.broadcast %cst_35 : f32 to vector<8x1x8xf32>
    %cst_36 = arith.constant 0.000000e+00 : f32
    %275 = vector.broadcast %cst_36 : f32 to vector<8x10x1xf32>
    %276 = tpu.concatenate %274, %271, %274 in 1 : vector<8x1x8xf32>, vector<8x8x8xf32>, vector<8x1x8xf32> -> vector<8x10x8xf32>
    %277 = tpu.concatenate %275, %276, %275 in 2 : vector<8x10x1xf32>, vector<8x10x8xf32>, vector<8x10x1xf32> -> vector<8x10x10xf32>
    %cst_37 = arith.constant 0.000000e+00 : f32
    %278 = vector.broadcast %cst_37 : f32 to vector<8x64xf32>
    %279 = vector.extract_strided_slice %277 {offsets = [0, 0, 0], sizes = [8, 8, 8], strides = [1, 1, 1]} : vector<8x10x10xf32> to vector<8x8x8xf32>
    %280 = vector.shape_cast %279 : vector<8x8x8xf32> to vector<8x64xf32>
    %c0_38 = arith.constant 0 : index
    %c0_39 = arith.constant 0 : index
    %c0_40 = arith.constant 0 : index
    %281 = vector.load %arg5[%c0_38, %c0_39, %c0_40] : memref<9x8x8xf32, #tpu.memory_space<vmem>>, vector<1x8x8xf32>
    %282 = vector.shape_cast %281 : vector<1x8x8xf32> to vector<8x8xf32>
    %283 = vector.extract_strided_slice %282 {offsets = [0, 0], sizes = [8, 1], strides = [1, 1]} : vector<8x8xf32> to vector<8x1xf32>
    %284 = vector.extract_strided_slice %280 {offsets = [0, 0], sizes = [1, 64], strides = [1, 1]} : vector<8x64xf32> to vector<1x64xf32>
    %285 = vector.broadcast %283 : vector<8x1xf32> to vector<8x64xf32>
    %286 = vector.broadcast %284 : vector<1x64xf32> to vector<8x64xf32>
    %287 = arith.mulf %285, %286 : vector<8x64xf32>
    %288 = arith.addf %278, %287 : vector<8x64xf32>
    %289 = vector.extract_strided_slice %282 {offsets = [0, 1], sizes = [8, 1], strides = [1, 1]} : vector<8x8xf32> to vector<8x1xf32>
    %290 = vector.extract_strided_slice %280 {offsets = [1, 0], sizes = [1, 64], strides = [1, 1]} : vector<8x64xf32> to vector<1x64xf32>
    %291 = vector.broadcast %289 : vector<8x1xf32> to vector<8x64xf32>
    %292 = vector.broadcast %290 : vector<1x64xf32> to vector<8x64xf32>
    %293 = arith.mulf %291, %292 : vector<8x64xf32>
    %294 = arith.addf %288, %293 : vector<8x64xf32>
    %295 = vector.extract_strided_slice %282 {offsets = [0, 2], sizes = [8, 1], strides = [1, 1]} : vector<8x8xf32> to vector<8x1xf32>
    %296 = vector.extract_strided_slice %280 {offsets = [2, 0], sizes = [1, 64], strides = [1, 1]} : vector<8x64xf32> to vector<1x64xf32>
    %297 = vector.broadcast %295 : vector<8x1xf32> to vector<8x64xf32>
    %298 = vector.broadcast %296 : vector<1x64xf32> to vector<8x64xf32>
    %299 = arith.mulf %297, %298 : vector<8x64xf32>
    %300 = arith.addf %294, %299 : vector<8x64xf32>
    %301 = vector.extract_strided_slice %282 {offsets = [0, 3], sizes = [8, 1], strides = [1, 1]} : vector<8x8xf32> to vector<8x1xf32>
    %302 = vector.extract_strided_slice %280 {offsets = [3, 0], sizes = [1, 64], strides = [1, 1]} : vector<8x64xf32> to vector<1x64xf32>
    %303 = vector.broadcast %301 : vector<8x1xf32> to vector<8x64xf32>
    %304 = vector.broadcast %302 : vector<1x64xf32> to vector<8x64xf32>
    %305 = arith.mulf %303, %304 : vector<8x64xf32>
    %306 = arith.addf %300, %305 : vector<8x64xf32>
    %307 = vector.extract_strided_slice %282 {offsets = [0, 4], sizes = [8, 1], strides = [1, 1]} : vector<8x8xf32> to vector<8x1xf32>
    %308 = vector.extract_strided_slice %280 {offsets = [4, 0], sizes = [1, 64], strides = [1, 1]} : vector<8x64xf32> to vector<1x64xf32>
    %309 = vector.broadcast %307 : vector<8x1xf32> to vector<8x64xf32>
    %310 = vector.broadcast %308 : vector<1x64xf32> to vector<8x64xf32>
    %311 = arith.mulf %309, %310 : vector<8x64xf32>
    %312 = arith.addf %306, %311 : vector<8x64xf32>
    %313 = vector.extract_strided_slice %282 {offsets = [0, 5], sizes = [8, 1], strides = [1, 1]} : vector<8x8xf32> to vector<8x1xf32>
    %314 = vector.extract_strided_slice %280 {offsets = [5, 0], sizes = [1, 64], strides = [1, 1]} : vector<8x64xf32> to vector<1x64xf32>
    %315 = vector.broadcast %313 : vector<8x1xf32> to vector<8x64xf32>
    %316 = vector.broadcast %314 : vector<1x64xf32> to vector<8x64xf32>
    %317 = arith.mulf %315, %316 : vector<8x64xf32>
    %318 = arith.addf %312, %317 : vector<8x64xf32>
    %319 = vector.extract_strided_slice %282 {offsets = [0, 6], sizes = [8, 1], strides = [1, 1]} : vector<8x8xf32> to vector<8x1xf32>
    %320 = vector.extract_strided_slice %280 {offsets = [6, 0], sizes = [1, 64], strides = [1, 1]} : vector<8x64xf32> to vector<1x64xf32>
    %321 = vector.broadcast %319 : vector<8x1xf32> to vector<8x64xf32>
    %322 = vector.broadcast %320 : vector<1x64xf32> to vector<8x64xf32>
    %323 = arith.mulf %321, %322 : vector<8x64xf32>
    %324 = arith.addf %318, %323 : vector<8x64xf32>
    %325 = vector.extract_strided_slice %282 {offsets = [0, 7], sizes = [8, 1], strides = [1, 1]} : vector<8x8xf32> to vector<8x1xf32>
    %326 = vector.extract_strided_slice %280 {offsets = [7, 0], sizes = [1, 64], strides = [1, 1]} : vector<8x64xf32> to vector<1x64xf32>
    %327 = vector.broadcast %325 : vector<8x1xf32> to vector<8x64xf32>
    %328 = vector.broadcast %326 : vector<1x64xf32> to vector<8x64xf32>
    %329 = arith.mulf %327, %328 : vector<8x64xf32>
    %330 = arith.addf %324, %329 : vector<8x64xf32>
    %331 = vector.extract_strided_slice %277 {offsets = [0, 0, 1], sizes = [8, 8, 8], strides = [1, 1, 1]} : vector<8x10x10xf32> to vector<8x8x8xf32>
    %332 = vector.shape_cast %331 : vector<8x8x8xf32> to vector<8x64xf32>
    %c1_41 = arith.constant 1 : index
    %c0_42 = arith.constant 0 : index
    %c0_43 = arith.constant 0 : index
    %333 = vector.load %arg5[%c1_41, %c0_42, %c0_43] : memref<9x8x8xf32, #tpu.memory_space<vmem>>, vector<1x8x8xf32>
    %334 = vector.shape_cast %333 : vector<1x8x8xf32> to vector<8x8xf32>
    %335 = vector.extract_strided_slice %334 {offsets = [0, 0], sizes = [8, 1], strides = [1, 1]} : vector<8x8xf32> to vector<8x1xf32>
    %336 = vector.extract_strided_slice %332 {offsets = [0, 0], sizes = [1, 64], strides = [1, 1]} : vector<8x64xf32> to vector<1x64xf32>
    %337 = vector.broadcast %335 : vector<8x1xf32> to vector<8x64xf32>
    %338 = vector.broadcast %336 : vector<1x64xf32> to vector<8x64xf32>
    %339 = arith.mulf %337, %338 : vector<8x64xf32>
    %340 = arith.addf %330, %339 : vector<8x64xf32>
    %341 = vector.extract_strided_slice %334 {offsets = [0, 1], sizes = [8, 1], strides = [1, 1]} : vector<8x8xf32> to vector<8x1xf32>
    %342 = vector.extract_strided_slice %332 {offsets = [1, 0], sizes = [1, 64], strides = [1, 1]} : vector<8x64xf32> to vector<1x64xf32>
    %343 = vector.broadcast %341 : vector<8x1xf32> to vector<8x64xf32>
    %344 = vector.broadcast %342 : vector<1x64xf32> to vector<8x64xf32>
    %345 = arith.mulf %343, %344 : vector<8x64xf32>
    %346 = arith.addf %340, %345 : vector<8x64xf32>
    %347 = vector.extract_strided_slice %334 {offsets = [0, 2], sizes = [8, 1], strides = [1, 1]} : vector<8x8xf32> to vector<8x1xf32>
    %348 = vector.extract_strided_slice %332 {offsets = [2, 0], sizes = [1, 64], strides = [1, 1]} : vector<8x64xf32> to vector<1x64xf32>
    %349 = vector.broadcast %347 : vector<8x1xf32> to vector<8x64xf32>
    %350 = vector.broadcast %348 : vector<1x64xf32> to vector<8x64xf32>
    %351 = arith.mulf %349, %350 : vector<8x64xf32>
    %352 = arith.addf %346, %351 : vector<8x64xf32>
    %353 = vector.extract_strided_slice %334 {offsets = [0, 3], sizes = [8, 1], strides = [1, 1]} : vector<8x8xf32> to vector<8x1xf32>
    %354 = vector.extract_strided_slice %332 {offsets = [3, 0], sizes = [1, 64], strides = [1, 1]} : vector<8x64xf32> to vector<1x64xf32>
    %355 = vector.broadcast %353 : vector<8x1xf32> to vector<8x64xf32>
    %356 = vector.broadcast %354 : vector<1x64xf32> to vector<8x64xf32>
    %357 = arith.mulf %355, %356 : vector<8x64xf32>
    %358 = arith.addf %352, %357 : vector<8x64xf32>
    %359 = vector.extract_strided_slice %334 {offsets = [0, 4], sizes = [8, 1], strides = [1, 1]} : vector<8x8xf32> to vector<8x1xf32>
    %360 = vector.extract_strided_slice %332 {offsets = [4, 0], sizes = [1, 64], strides = [1, 1]} : vector<8x64xf32> to vector<1x64xf32>
    %361 = vector.broadcast %359 : vector<8x1xf32> to vector<8x64xf32>
    %362 = vector.broadcast %360 : vector<1x64xf32> to vector<8x64xf32>
    %363 = arith.mulf %361, %362 : vector<8x64xf32>
    %364 = arith.addf %358, %363 : vector<8x64xf32>
    %365 = vector.extract_strided_slice %334 {offsets = [0, 5], sizes = [8, 1], strides = [1, 1]} : vector<8x8xf32> to vector<8x1xf32>
    %366 = vector.extract_strided_slice %332 {offsets = [5, 0], sizes = [1, 64], strides = [1, 1]} : vector<8x64xf32> to vector<1x64xf32>
    %367 = vector.broadcast %365 : vector<8x1xf32> to vector<8x64xf32>
    %368 = vector.broadcast %366 : vector<1x64xf32> to vector<8x64xf32>
    %369 = arith.mulf %367, %368 : vector<8x64xf32>
    %370 = arith.addf %364, %369 : vector<8x64xf32>
    %371 = vector.extract_strided_slice %334 {offsets = [0, 6], sizes = [8, 1], strides = [1, 1]} : vector<8x8xf32> to vector<8x1xf32>
    %372 = vector.extract_strided_slice %332 {offsets = [6, 0], sizes = [1, 64], strides = [1, 1]} : vector<8x64xf32> to vector<1x64xf32>
    %373 = vector.broadcast %371 : vector<8x1xf32> to vector<8x64xf32>
    %374 = vector.broadcast %372 : vector<1x64xf32> to vector<8x64xf32>
    %375 = arith.mulf %373, %374 : vector<8x64xf32>
    %376 = arith.addf %370, %375 : vector<8x64xf32>
    %377 = vector.extract_strided_slice %334 {offsets = [0, 7], sizes = [8, 1], strides = [1, 1]} : vector<8x8xf32> to vector<8x1xf32>
    %378 = vector.extract_strided_slice %332 {offsets = [7, 0], sizes = [1, 64], strides = [1, 1]} : vector<8x64xf32> to vector<1x64xf32>
    %379 = vector.broadcast %377 : vector<8x1xf32> to vector<8x64xf32>
    %380 = vector.broadcast %378 : vector<1x64xf32> to vector<8x64xf32>
    %381 = arith.mulf %379, %380 : vector<8x64xf32>
    %382 = arith.addf %376, %381 : vector<8x64xf32>
    %383 = vector.extract_strided_slice %277 {offsets = [0, 0, 2], sizes = [8, 8, 8], strides = [1, 1, 1]} : vector<8x10x10xf32> to vector<8x8x8xf32>
    %384 = vector.shape_cast %383 : vector<8x8x8xf32> to vector<8x64xf32>
    %c2_44 = arith.constant 2 : index
    %c0_45 = arith.constant 0 : index
    %c0_46 = arith.constant 0 : index
    %385 = vector.load %arg5[%c2_44, %c0_45, %c0_46] : memref<9x8x8xf32, #tpu.memory_space<vmem>>, vector<1x8x8xf32>
    %386 = vector.shape_cast %385 : vector<1x8x8xf32> to vector<8x8xf32>
    %387 = vector.extract_strided_slice %386 {offsets = [0, 0], sizes = [8, 1], strides = [1, 1]} : vector<8x8xf32> to vector<8x1xf32>
    %388 = vector.extract_strided_slice %384 {offsets = [0, 0], sizes = [1, 64], strides = [1, 1]} : vector<8x64xf32> to vector<1x64xf32>
    %389 = vector.broadcast %387 : vector<8x1xf32> to vector<8x64xf32>
    %390 = vector.broadcast %388 : vector<1x64xf32> to vector<8x64xf32>
    %391 = arith.mulf %389, %390 : vector<8x64xf32>
    %392 = arith.addf %382, %391 : vector<8x64xf32>
    %393 = vector.extract_strided_slice %386 {offsets = [0, 1], sizes = [8, 1], strides = [1, 1]} : vector<8x8xf32> to vector<8x1xf32>
    %394 = vector.extract_strided_slice %384 {offsets = [1, 0], sizes = [1, 64], strides = [1, 1]} : vector<8x64xf32> to vector<1x64xf32>
    %395 = vector.broadcast %393 : vector<8x1xf32> to vector<8x64xf32>
    %396 = vector.broadcast %394 : vector<1x64xf32> to vector<8x64xf32>
    %397 = arith.mulf %395, %396 : vector<8x64xf32>
    %398 = arith.addf %392, %397 : vector<8x64xf32>
    %399 = vector.extract_strided_slice %386 {offsets = [0, 2], sizes = [8, 1], strides = [1, 1]} : vector<8x8xf32> to vector<8x1xf32>
    %400 = vector.extract_strided_slice %384 {offsets = [2, 0], sizes = [1, 64], strides = [1, 1]} : vector<8x64xf32> to vector<1x64xf32>
    %401 = vector.broadcast %399 : vector<8x1xf32> to vector<8x64xf32>
    %402 = vector.broadcast %400 : vector<1x64xf32> to vector<8x64xf32>
    %403 = arith.mulf %401, %402 : vector<8x64xf32>
    %404 = arith.addf %398, %403 : vector<8x64xf32>
    %405 = vector.extract_strided_slice %386 {offsets = [0, 3], sizes = [8, 1], strides = [1, 1]} : vector<8x8xf32> to vector<8x1xf32>
    %406 = vector.extract_strided_slice %384 {offsets = [3, 0], sizes = [1, 64], strides = [1, 1]} : vector<8x64xf32> to vector<1x64xf32>
    %407 = vector.broadcast %405 : vector<8x1xf32> to vector<8x64xf32>
    %408 = vector.broadcast %406 : vector<1x64xf32> to vector<8x64xf32>
    %409 = arith.mulf %407, %408 : vector<8x64xf32>
    %410 = arith.addf %404, %409 : vector<8x64xf32>
    %411 = vector.extract_strided_slice %386 {offsets = [0, 4], sizes = [8, 1], strides = [1, 1]} : vector<8x8xf32> to vector<8x1xf32>
    %412 = vector.extract_strided_slice %384 {offsets = [4, 0], sizes = [1, 64], strides = [1, 1]} : vector<8x64xf32> to vector<1x64xf32>
    %413 = vector.broadcast %411 : vector<8x1xf32> to vector<8x64xf32>
    %414 = vector.broadcast %412 : vector<1x64xf32> to vector<8x64xf32>
    %415 = arith.mulf %413, %414 : vector<8x64xf32>
    %416 = arith.addf %410, %415 : vector<8x64xf32>
    %417 = vector.extract_strided_slice %386 {offsets = [0, 5], sizes = [8, 1], strides = [1, 1]} : vector<8x8xf32> to vector<8x1xf32>
    %418 = vector.extract_strided_slice %384 {offsets = [5, 0], sizes = [1, 64], strides = [1, 1]} : vector<8x64xf32> to vector<1x64xf32>
    %419 = vector.broadcast %417 : vector<8x1xf32> to vector<8x64xf32>
    %420 = vector.broadcast %418 : vector<1x64xf32> to vector<8x64xf32>
    %421 = arith.mulf %419, %420 : vector<8x64xf32>
    %422 = arith.addf %416, %421 : vector<8x64xf32>
    %423 = vector.extract_strided_slice %386 {offsets = [0, 6], sizes = [8, 1], strides = [1, 1]} : vector<8x8xf32> to vector<8x1xf32>
    %424 = vector.extract_strided_slice %384 {offsets = [6, 0], sizes = [1, 64], strides = [1, 1]} : vector<8x64xf32> to vector<1x64xf32>
    %425 = vector.broadcast %423 : vector<8x1xf32> to vector<8x64xf32>
    %426 = vector.broadcast %424 : vector<1x64xf32> to vector<8x64xf32>
    %427 = arith.mulf %425, %426 : vector<8x64xf32>
    %428 = arith.addf %422, %427 : vector<8x64xf32>
    %429 = vector.extract_strided_slice %386 {offsets = [0, 7], sizes = [8, 1], strides = [1, 1]} : vector<8x8xf32> to vector<8x1xf32>
    %430 = vector.extract_strided_slice %384 {offsets = [7, 0], sizes = [1, 64], strides = [1, 1]} : vector<8x64xf32> to vector<1x64xf32>
    %431 = vector.broadcast %429 : vector<8x1xf32> to vector<8x64xf32>
    %432 = vector.broadcast %430 : vector<1x64xf32> to vector<8x64xf32>
    %433 = arith.mulf %431, %432 : vector<8x64xf32>
    %434 = arith.addf %428, %433 : vector<8x64xf32>
    %435 = vector.extract_strided_slice %277 {offsets = [0, 1, 0], sizes = [8, 8, 8], strides = [1, 1, 1]} : vector<8x10x10xf32> to vector<8x8x8xf32>
    %436 = vector.shape_cast %435 : vector<8x8x8xf32> to vector<8x64xf32>
    %c3_47 = arith.constant 3 : index
    %c0_48 = arith.constant 0 : index
    %c0_49 = arith.constant 0 : index
    %437 = vector.load %arg5[%c3_47, %c0_48, %c0_49] : memref<9x8x8xf32, #tpu.memory_space<vmem>>, vector<1x8x8xf32>
    %438 = vector.shape_cast %437 : vector<1x8x8xf32> to vector<8x8xf32>
    %439 = vector.extract_strided_slice %438 {offsets = [0, 0], sizes = [8, 1], strides = [1, 1]} : vector<8x8xf32> to vector<8x1xf32>
    %440 = vector.extract_strided_slice %436 {offsets = [0, 0], sizes = [1, 64], strides = [1, 1]} : vector<8x64xf32> to vector<1x64xf32>
    %441 = vector.broadcast %439 : vector<8x1xf32> to vector<8x64xf32>
    %442 = vector.broadcast %440 : vector<1x64xf32> to vector<8x64xf32>
    %443 = arith.mulf %441, %442 : vector<8x64xf32>
    %444 = arith.addf %434, %443 : vector<8x64xf32>
    %445 = vector.extract_strided_slice %438 {offsets = [0, 1], sizes = [8, 1], strides = [1, 1]} : vector<8x8xf32> to vector<8x1xf32>
    %446 = vector.extract_strided_slice %436 {offsets = [1, 0], sizes = [1, 64], strides = [1, 1]} : vector<8x64xf32> to vector<1x64xf32>
    %447 = vector.broadcast %445 : vector<8x1xf32> to vector<8x64xf32>
    %448 = vector.broadcast %446 : vector<1x64xf32> to vector<8x64xf32>
    %449 = arith.mulf %447, %448 : vector<8x64xf32>
    %450 = arith.addf %444, %449 : vector<8x64xf32>
    %451 = vector.extract_strided_slice %438 {offsets = [0, 2], sizes = [8, 1], strides = [1, 1]} : vector<8x8xf32> to vector<8x1xf32>
    %452 = vector.extract_strided_slice %436 {offsets = [2, 0], sizes = [1, 64], strides = [1, 1]} : vector<8x64xf32> to vector<1x64xf32>
    %453 = vector.broadcast %451 : vector<8x1xf32> to vector<8x64xf32>
    %454 = vector.broadcast %452 : vector<1x64xf32> to vector<8x64xf32>
    %455 = arith.mulf %453, %454 : vector<8x64xf32>
    %456 = arith.addf %450, %455 : vector<8x64xf32>
    %457 = vector.extract_strided_slice %438 {offsets = [0, 3], sizes = [8, 1], strides = [1, 1]} : vector<8x8xf32> to vector<8x1xf32>
    %458 = vector.extract_strided_slice %436 {offsets = [3, 0], sizes = [1, 64], strides = [1, 1]} : vector<8x64xf32> to vector<1x64xf32>
    %459 = vector.broadcast %457 : vector<8x1xf32> to vector<8x64xf32>
    %460 = vector.broadcast %458 : vector<1x64xf32> to vector<8x64xf32>
    %461 = arith.mulf %459, %460 : vector<8x64xf32>
    %462 = arith.addf %456, %461 : vector<8x64xf32>
    %463 = vector.extract_strided_slice %438 {offsets = [0, 4], sizes = [8, 1], strides = [1, 1]} : vector<8x8xf32> to vector<8x1xf32>
    %464 = vector.extract_strided_slice %436 {offsets = [4, 0], sizes = [1, 64], strides = [1, 1]} : vector<8x64xf32> to vector<1x64xf32>
    %465 = vector.broadcast %463 : vector<8x1xf32> to vector<8x64xf32>
    %466 = vector.broadcast %464 : vector<1x64xf32> to vector<8x64xf32>
    %467 = arith.mulf %465, %466 : vector<8x64xf32>
    %468 = arith.addf %462, %467 : vector<8x64xf32>
    %469 = vector.extract_strided_slice %438 {offsets = [0, 5], sizes = [8, 1], strides = [1, 1]} : vector<8x8xf32> to vector<8x1xf32>
    %470 = vector.extract_strided_slice %436 {offsets = [5, 0], sizes = [1, 64], strides = [1, 1]} : vector<8x64xf32> to vector<1x64xf32>
    %471 = vector.broadcast %469 : vector<8x1xf32> to vector<8x64xf32>
    %472 = vector.broadcast %470 : vector<1x64xf32> to vector<8x64xf32>
    %473 = arith.mulf %471, %472 : vector<8x64xf32>
    %474 = arith.addf %468, %473 : vector<8x64xf32>
    %475 = vector.extract_strided_slice %438 {offsets = [0, 6], sizes = [8, 1], strides = [1, 1]} : vector<8x8xf32> to vector<8x1xf32>
    %476 = vector.extract_strided_slice %436 {offsets = [6, 0], sizes = [1, 64], strides = [1, 1]} : vector<8x64xf32> to vector<1x64xf32>
    %477 = vector.broadcast %475 : vector<8x1xf32> to vector<8x64xf32>
    %478 = vector.broadcast %476 : vector<1x64xf32> to vector<8x64xf32>
    %479 = arith.mulf %477, %478 : vector<8x64xf32>
    %480 = arith.addf %474, %479 : vector<8x64xf32>
    %481 = vector.extract_strided_slice %438 {offsets = [0, 7], sizes = [8, 1], strides = [1, 1]} : vector<8x8xf32> to vector<8x1xf32>
    %482 = vector.extract_strided_slice %436 {offsets = [7, 0], sizes = [1, 64], strides = [1, 1]} : vector<8x64xf32> to vector<1x64xf32>
    %483 = vector.broadcast %481 : vector<8x1xf32> to vector<8x64xf32>
    %484 = vector.broadcast %482 : vector<1x64xf32> to vector<8x64xf32>
    %485 = arith.mulf %483, %484 : vector<8x64xf32>
    %486 = arith.addf %480, %485 : vector<8x64xf32>
    %487 = vector.extract_strided_slice %277 {offsets = [0, 1, 1], sizes = [8, 8, 8], strides = [1, 1, 1]} : vector<8x10x10xf32> to vector<8x8x8xf32>
    %488 = vector.shape_cast %487 : vector<8x8x8xf32> to vector<8x64xf32>
    %c4_50 = arith.constant 4 : index
    %c0_51 = arith.constant 0 : index
    %c0_52 = arith.constant 0 : index
    %489 = vector.load %arg5[%c4_50, %c0_51, %c0_52] : memref<9x8x8xf32, #tpu.memory_space<vmem>>, vector<1x8x8xf32>
    %490 = vector.shape_cast %489 : vector<1x8x8xf32> to vector<8x8xf32>
    %491 = vector.extract_strided_slice %490 {offsets = [0, 0], sizes = [8, 1], strides = [1, 1]} : vector<8x8xf32> to vector<8x1xf32>
    %492 = vector.extract_strided_slice %488 {offsets = [0, 0], sizes = [1, 64], strides = [1, 1]} : vector<8x64xf32> to vector<1x64xf32>
    %493 = vector.broadcast %491 : vector<8x1xf32> to vector<8x64xf32>
    %494 = vector.broadcast %492 : vector<1x64xf32> to vector<8x64xf32>
    %495 = arith.mulf %493, %494 : vector<8x64xf32>
    %496 = arith.addf %486, %495 : vector<8x64xf32>
    %497 = vector.extract_strided_slice %490 {offsets = [0, 1], sizes = [8, 1], strides = [1, 1]} : vector<8x8xf32> to vector<8x1xf32>
    %498 = vector.extract_strided_slice %488 {offsets = [1, 0], sizes = [1, 64], strides = [1, 1]} : vector<8x64xf32> to vector<1x64xf32>
    %499 = vector.broadcast %497 : vector<8x1xf32> to vector<8x64xf32>
    %500 = vector.broadcast %498 : vector<1x64xf32> to vector<8x64xf32>
    %501 = arith.mulf %499, %500 : vector<8x64xf32>
    %502 = arith.addf %496, %501 : vector<8x64xf32>
    %503 = vector.extract_strided_slice %490 {offsets = [0, 2], sizes = [8, 1], strides = [1, 1]} : vector<8x8xf32> to vector<8x1xf32>
    %504 = vector.extract_strided_slice %488 {offsets = [2, 0], sizes = [1, 64], strides = [1, 1]} : vector<8x64xf32> to vector<1x64xf32>
    %505 = vector.broadcast %503 : vector<8x1xf32> to vector<8x64xf32>
    %506 = vector.broadcast %504 : vector<1x64xf32> to vector<8x64xf32>
    %507 = arith.mulf %505, %506 : vector<8x64xf32>
    %508 = arith.addf %502, %507 : vector<8x64xf32>
    %509 = vector.extract_strided_slice %490 {offsets = [0, 3], sizes = [8, 1], strides = [1, 1]} : vector<8x8xf32> to vector<8x1xf32>
    %510 = vector.extract_strided_slice %488 {offsets = [3, 0], sizes = [1, 64], strides = [1, 1]} : vector<8x64xf32> to vector<1x64xf32>
    %511 = vector.broadcast %509 : vector<8x1xf32> to vector<8x64xf32>
    %512 = vector.broadcast %510 : vector<1x64xf32> to vector<8x64xf32>
    %513 = arith.mulf %511, %512 : vector<8x64xf32>
    %514 = arith.addf %508, %513 : vector<8x64xf32>
    %515 = vector.extract_strided_slice %490 {offsets = [0, 4], sizes = [8, 1], strides = [1, 1]} : vector<8x8xf32> to vector<8x1xf32>
    %516 = vector.extract_strided_slice %488 {offsets = [4, 0], sizes = [1, 64], strides = [1, 1]} : vector<8x64xf32> to vector<1x64xf32>
    %517 = vector.broadcast %515 : vector<8x1xf32> to vector<8x64xf32>
    %518 = vector.broadcast %516 : vector<1x64xf32> to vector<8x64xf32>
    %519 = arith.mulf %517, %518 : vector<8x64xf32>
    %520 = arith.addf %514, %519 : vector<8x64xf32>
    %521 = vector.extract_strided_slice %490 {offsets = [0, 5], sizes = [8, 1], strides = [1, 1]} : vector<8x8xf32> to vector<8x1xf32>
    %522 = vector.extract_strided_slice %488 {offsets = [5, 0], sizes = [1, 64], strides = [1, 1]} : vector<8x64xf32> to vector<1x64xf32>
    %523 = vector.broadcast %521 : vector<8x1xf32> to vector<8x64xf32>
    %524 = vector.broadcast %522 : vector<1x64xf32> to vector<8x64xf32>
    %525 = arith.mulf %523, %524 : vector<8x64xf32>
    %526 = arith.addf %520, %525 : vector<8x64xf32>
    %527 = vector.extract_strided_slice %490 {offsets = [0, 6], sizes = [8, 1], strides = [1, 1]} : vector<8x8xf32> to vector<8x1xf32>
    %528 = vector.extract_strided_slice %488 {offsets = [6, 0], sizes = [1, 64], strides = [1, 1]} : vector<8x64xf32> to vector<1x64xf32>
    %529 = vector.broadcast %527 : vector<8x1xf32> to vector<8x64xf32>
    %530 = vector.broadcast %528 : vector<1x64xf32> to vector<8x64xf32>
    %531 = arith.mulf %529, %530 : vector<8x64xf32>
    %532 = arith.addf %526, %531 : vector<8x64xf32>
    %533 = vector.extract_strided_slice %490 {offsets = [0, 7], sizes = [8, 1], strides = [1, 1]} : vector<8x8xf32> to vector<8x1xf32>
    %534 = vector.extract_strided_slice %488 {offsets = [7, 0], sizes = [1, 64], strides = [1, 1]} : vector<8x64xf32> to vector<1x64xf32>
    %535 = vector.broadcast %533 : vector<8x1xf32> to vector<8x64xf32>
    %536 = vector.broadcast %534 : vector<1x64xf32> to vector<8x64xf32>
    %537 = arith.mulf %535, %536 : vector<8x64xf32>
    %538 = arith.addf %532, %537 : vector<8x64xf32>
    %539 = vector.extract_strided_slice %277 {offsets = [0, 1, 2], sizes = [8, 8, 8], strides = [1, 1, 1]} : vector<8x10x10xf32> to vector<8x8x8xf32>
    %540 = vector.shape_cast %539 : vector<8x8x8xf32> to vector<8x64xf32>
    %c5_53 = arith.constant 5 : index
    %c0_54 = arith.constant 0 : index
    %c0_55 = arith.constant 0 : index
    %541 = vector.load %arg5[%c5_53, %c0_54, %c0_55] : memref<9x8x8xf32, #tpu.memory_space<vmem>>, vector<1x8x8xf32>
    %542 = vector.shape_cast %541 : vector<1x8x8xf32> to vector<8x8xf32>
    %543 = vector.extract_strided_slice %542 {offsets = [0, 0], sizes = [8, 1], strides = [1, 1]} : vector<8x8xf32> to vector<8x1xf32>
    %544 = vector.extract_strided_slice %540 {offsets = [0, 0], sizes = [1, 64], strides = [1, 1]} : vector<8x64xf32> to vector<1x64xf32>
    %545 = vector.broadcast %543 : vector<8x1xf32> to vector<8x64xf32>
    %546 = vector.broadcast %544 : vector<1x64xf32> to vector<8x64xf32>
    %547 = arith.mulf %545, %546 : vector<8x64xf32>
    %548 = arith.addf %538, %547 : vector<8x64xf32>
    %549 = vector.extract_strided_slice %542 {offsets = [0, 1], sizes = [8, 1], strides = [1, 1]} : vector<8x8xf32> to vector<8x1xf32>
    %550 = vector.extract_strided_slice %540 {offsets = [1, 0], sizes = [1, 64], strides = [1, 1]} : vector<8x64xf32> to vector<1x64xf32>
    %551 = vector.broadcast %549 : vector<8x1xf32> to vector<8x64xf32>
    %552 = vector.broadcast %550 : vector<1x64xf32> to vector<8x64xf32>
    %553 = arith.mulf %551, %552 : vector<8x64xf32>
    %554 = arith.addf %548, %553 : vector<8x64xf32>
    %555 = vector.extract_strided_slice %542 {offsets = [0, 2], sizes = [8, 1], strides = [1, 1]} : vector<8x8xf32> to vector<8x1xf32>
    %556 = vector.extract_strided_slice %540 {offsets = [2, 0], sizes = [1, 64], strides = [1, 1]} : vector<8x64xf32> to vector<1x64xf32>
    %557 = vector.broadcast %555 : vector<8x1xf32> to vector<8x64xf32>
    %558 = vector.broadcast %556 : vector<1x64xf32> to vector<8x64xf32>
    %559 = arith.mulf %557, %558 : vector<8x64xf32>
    %560 = arith.addf %554, %559 : vector<8x64xf32>
    %561 = vector.extract_strided_slice %542 {offsets = [0, 3], sizes = [8, 1], strides = [1, 1]} : vector<8x8xf32> to vector<8x1xf32>
    %562 = vector.extract_strided_slice %540 {offsets = [3, 0], sizes = [1, 64], strides = [1, 1]} : vector<8x64xf32> to vector<1x64xf32>
    %563 = vector.broadcast %561 : vector<8x1xf32> to vector<8x64xf32>
    %564 = vector.broadcast %562 : vector<1x64xf32> to vector<8x64xf32>
    %565 = arith.mulf %563, %564 : vector<8x64xf32>
    %566 = arith.addf %560, %565 : vector<8x64xf32>
    %567 = vector.extract_strided_slice %542 {offsets = [0, 4], sizes = [8, 1], strides = [1, 1]} : vector<8x8xf32> to vector<8x1xf32>
    %568 = vector.extract_strided_slice %540 {offsets = [4, 0], sizes = [1, 64], strides = [1, 1]} : vector<8x64xf32> to vector<1x64xf32>
    %569 = vector.broadcast %567 : vector<8x1xf32> to vector<8x64xf32>
    %570 = vector.broadcast %568 : vector<1x64xf32> to vector<8x64xf32>
    %571 = arith.mulf %569, %570 : vector<8x64xf32>
    %572 = arith.addf %566, %571 : vector<8x64xf32>
    %573 = vector.extract_strided_slice %542 {offsets = [0, 5], sizes = [8, 1], strides = [1, 1]} : vector<8x8xf32> to vector<8x1xf32>
    %574 = vector.extract_strided_slice %540 {offsets = [5, 0], sizes = [1, 64], strides = [1, 1]} : vector<8x64xf32> to vector<1x64xf32>
    %575 = vector.broadcast %573 : vector<8x1xf32> to vector<8x64xf32>
    %576 = vector.broadcast %574 : vector<1x64xf32> to vector<8x64xf32>
    %577 = arith.mulf %575, %576 : vector<8x64xf32>
    %578 = arith.addf %572, %577 : vector<8x64xf32>
    %579 = vector.extract_strided_slice %542 {offsets = [0, 6], sizes = [8, 1], strides = [1, 1]} : vector<8x8xf32> to vector<8x1xf32>
    %580 = vector.extract_strided_slice %540 {offsets = [6, 0], sizes = [1, 64], strides = [1, 1]} : vector<8x64xf32> to vector<1x64xf32>
    %581 = vector.broadcast %579 : vector<8x1xf32> to vector<8x64xf32>
    %582 = vector.broadcast %580 : vector<1x64xf32> to vector<8x64xf32>
    %583 = arith.mulf %581, %582 : vector<8x64xf32>
    %584 = arith.addf %578, %583 : vector<8x64xf32>
    %585 = vector.extract_strided_slice %542 {offsets = [0, 7], sizes = [8, 1], strides = [1, 1]} : vector<8x8xf32> to vector<8x1xf32>
    %586 = vector.extract_strided_slice %540 {offsets = [7, 0], sizes = [1, 64], strides = [1, 1]} : vector<8x64xf32> to vector<1x64xf32>
    %587 = vector.broadcast %585 : vector<8x1xf32> to vector<8x64xf32>
    %588 = vector.broadcast %586 : vector<1x64xf32> to vector<8x64xf32>
    %589 = arith.mulf %587, %588 : vector<8x64xf32>
    %590 = arith.addf %584, %589 : vector<8x64xf32>
    %591 = vector.extract_strided_slice %277 {offsets = [0, 2, 0], sizes = [8, 8, 8], strides = [1, 1, 1]} : vector<8x10x10xf32> to vector<8x8x8xf32>
    %592 = vector.shape_cast %591 : vector<8x8x8xf32> to vector<8x64xf32>
    %c6_56 = arith.constant 6 : index
    %c0_57 = arith.constant 0 : index
    %c0_58 = arith.constant 0 : index
    %593 = vector.load %arg5[%c6_56, %c0_57, %c0_58] : memref<9x8x8xf32, #tpu.memory_space<vmem>>, vector<1x8x8xf32>
    %594 = vector.shape_cast %593 : vector<1x8x8xf32> to vector<8x8xf32>
    %595 = vector.extract_strided_slice %594 {offsets = [0, 0], sizes = [8, 1], strides = [1, 1]} : vector<8x8xf32> to vector<8x1xf32>
    %596 = vector.extract_strided_slice %592 {offsets = [0, 0], sizes = [1, 64], strides = [1, 1]} : vector<8x64xf32> to vector<1x64xf32>
    %597 = vector.broadcast %595 : vector<8x1xf32> to vector<8x64xf32>
    %598 = vector.broadcast %596 : vector<1x64xf32> to vector<8x64xf32>
    %599 = arith.mulf %597, %598 : vector<8x64xf32>
    %600 = arith.addf %590, %599 : vector<8x64xf32>
    %601 = vector.extract_strided_slice %594 {offsets = [0, 1], sizes = [8, 1], strides = [1, 1]} : vector<8x8xf32> to vector<8x1xf32>
    %602 = vector.extract_strided_slice %592 {offsets = [1, 0], sizes = [1, 64], strides = [1, 1]} : vector<8x64xf32> to vector<1x64xf32>
    %603 = vector.broadcast %601 : vector<8x1xf32> to vector<8x64xf32>
    %604 = vector.broadcast %602 : vector<1x64xf32> to vector<8x64xf32>
    %605 = arith.mulf %603, %604 : vector<8x64xf32>
    %606 = arith.addf %600, %605 : vector<8x64xf32>
    %607 = vector.extract_strided_slice %594 {offsets = [0, 2], sizes = [8, 1], strides = [1, 1]} : vector<8x8xf32> to vector<8x1xf32>
    %608 = vector.extract_strided_slice %592 {offsets = [2, 0], sizes = [1, 64], strides = [1, 1]} : vector<8x64xf32> to vector<1x64xf32>
    %609 = vector.broadcast %607 : vector<8x1xf32> to vector<8x64xf32>
    %610 = vector.broadcast %608 : vector<1x64xf32> to vector<8x64xf32>
    %611 = arith.mulf %609, %610 : vector<8x64xf32>
    %612 = arith.addf %606, %611 : vector<8x64xf32>
    %613 = vector.extract_strided_slice %594 {offsets = [0, 3], sizes = [8, 1], strides = [1, 1]} : vector<8x8xf32> to vector<8x1xf32>
    %614 = vector.extract_strided_slice %592 {offsets = [3, 0], sizes = [1, 64], strides = [1, 1]} : vector<8x64xf32> to vector<1x64xf32>
    %615 = vector.broadcast %613 : vector<8x1xf32> to vector<8x64xf32>
    %616 = vector.broadcast %614 : vector<1x64xf32> to vector<8x64xf32>
    %617 = arith.mulf %615, %616 : vector<8x64xf32>
    %618 = arith.addf %612, %617 : vector<8x64xf32>
    %619 = vector.extract_strided_slice %594 {offsets = [0, 4], sizes = [8, 1], strides = [1, 1]} : vector<8x8xf32> to vector<8x1xf32>
    %620 = vector.extract_strided_slice %592 {offsets = [4, 0], sizes = [1, 64], strides = [1, 1]} : vector<8x64xf32> to vector<1x64xf32>
    %621 = vector.broadcast %619 : vector<8x1xf32> to vector<8x64xf32>
    %622 = vector.broadcast %620 : vector<1x64xf32> to vector<8x64xf32>
    %623 = arith.mulf %621, %622 : vector<8x64xf32>
    %624 = arith.addf %618, %623 : vector<8x64xf32>
    %625 = vector.extract_strided_slice %594 {offsets = [0, 5], sizes = [8, 1], strides = [1, 1]} : vector<8x8xf32> to vector<8x1xf32>
    %626 = vector.extract_strided_slice %592 {offsets = [5, 0], sizes = [1, 64], strides = [1, 1]} : vector<8x64xf32> to vector<1x64xf32>
    %627 = vector.broadcast %625 : vector<8x1xf32> to vector<8x64xf32>
    %628 = vector.broadcast %626 : vector<1x64xf32> to vector<8x64xf32>
    %629 = arith.mulf %627, %628 : vector<8x64xf32>
    %630 = arith.addf %624, %629 : vector<8x64xf32>
    %631 = vector.extract_strided_slice %594 {offsets = [0, 6], sizes = [8, 1], strides = [1, 1]} : vector<8x8xf32> to vector<8x1xf32>
    %632 = vector.extract_strided_slice %592 {offsets = [6, 0], sizes = [1, 64], strides = [1, 1]} : vector<8x64xf32> to vector<1x64xf32>
    %633 = vector.broadcast %631 : vector<8x1xf32> to vector<8x64xf32>
    %634 = vector.broadcast %632 : vector<1x64xf32> to vector<8x64xf32>
    %635 = arith.mulf %633, %634 : vector<8x64xf32>
    %636 = arith.addf %630, %635 : vector<8x64xf32>
    %637 = vector.extract_strided_slice %594 {offsets = [0, 7], sizes = [8, 1], strides = [1, 1]} : vector<8x8xf32> to vector<8x1xf32>
    %638 = vector.extract_strided_slice %592 {offsets = [7, 0], sizes = [1, 64], strides = [1, 1]} : vector<8x64xf32> to vector<1x64xf32>
    %639 = vector.broadcast %637 : vector<8x1xf32> to vector<8x64xf32>
    %640 = vector.broadcast %638 : vector<1x64xf32> to vector<8x64xf32>
    %641 = arith.mulf %639, %640 : vector<8x64xf32>
    %642 = arith.addf %636, %641 : vector<8x64xf32>
    %643 = vector.extract_strided_slice %277 {offsets = [0, 2, 1], sizes = [8, 8, 8], strides = [1, 1, 1]} : vector<8x10x10xf32> to vector<8x8x8xf32>
    %644 = vector.shape_cast %643 : vector<8x8x8xf32> to vector<8x64xf32>
    %c7_59 = arith.constant 7 : index
    %c0_60 = arith.constant 0 : index
    %c0_61 = arith.constant 0 : index
    %645 = vector.load %arg5[%c7_59, %c0_60, %c0_61] : memref<9x8x8xf32, #tpu.memory_space<vmem>>, vector<1x8x8xf32>
    %646 = vector.shape_cast %645 : vector<1x8x8xf32> to vector<8x8xf32>
    %647 = vector.extract_strided_slice %646 {offsets = [0, 0], sizes = [8, 1], strides = [1, 1]} : vector<8x8xf32> to vector<8x1xf32>
    %648 = vector.extract_strided_slice %644 {offsets = [0, 0], sizes = [1, 64], strides = [1, 1]} : vector<8x64xf32> to vector<1x64xf32>
    %649 = vector.broadcast %647 : vector<8x1xf32> to vector<8x64xf32>
    %650 = vector.broadcast %648 : vector<1x64xf32> to vector<8x64xf32>
    %651 = arith.mulf %649, %650 : vector<8x64xf32>
    %652 = arith.addf %642, %651 : vector<8x64xf32>
    %653 = vector.extract_strided_slice %646 {offsets = [0, 1], sizes = [8, 1], strides = [1, 1]} : vector<8x8xf32> to vector<8x1xf32>
    %654 = vector.extract_strided_slice %644 {offsets = [1, 0], sizes = [1, 64], strides = [1, 1]} : vector<8x64xf32> to vector<1x64xf32>
    %655 = vector.broadcast %653 : vector<8x1xf32> to vector<8x64xf32>
    %656 = vector.broadcast %654 : vector<1x64xf32> to vector<8x64xf32>
    %657 = arith.mulf %655, %656 : vector<8x64xf32>
    %658 = arith.addf %652, %657 : vector<8x64xf32>
    %659 = vector.extract_strided_slice %646 {offsets = [0, 2], sizes = [8, 1], strides = [1, 1]} : vector<8x8xf32> to vector<8x1xf32>
    %660 = vector.extract_strided_slice %644 {offsets = [2, 0], sizes = [1, 64], strides = [1, 1]} : vector<8x64xf32> to vector<1x64xf32>
    %661 = vector.broadcast %659 : vector<8x1xf32> to vector<8x64xf32>
    %662 = vector.broadcast %660 : vector<1x64xf32> to vector<8x64xf32>
    %663 = arith.mulf %661, %662 : vector<8x64xf32>
    %664 = arith.addf %658, %663 : vector<8x64xf32>
    %665 = vector.extract_strided_slice %646 {offsets = [0, 3], sizes = [8, 1], strides = [1, 1]} : vector<8x8xf32> to vector<8x1xf32>
    %666 = vector.extract_strided_slice %644 {offsets = [3, 0], sizes = [1, 64], strides = [1, 1]} : vector<8x64xf32> to vector<1x64xf32>
    %667 = vector.broadcast %665 : vector<8x1xf32> to vector<8x64xf32>
    %668 = vector.broadcast %666 : vector<1x64xf32> to vector<8x64xf32>
    %669 = arith.mulf %667, %668 : vector<8x64xf32>
    %670 = arith.addf %664, %669 : vector<8x64xf32>
    %671 = vector.extract_strided_slice %646 {offsets = [0, 4], sizes = [8, 1], strides = [1, 1]} : vector<8x8xf32> to vector<8x1xf32>
    %672 = vector.extract_strided_slice %644 {offsets = [4, 0], sizes = [1, 64], strides = [1, 1]} : vector<8x64xf32> to vector<1x64xf32>
    %673 = vector.broadcast %671 : vector<8x1xf32> to vector<8x64xf32>
    %674 = vector.broadcast %672 : vector<1x64xf32> to vector<8x64xf32>
    %675 = arith.mulf %673, %674 : vector<8x64xf32>
    %676 = arith.addf %670, %675 : vector<8x64xf32>
    %677 = vector.extract_strided_slice %646 {offsets = [0, 5], sizes = [8, 1], strides = [1, 1]} : vector<8x8xf32> to vector<8x1xf32>
    %678 = vector.extract_strided_slice %644 {offsets = [5, 0], sizes = [1, 64], strides = [1, 1]} : vector<8x64xf32> to vector<1x64xf32>
    %679 = vector.broadcast %677 : vector<8x1xf32> to vector<8x64xf32>
    %680 = vector.broadcast %678 : vector<1x64xf32> to vector<8x64xf32>
    %681 = arith.mulf %679, %680 : vector<8x64xf32>
    %682 = arith.addf %676, %681 : vector<8x64xf32>
    %683 = vector.extract_strided_slice %646 {offsets = [0, 6], sizes = [8, 1], strides = [1, 1]} : vector<8x8xf32> to vector<8x1xf32>
    %684 = vector.extract_strided_slice %644 {offsets = [6, 0], sizes = [1, 64], strides = [1, 1]} : vector<8x64xf32> to vector<1x64xf32>
    %685 = vector.broadcast %683 : vector<8x1xf32> to vector<8x64xf32>
    %686 = vector.broadcast %684 : vector<1x64xf32> to vector<8x64xf32>
    %687 = arith.mulf %685, %686 : vector<8x64xf32>
    %688 = arith.addf %682, %687 : vector<8x64xf32>
    %689 = vector.extract_strided_slice %646 {offsets = [0, 7], sizes = [8, 1], strides = [1, 1]} : vector<8x8xf32> to vector<8x1xf32>
    %690 = vector.extract_strided_slice %644 {offsets = [7, 0], sizes = [1, 64], strides = [1, 1]} : vector<8x64xf32> to vector<1x64xf32>
    %691 = vector.broadcast %689 : vector<8x1xf32> to vector<8x64xf32>
    %692 = vector.broadcast %690 : vector<1x64xf32> to vector<8x64xf32>
    %693 = arith.mulf %691, %692 : vector<8x64xf32>
    %694 = arith.addf %688, %693 : vector<8x64xf32>
    %695 = vector.extract_strided_slice %277 {offsets = [0, 2, 2], sizes = [8, 8, 8], strides = [1, 1, 1]} : vector<8x10x10xf32> to vector<8x8x8xf32>
    %696 = vector.shape_cast %695 : vector<8x8x8xf32> to vector<8x64xf32>
    %c8_62 = arith.constant 8 : index
    %c0_63 = arith.constant 0 : index
    %c0_64 = arith.constant 0 : index
    %697 = vector.load %arg5[%c8_62, %c0_63, %c0_64] : memref<9x8x8xf32, #tpu.memory_space<vmem>>, vector<1x8x8xf32>
    %698 = vector.shape_cast %697 : vector<1x8x8xf32> to vector<8x8xf32>
    %699 = vector.extract_strided_slice %698 {offsets = [0, 0], sizes = [8, 1], strides = [1, 1]} : vector<8x8xf32> to vector<8x1xf32>
    %700 = vector.extract_strided_slice %696 {offsets = [0, 0], sizes = [1, 64], strides = [1, 1]} : vector<8x64xf32> to vector<1x64xf32>
    %701 = vector.broadcast %699 : vector<8x1xf32> to vector<8x64xf32>
    %702 = vector.broadcast %700 : vector<1x64xf32> to vector<8x64xf32>
    %703 = arith.mulf %701, %702 : vector<8x64xf32>
    %704 = arith.addf %694, %703 : vector<8x64xf32>
    %705 = vector.extract_strided_slice %698 {offsets = [0, 1], sizes = [8, 1], strides = [1, 1]} : vector<8x8xf32> to vector<8x1xf32>
    %706 = vector.extract_strided_slice %696 {offsets = [1, 0], sizes = [1, 64], strides = [1, 1]} : vector<8x64xf32> to vector<1x64xf32>
    %707 = vector.broadcast %705 : vector<8x1xf32> to vector<8x64xf32>
    %708 = vector.broadcast %706 : vector<1x64xf32> to vector<8x64xf32>
    %709 = arith.mulf %707, %708 : vector<8x64xf32>
    %710 = arith.addf %704, %709 : vector<8x64xf32>
    %711 = vector.extract_strided_slice %698 {offsets = [0, 2], sizes = [8, 1], strides = [1, 1]} : vector<8x8xf32> to vector<8x1xf32>
    %712 = vector.extract_strided_slice %696 {offsets = [2, 0], sizes = [1, 64], strides = [1, 1]} : vector<8x64xf32> to vector<1x64xf32>
    %713 = vector.broadcast %711 : vector<8x1xf32> to vector<8x64xf32>
    %714 = vector.broadcast %712 : vector<1x64xf32> to vector<8x64xf32>
    %715 = arith.mulf %713, %714 : vector<8x64xf32>
    %716 = arith.addf %710, %715 : vector<8x64xf32>
    %717 = vector.extract_strided_slice %698 {offsets = [0, 3], sizes = [8, 1], strides = [1, 1]} : vector<8x8xf32> to vector<8x1xf32>
    %718 = vector.extract_strided_slice %696 {offsets = [3, 0], sizes = [1, 64], strides = [1, 1]} : vector<8x64xf32> to vector<1x64xf32>
    %719 = vector.broadcast %717 : vector<8x1xf32> to vector<8x64xf32>
    %720 = vector.broadcast %718 : vector<1x64xf32> to vector<8x64xf32>
    %721 = arith.mulf %719, %720 : vector<8x64xf32>
    %722 = arith.addf %716, %721 : vector<8x64xf32>
    %723 = vector.extract_strided_slice %698 {offsets = [0, 4], sizes = [8, 1], strides = [1, 1]} : vector<8x8xf32> to vector<8x1xf32>
    %724 = vector.extract_strided_slice %696 {offsets = [4, 0], sizes = [1, 64], strides = [1, 1]} : vector<8x64xf32> to vector<1x64xf32>
    %725 = vector.broadcast %723 : vector<8x1xf32> to vector<8x64xf32>
    %726 = vector.broadcast %724 : vector<1x64xf32> to vector<8x64xf32>
    %727 = arith.mulf %725, %726 : vector<8x64xf32>
    %728 = arith.addf %722, %727 : vector<8x64xf32>
    %729 = vector.extract_strided_slice %698 {offsets = [0, 5], sizes = [8, 1], strides = [1, 1]} : vector<8x8xf32> to vector<8x1xf32>
    %730 = vector.extract_strided_slice %696 {offsets = [5, 0], sizes = [1, 64], strides = [1, 1]} : vector<8x64xf32> to vector<1x64xf32>
    %731 = vector.broadcast %729 : vector<8x1xf32> to vector<8x64xf32>
    %732 = vector.broadcast %730 : vector<1x64xf32> to vector<8x64xf32>
    %733 = arith.mulf %731, %732 : vector<8x64xf32>
    %734 = arith.addf %728, %733 : vector<8x64xf32>
    %735 = vector.extract_strided_slice %698 {offsets = [0, 6], sizes = [8, 1], strides = [1, 1]} : vector<8x8xf32> to vector<8x1xf32>
    %736 = vector.extract_strided_slice %696 {offsets = [6, 0], sizes = [1, 64], strides = [1, 1]} : vector<8x64xf32> to vector<1x64xf32>
    %737 = vector.broadcast %735 : vector<8x1xf32> to vector<8x64xf32>
    %738 = vector.broadcast %736 : vector<1x64xf32> to vector<8x64xf32>
    %739 = arith.mulf %737, %738 : vector<8x64xf32>
    %740 = arith.addf %734, %739 : vector<8x64xf32>
    %741 = vector.extract_strided_slice %698 {offsets = [0, 7], sizes = [8, 1], strides = [1, 1]} : vector<8x8xf32> to vector<8x1xf32>
    %742 = vector.extract_strided_slice %696 {offsets = [7, 0], sizes = [1, 64], strides = [1, 1]} : vector<8x64xf32> to vector<1x64xf32>
    %743 = vector.broadcast %741 : vector<8x1xf32> to vector<8x64xf32>
    %744 = vector.broadcast %742 : vector<1x64xf32> to vector<8x64xf32>
    %745 = arith.mulf %743, %744 : vector<8x64xf32>
    %746 = arith.addf %740, %745 : vector<8x64xf32>
    %747 = vector.broadcast %272 : vector<8x1xf32> to vector<8x64xf32>
    %748 = arith.mulf %746, %747 : vector<8x64xf32>
    %749 = vector.broadcast %273 : vector<8x1xf32> to vector<8x64xf32>
    %750 = arith.addf %748, %749 : vector<8x64xf32>
    %cst_65 = arith.constant 0.000000e+00 : f32
    %751 = vector.broadcast %cst_65 : f32 to vector<8x64xf32>
    %752 = arith.maximumf %750, %751 : vector<8x64xf32>
    %c0_66 = arith.constant 0 : index
    %c0_67 = arith.constant 0 : index
    %c0_68 = arith.constant 0 : index
    %753 = vector.load %arg8[%c0_66, %c0_67, %c0_68] : memref<1x8x64xf32, #tpu.memory_space<vmem>>, vector<1x8x64xf32>
    %754 = vector.shape_cast %753 : vector<1x8x64xf32> to vector<8x64xf32>
    %755 = vector.shape_cast %752 : vector<8x64xf32> to vector<1x8x64xf32>
    tpu.vector_store %arg8[%c0_66, %c0_67, %c0_68], %755 {strides = array<i32>} : memref<1x8x64xf32, #tpu.memory_space<vmem>>, vector<1x8x64xf32>,
    return
  }
  func.func @transform_0(%arg0: i32) -> (i32, i32, i32, i32) {
    %c0_i32 = arith.constant 0 : i32
    %c0_i32_0 = arith.constant 0 : i32
    %c0_i32_1 = arith.constant 0 : i32
    %c0_i32_2 = arith.constant 0 : i32
    return %arg0, %c0_i32, %c0_i32_0, %c0_i32_1 : i32, i32, i32, i32
  }
  func.func @transform_1(%arg0: i32) -> (i32, i32, i32) {
    %c0_i32 = arith.constant 0 : i32
    %c0_i32_0 = arith.constant 0 : i32
    %c0_i32_1 = arith.constant 0 : i32
    %c0_i32_2 = arith.constant 0 : i32
    return %c0_i32, %c0_i32_0, %c0_i32_1 : i32, i32, i32
  }
  func.func @transform_2(%arg0: i32) -> (i32, i32) {
    %c0_i32 = arith.constant 0 : i32
    %c0_i32_0 = arith.constant 0 : i32
    %c0_i32_1 = arith.constant 0 : i32
    return %c0_i32, %c0_i32_0 : i32, i32
  }
  func.func @transform_3(%arg0: i32) -> (i32, i32) {
    %c0_i32 = arith.constant 0 : i32
    %c0_i32_0 = arith.constant 0 : i32
    %c0_i32_1 = arith.constant 0 : i32
    return %c0_i32, %c0_i32_0 : i32, i32
  }
  func.func @transform_4(%arg0: i32) -> (i32, i32, i32) {
    %c0_i32 = arith.constant 0 : i32
    %c0_i32_0 = arith.constant 0 : i32
    %c0_i32_1 = arith.constant 0 : i32
    %c0_i32_2 = arith.constant 0 : i32
    return %c0_i32, %c0_i32_0, %c0_i32_1 : i32, i32, i32
  }
  func.func @transform_5(%arg0: i32) -> (i32, i32) {
    %c0_i32 = arith.constant 0 : i32
    %c0_i32_0 = arith.constant 0 : i32
    %c0_i32_1 = arith.constant 0 : i32
    return %c0_i32, %c0_i32_0 : i32, i32
  }
  func.func @transform_6(%arg0: i32) -> (i32, i32) {
    %c0_i32 = arith.constant 0 : i32
    %c0_i32_0 = arith.constant 0 : i32
    %c0_i32_1 = arith.constant 0 : i32
    return %c0_i32, %c0_i32_0 : i32, i32
  }
  func.func @transform_7(%arg0: i32) -> (i32, i32, i32) {
    %c0_i32 = arith.constant 0 : i32
    %c0_i32_0 = arith.constant 0 : i32
    %c0_i32_1 = arith.constant 0 : i32
    return %arg0, %c0_i32, %c0_i32_0 : i32, i32, i32
  }
}

</mosaic_0001>

<llo_original>
// kernel: tpu_custom_call.1
$region0: #{tpu_custom_call.1}
  #allocation0 [shape = 'u32[]', space=smem, size = 0x4, offset = 0x4, fixed_abs, tag = 'smem constant byte address 0x4 - core index']
  #allocation1 [shape = 'u32[144,128]{1,0:T(1,128)}', space=vmem, size = 0x12000, scoped, tag = 'internal scratch']
  %s0 = inlined_call_operand.vmem [shape: f32[2,4,16,16], index: 0, kind: input, shape index: {}]
  %s1 = inlined_call_operand.vmem [shape: f32[9,8,4], index: 1, kind: input, shape index: {}]
  %s2 = inlined_call_operand.vmem [shape: f32[8,1], index: 2, kind: input, shape index: {}]
  %s3 = inlined_call_operand.vmem [shape: f32[8,1], index: 3, kind: input, shape index: {}]
  %s4 = inlined_call_operand.vmem [shape: f32[9,8,8], index: 4, kind: input, shape index: {}]
  %s5 = inlined_call_operand.vmem [shape: f32[8,1], index: 5, kind: input, shape index: {}]
  %s6 = inlined_call_operand.vmem [shape: f32[8,1], index: 6, kind: input, shape index: {}]
  %s7 = inlined_call_operand.hbm [shape: f32[2,8,64], index: 7, kind: output, shape index: {}]
  %s8 = sld [smem:[#allocation0]]
  $region61: #{tpu_custom_call.1} parent=0
    _
  %s10 = ssub.s32 1, %s8
  %s11 = scalar_select 0, %s10, %s8
  $region1: #{tpu_custom_call.1} parent=0
    #allocation2 [shape = 'u8[8192]{0}', space=vmem, size = 0x2000, scoped, tag = 'output window, operand 0']
    #allocation3 [shape = 's32[2]{0}', space=sflag, size = 0x8, scoped, tag = 'scoped memory for tpu_custom_call.1']
    %12 = vsyncpa [#allocation3], 0
    %s13 = scalar_lea.sflag [#allocation3], 1
    %14 = vsyncpa %s13, 0
    loop: start=0, step=1, limit=4
    $region2: #{tpu_custom_call.1} parent=1 // loop_pre_header
      _
    $region3: #{tpu_custom_call.1} parent=1 // loop_header
      %s16 = sphi 0, %s20
      %p17 = scmp.ge.s32.totalorder %s16, 4
      %s26 = sphi 0, %s28
      %s29 = sphi 0, %s26
      %s30 = sphi 0, %s29
      %s46 = sphi 0, %s30
      %s50 = sphi 0, %s50
      %s52 = sphi 0, %s50
      %s53 = sphi 0, %s52
      %s67 = sphi 0, %s53
      %s71 = sphi 0, %s71
      %s73 = sphi 0, %s71
      %s74 = sphi 0, %s73
      %s88 = sphi 0, %s74
      %s92 = sphi 0, %s92
      %s94 = sphi 0, %s92
      %s95 = sphi 0, %s94
      %s109 = sphi 0, %s95
      %s113 = sphi 0, %s113
      %s115 = sphi 0, %s113
      %s116 = sphi 0, %s115
      %s130 = sphi 0, %s116
      %s134 = sphi 0, %s134
      %s136 = sphi 0, %s134
      %s137 = sphi 0, %s136
      %s151 = sphi 0, %s137
      %s155 = sphi 0, %s155
      %s157 = sphi 0, %s155
      %s158 = sphi 0, %s157
      %s172 = sphi 0, %s158
      %s178 = sphi 0, %s180
      %s181 = sphi 0, %s178
      %s182 = sphi 0, %s181
      %s198 = sphi 0, %s182
    $region4: #{tpu_custom_call.1} parent=1 // loop_header_branch
      %19 = sbr.rel (%p17) target = $region8
    $region5: #{tpu_custom_call.1} parent=1 // loop_body
      %s21 = ssub.s32 %s16, 1
      %s22 = ssub.s32 %s16, 2
      %s23 = sadd.s32 %s16, 1
      %s24 = ssub.s32 %s16, %s23
      %p25 = scmp.eq.s32.totalorder %s24, 0
      %s27 = sadd.s32 %s26, 1
      %s28 = scalar_select %p25, %s26, %s27
      %p31 = pneg %p25
      %p32 = scmp.eq.s32.totalorder %s16, 1
      %p33 = por %p31, %p32
      %p34 = scmp.ne.s32.totalorder %s26, %s29
      %p35 = scmp.eq.s32.totalorder %s16, 0
      %p36 = por %p34, %p35
      %p37 = scmp.ne.s32.totalorder %s26, %s29
      %p38 = scmp.eq.s32.totalorder %s21, 1
      %p39 = por %p37, %p38
      %p40 = scmp.ne.s32.totalorder %s29, %s30
      %p41 = scmp.eq.s32.totalorder %s21, 0
      %p42 = por %p40, %p41
      %p43 = scmp.ne.s32.totalorder %s29, %s30
      %p44 = scmp.eq.s32.totalorder %s22, 1
      %p45 = por %p43, %p44
      %p47 = scmp.ne.s32.totalorder %s30, %s46
      %p48 = scmp.eq.s32.totalorder %s22, 0
      %p49 = por %p47, %p48
      %s51 = sadd.s32 %s50, 1
      %p54 = scmp.eq.s32.totalorder %s16, 1
      %p55 = scmp.ne.s32.totalorder %s50, %s52
      %p56 = scmp.eq.s32.totalorder %s16, 0
      %p57 = por %p55, %p56
      %p58 = scmp.ne.s32.totalorder %s50, %s52
      %p59 = scmp.eq.s32.totalorder %s21, 1
      %p60 = por %p58, %p59
      %p61 = scmp.ne.s32.totalorder %s52, %s53
      %p62 = scmp.eq.s32.totalorder %s21, 0
      %p63 = por %p61, %p62
      %p64 = scmp.ne.s32.totalorder %s52, %s53
      %p65 = scmp.eq.s32.totalorder %s22, 1
      %p66 = por %p64, %p65
      %p68 = scmp.ne.s32.totalorder %s53, %s67
      %p69 = scmp.eq.s32.totalorder %s22, 0
      %p70 = por %p68, %p69
      %s72 = sadd.s32 %s71, 1
      %p75 = scmp.eq.s32.totalorder %s16, 1
      %p76 = scmp.ne.s32.totalorder %s71, %s73
      %p77 = scmp.eq.s32.totalorder %s16, 0
      %p78 = por %p76, %p77
      %p79 = scmp.ne.s32.totalorder %s71, %s73
      %p80 = scmp.eq.s32.totalorder %s21, 1
      %p81 = por %p79, %p80
      %p82 = scmp.ne.s32.totalorder %s73, %s74
      %p83 = scmp.eq.s32.totalorder %s21, 0
      %p84 = por %p82, %p83
      %p85 = scmp.ne.s32.totalorder %s73, %s74
      %p86 = scmp.eq.s32.totalorder %s22, 1
      %p87 = por %p85, %p86
      %p89 = scmp.ne.s32.totalorder %s74, %s88
      %p90 = scmp.eq.s32.totalorder %s22, 0
      %p91 = por %p89, %p90
      %s93 = sadd.s32 %s92, 1
      %p96 = scmp.eq.s32.totalorder %s16, 1
      %p97 = scmp.ne.s32.totalorder %s92, %s94
      %p98 = scmp.eq.s32.totalorder %s16, 0
      %p99 = por %p97, %p98
      %p100 = scmp.ne.s32.totalorder %s92, %s94
      %p101 = scmp.eq.s32.totalorder %s21, 1
      %p102 = por %p100, %p101
      %p103 = scmp.ne.s32.totalorder %s94, %s95
      %p104 = scmp.eq.s32.totalorder %s21, 0
      %p105 = por %p103, %p104
      %p106 = scmp.ne.s32.totalorder %s94, %s95
      %p107 = scmp.eq.s32.totalorder %s22, 1
      %p108 = por %p106, %p107
      %p110 = scmp.ne.s32.totalorder %s95, %s109
      %p111 = scmp.eq.s32.totalorder %s22, 0
      %p112 = por %p110, %p111
      %s114 = sadd.s32 %s113, 1
      %p117 = scmp.eq.s32.totalorder %s16, 1
      %p118 = scmp.ne.s32.totalorder %s113, %s115
      %p119 = scmp.eq.s32.totalorder %s16, 0
      %p120 = por %p118, %p119
      %p121 = scmp.ne.s32.totalorder %s113, %s115
      %p122 = scmp.eq.s32.totalorder %s21, 1
      %p123 = por %p121, %p122
      %p124 = scmp.ne.s32.totalorder %s115, %s116
      %p125 = scmp.eq.s32.totalorder %s21, 0
      %p126 = por %p124, %p125
      %p127 = scmp.ne.s32.totalorder %s115, %s116
      %p128 = scmp.eq.s32.totalorder %s22, 1
      %p129 = por %p127, %p128
      %p131 = scmp.ne.s32.totalorder %s116, %s130
      %p132 = scmp.eq.s32.totalorder %s22, 0
      %p133 = por %p131, %p132
      %s135 = sadd.s32 %s134, 1
      %p138 = scmp.eq.s32.totalorder %s16, 1
      %p139 = scmp.ne.s32.totalorder %s134, %s136
      %p140 = scmp.eq.s32.totalorder %s16, 0
      %p141 = por %p139, %p140
      %p142 = scmp.ne.s32.totalorder %s134, %s136
      %p143 = scmp.eq.s32.totalorder %s21, 1
      %p144 = por %p142, %p143
      %p145 = scmp.ne.s32.totalorder %s136, %s137
      %p146 = scmp.eq.s32.totalorder %s21, 0
      %p147 = por %p145, %p146
      %p148 = scmp.ne.s32.totalorder %s136, %s137
      %p149 = scmp.eq.s32.totalorder %s22, 1
      %p150 = por %p148, %p149
      %p152 = scmp.ne.s32.totalorder %s137, %s151
      %p153 = scmp.eq.s32.totalorder %s22, 0
      %p154 = por %p152, %p153
      %s156 = sadd.s32 %s155, 1
      %p159 = scmp.eq.s32.totalorder %s16, 1
      %p160 = scmp.ne.s32.totalorder %s155, %s157
      %p161 = scmp.eq.s32.totalorder %s16, 0
      %p162 = por %p160, %p161
      %p163 = scmp.ne.s32.totalorder %s155, %s157
      %p164 = scmp.eq.s32.totalorder %s21, 1
      %p165 = por %p163, %p164
      %p166 = scmp.ne.s32.totalorder %s157, %s158
      %p167 = scmp.eq.s32.totalorder %s21, 0
      %p168 = por %p166, %p167
      %p169 = scmp.ne.s32.totalorder %s157, %s158
      %p170 = scmp.eq.s32.totalorder %s22, 1
      %p171 = por %p169, %p170
      %p173 = scmp.ne.s32.totalorder %s158, %s172
      %p174 = scmp.eq.s32.totalorder %s22, 0
      %p175 = por %p173, %p174
      %s176 = ssub.s32 %s16, %s23
      %p177 = scmp.eq.s32.totalorder %s176, 0
      %s179 = sadd.s32 %s178, 1
      %s180 = scalar_select %p177, %s178, %s179
      %p183 = pneg %p177
      %p184 = scmp.eq.s32.totalorder %s16, 1
      %p185 = por %p183, %p184
      %p186 = scmp.ne.s32.totalorder %s178, %s181
      %p187 = scmp.eq.s32.totalorder %s16, 0
      %p188 = por %p186, %p187
      %p189 = scmp.ne.s32.totalorder %s178, %s181
      %p190 = scmp.eq.s32.totalorder %s21, 1
      %p191 = por %p189, %p190
      %p192 = scmp.ne.s32.totalorder %s181, %s182
      %p193 = scmp.eq.s32.totalorder %s21, 0
      %p194 = por %p192, %p193
      %p195 = scmp.ne.s32.totalorder %s181, %s182
      %p196 = scmp.eq.s32.totalorder %s22, 1
      %p197 = por %p195, %p196
      %p199 = scmp.ne.s32.totalorder %s182, %s198
      %p200 = scmp.eq.s32.totalorder %s22, 0
      %p201 = por %p199, %p200
      %p202 = scmp.le.s32.totalorder 1, %s16
      %p203 = scmp.lt.s32.totalorder %s16, 3
      %p204 = pnand %p202, %p203
      %p205 = pneg %p204
      // Predicated region
      $region9: #{tpu_custom_call.1} parent=5 // pred_check
        _
      $region10: #{tpu_custom_call.1} parent=5 // pred_check_branch
        %207 = sbr.rel (%p204) target = $region12
      $region11: #{tpu_custom_call.1} parent=5 // pred_region
        %s208 = ssub.s32 %s16, 1
        // Predicated region
        $region13: #{tpu_custom_call.1} parent=11 // pred_check
          %p209 = pneg %p63
        $region14: #{tpu_custom_call.1} parent=11 // pred_check_branch
          %211 = sbr.rel (%p209) target = $region16
        $region15: #{tpu_custom_call.1} parent=11 // pred_region
          _
        $region16: #{tpu_custom_call.1} parent=11 // pred_fallthru
          _
        // Predicated region
        $region17: #{tpu_custom_call.1} parent=11 // pred_check
          %p212 = pneg %p84
        $region18: #{tpu_custom_call.1} parent=11 // pred_check_branch
          %214 = sbr.rel (%p212) target = $region20
        $region19: #{tpu_custom_call.1} parent=11 // pred_region
          _
        $region20: #{tpu_custom_call.1} parent=11 // pred_fallthru
          _
        // Predicated region
        $region21: #{tpu_custom_call.1} parent=11 // pred_check
          %p215 = pneg %p105
        $region22: #{tpu_custom_call.1} parent=11 // pred_check_branch
          %217 = sbr.rel (%p215) target = $region24
        $region23: #{tpu_custom_call.1} parent=11 // pred_region
          _
        $region24: #{tpu_custom_call.1} parent=11 // pred_fallthru
          _
        // Predicated region
        $region25: #{tpu_custom_call.1} parent=11 // pred_check
          %p218 = pneg %p126
        $region26: #{tpu_custom_call.1} parent=11 // pred_check_branch
          %220 = sbr.rel (%p218) target = $region28
        $region27: #{tpu_custom_call.1} parent=11 // pred_region
          _
        $region28: #{tpu_custom_call.1} parent=11 // pred_fallthru
          _
        // Predicated region
        $region29: #{tpu_custom_call.1} parent=11 // pred_check
          %p221 = pneg %p147
        $region30: #{tpu_custom_call.1} parent=11 // pred_check_branch
          %223 = sbr.rel (%p221) target = $region32
        $region31: #{tpu_custom_call.1} parent=11 // pred_region
          _
        $region32: #{tpu_custom_call.1} parent=11 // pred_fallthru
          _
        // Predicated region
        $region33: #{tpu_custom_call.1} parent=11 // pred_check
          %p224 = pneg %p168
        $region34: #{tpu_custom_call.1} parent=11 // pred_check_branch
          %226 = sbr.rel (%p224) target = $region36
        $region35: #{tpu_custom_call.1} parent=11 // pred_region
          _
        $region36: #{tpu_custom_call.1} parent=11 // pred_fallthru
          _
      $region12: #{tpu_custom_call.1} parent=5 // pred_fallthru
        _
      %p227 = scmp.lt.s32.totalorder %s16, 2
      // Predicated region
      $region37: #{tpu_custom_call.1} parent=5 // pred_check
        %p228 = pneg %p227
      $region38: #{tpu_custom_call.1} parent=5 // pred_check_branch
        %230 = sbr.rel (%p228) target = $region40
      $region39: #{tpu_custom_call.1} parent=5 // pred_region
        // Predicated region
        $region41: #{tpu_custom_call.1} parent=39 // pred_check
          %p231 = pneg %p36
        $region42: #{tpu_custom_call.1} parent=39 // pred_check_branch
          %233 = sbr.rel (%p231) target = $region44
        $region43: #{tpu_custom_call.1} parent=39 // pred_region
          %p234 = scmp.lt.s32.totalorder %s16, 1
          %s235 = scalar_select %p234, %s16, 1
          %s236 = smul.addr %s235, 8
          %s237 = smul.addr %s236, 8
          %s238 = scalar_lea.vmem %s0, %s237
        $region44: #{tpu_custom_call.1} parent=39 // pred_fallthru
          _
      $region40: #{tpu_custom_call.1} parent=5 // pred_fallthru
        _
      %p239 = scmp.le.s32.totalorder 1, %s16
      %p240 = scmp.lt.s32.totalorder %s16, 3
      %p241 = pnand %p239, %p240
      %p242 = pneg %p241
      // Predicated region
      $region45: #{tpu_custom_call.1} parent=5 // pred_check
        _
      $region46: #{tpu_custom_call.1} parent=5 // pred_check_branch
        %244 = sbr.rel (%p241) target = $region48
      $region47: #{tpu_custom_call.1} parent=5 // pred_region
        %s245 = ssub.s32 %s16, 1
        %p246 = scmp.lt.s32.totalorder %s21, 1
        %s247 = scalar_select %p246, %s21, 1
        %s248 = smul.addr %s247, 8
        %s249 = smul.addr %s248, 8
        %s250 = scalar_lea.vmem %s0, %s249
        %p251 = pneg %p42
        %p252 = pneg %p39
        %p253 = pneg %p63
        %p254 = pneg %p60
        %p255 = pneg %p84
        %p256 = pneg %p81
        %p257 = pneg %p105
        %p258 = pneg %p102
        %p259 = pneg %p126
        %p260 = pneg %p123
        %p261 = pneg %p147
        %p262 = pneg %p144
        %p263 = pneg %p168
        %p264 = pneg %p165
        %p265 = pneg %p194
        %p266 = pneg %p191
        %s267 = sand.u32 %s181, 1
        %s268 = scalar_lea.sflag [#allocation3], %s267
        %s269 = sand.u32 %s181, 1
        %s270 = smul.addr %s269, 8
        %s271 = scalar_lea.vmem [#allocation2], %s270
        %p272 = scmp.lt.s32.totalorder %s21, 1
        %s273 = scalar_select %p272, %s21, 1
        %s274 = smul.addr %s273, 8
        %s275 = smul.addr %s274, 8
        %s276 = scalar_lea.vmem %s0, %s275
        %v277 = vld [vmem:[%s276] sm:$0xff]
        %v278 = vld [vmem:[%s276 + $0x8] sm:$0xff]
        %v279 = vld [vmem:[%s276 + $0x10] sm:$0xff]
        %v280 = vld [vmem:[%s276 + $0x18] sm:$0xff]
        %v281 = vld [vmem:[%s276 + $0x20] sm:$0xff]
        %v282 = vld [vmem:[%s276 + $0x28] sm:$0xff]
        %v283 = vld [vmem:[%s276 + $0x30] sm:$0xff]
        %v284 = vld [vmem:[%s276 + $0x38] sm:$0xff]
        %293 = vrot.lane.b32.xlu0 %v277, 126
        %v294 = vpop.permute.xlu0 %293
        %295 = vrot.lane.b32.xlu0 %v278, 126
        %v296 = vpop.permute.xlu0 %295
        %297 = vrot.lane.b32.xlu0 %v279, 126
        %v298 = vpop.permute.xlu0 %297
        %299 = vrot.lane.b32.xlu0 %v280, 126
        %v300 = vpop.permute.xlu0 %299
        %301 = vrot.lane.b32.xlu0 %v281, 126
        %v302 = vpop.permute.xlu0 %301
        %303 = vrot.lane.b32.xlu0 %v282, 126
        %v304 = vpop.permute.xlu0 %303
        %305 = vrot.lane.b32.xlu0 %v283, 126
        %v306 = vpop.permute.xlu0 %305
        %307 = vrot.lane.b32.xlu0 %v284, 126
        %v308 = vpop.permute.xlu0 %307
        %317 = vrot.lane.b32.xlu0 %v277, 124
        %v318 = vpop.permute.xlu0 %317
        %319 = vrot.lane.b32.xlu0 %v278, 124
        %v320 = vpop.permute.xlu0 %319
        %321 = vrot.lane.b32.xlu0 %v279, 124
        %v322 = vpop.permute.xlu0 %321
        %323 = vrot.lane.b32.xlu0 %v280, 124
        %v324 = vpop.permute.xlu0 %323
        %325 = vrot.lane.b32.xlu0 %v281, 124
        %v326 = vpop.permute.xlu0 %325
        %327 = vrot.lane.b32.xlu0 %v282, 124
        %v328 = vpop.permute.xlu0 %327
        %329 = vrot.lane.b32.xlu0 %v283, 124
        %v330 = vpop.permute.xlu0 %329
        %331 = vrot.lane.b32.xlu0 %v284, 124
        %v332 = vpop.permute.xlu0 %331
        %341 = vrot.lane.b32.xlu0 %v277, 122
        %v342 = vpop.permute.xlu0 %341
        %343 = vrot.lane.b32.xlu0 %v278, 122
        %v344 = vpop.permute.xlu0 %343
        %345 = vrot.lane.b32.xlu0 %v279, 122
        %v346 = vpop.permute.xlu0 %345
        %347 = vrot.lane.b32.xlu0 %v280, 122
        %v348 = vpop.permute.xlu0 %347
        %349 = vrot.lane.b32.xlu0 %v281, 122
        %v350 = vpop.permute.xlu0 %349
        %351 = vrot.lane.b32.xlu0 %v282, 122
        %v352 = vpop.permute.xlu0 %351
        %353 = vrot.lane.b32.xlu0 %v283, 122
        %v354 = vpop.permute.xlu0 %353
        %355 = vrot.lane.b32.xlu0 %v284, 122
        %v356 = vpop.permute.xlu0 %355
        %365 = vrot.lane.b32.xlu0 %v277, 120
        %v366 = vpop.permute.xlu0 %365
        %367 = vrot.lane.b32.xlu0 %v278, 120
        %v368 = vpop.permute.xlu0 %367
        %369 = vrot.lane.b32.xlu0 %v279, 120
        %v370 = vpop.permute.xlu0 %369
        %371 = vrot.lane.b32.xlu0 %v280, 120
        %v372 = vpop.permute.xlu0 %371
        %373 = vrot.lane.b32.xlu0 %v281, 120
        %v374 = vpop.permute.xlu0 %373
        %375 = vrot.lane.b32.xlu0 %v282, 120
        %v376 = vpop.permute.xlu0 %375
        %377 = vrot.lane.b32.xlu0 %v283, 120
        %v378 = vpop.permute.xlu0 %377
        %379 = vrot.lane.b32.xlu0 %v284, 120
        %v380 = vpop.permute.xlu0 %379
        %389 = vrot.lane.b32.xlu0 %v277, 118
        %v390 = vpop.permute.xlu0 %389
        %391 = vrot.lane.b32.xlu0 %v278, 118
        %v392 = vpop.permute.xlu0 %391
        %393 = vrot.lane.b32.xlu0 %v279, 118
        %v394 = vpop.permute.xlu0 %393
        %395 = vrot.lane.b32.xlu0 %v280, 118
        %v396 = vpop.permute.xlu0 %395
        %397 = vrot.lane.b32.xlu0 %v281, 118
        %v398 = vpop.permute.xlu0 %397
        %399 = vrot.lane.b32.xlu0 %v282, 118
        %v400 = vpop.permute.xlu0 %399
        %401 = vrot.lane.b32.xlu0 %v283, 118
        %v402 = vpop.permute.xlu0 %401
        %403 = vrot.lane.b32.xlu0 %v284, 118
        %v404 = vpop.permute.xlu0 %403
        %413 = vrot.lane.b32.xlu0 %v277, 116
        %v414 = vpop.permute.xlu0 %413
        %415 = vrot.lane.b32.xlu0 %v278, 116
        %v416 = vpop.permute.xlu0 %415
        %417 = vrot.lane.b32.xlu0 %v279, 116
        %v418 = vpop.permute.xlu0 %417
        %419 = vrot.lane.b32.xlu0 %v280, 116
        %v420 = vpop.permute.xlu0 %419
        %421 = vrot.lane.b32.xlu0 %v281, 116
        %v422 = vpop.permute.xlu0 %421
        %423 = vrot.lane.b32.xlu0 %v282, 116
        %v424 = vpop.permute.xlu0 %423
        %425 = vrot.lane.b32.xlu0 %v283, 116
        %v426 = vpop.permute.xlu0 %425
        %427 = vrot.lane.b32.xlu0 %v284, 116
        %v428 = vpop.permute.xlu0 %427
        %437 = vrot.lane.b32.xlu0 %v277, 114
        %v438 = vpop.permute.xlu0 %437
        %439 = vrot.lane.b32.xlu0 %v278, 114
        %v440 = vpop.permute.xlu0 %439
        %441 = vrot.lane.b32.xlu0 %v279, 114
        %v442 = vpop.permute.xlu0 %441
        %443 = vrot.lane.b32.xlu0 %v280, 114
        %v444 = vpop.permute.xlu0 %443
        %445 = vrot.lane.b32.xlu0 %v281, 114
        %v446 = vpop.permute.xlu0 %445
        %447 = vrot.lane.b32.xlu0 %v282, 114
        %v448 = vpop.permute.xlu0 %447
        %449 = vrot.lane.b32.xlu0 %v283, 114
        %v450 = vpop.permute.xlu0 %449
        %451 = vrot.lane.b32.xlu0 %v284, 114
        %v452 = vpop.permute.xlu0 %451
        %v461 = vcombine.low %v277, %v318
        %v462 = vcombine.high %v277, %v318
        %v464 = vunpack.c.l.s4 1983009808
        %v465 = vunpack.c.0.s8 %v464
        %v466 = vlaneseq
        %v467 = vshrl.u32 %v466, 7
        %v468 = vsub.s32 %v465, %v467
        %v469 = vrot.slane %v461, %v468
        %v471 = vunpack.c.l.s4 1983009808
        %v472 = vunpack.c.0.s8 %v471
        %v473 = vlaneseq
        %v474 = vshrl.u32 %v473, 7
        %v475 = vsub.s32 %v472, %v474
        %v476 = vrot.slane %v462, %v475
        %v477 = vcombine.low %v294, %v342
        %v478 = vcombine.high %v294, %v342
        %v480 = vunpack.c.l.s4 1983009808
        %v481 = vunpack.c.0.s8 %v480
        %v482 = vlaneseq
        %v483 = vshrl.u32 %v482, 7
        %v484 = vsub.s32 %v481, %v483
        %v485 = vrot.slane %v477, %v484
        %v487 = vunpack.c.l.s4 1983009808
        %v488 = vunpack.c.0.s8 %v487
        %v489 = vlaneseq
        %v490 = vshrl.u32 %v489, 7
        %v491 = vsub.s32 %v488, %v490
        %v492 = vrot.slane %v478, %v491
        %v493 = vcombine.low %v366, %v414
        %v494 = vcombine.high %v366, %v414
        %v496 = vunpack.c.l.s4 1983009808
        %v497 = vunpack.c.0.s8 %v496
        %v498 = vlaneseq
        %v499 = vshrl.u32 %v498, 7
        %v500 = vsub.s32 %v497, %v499
        %v501 = vrot.slane %v493, %v500
        %v503 = vunpack.c.l.s4 1983009808
        %v504 = vunpack.c.0.s8 %v503
        %v505 = vlaneseq
        %v506 = vshrl.u32 %v505, 7
        %v507 = vsub.s32 %v504, %v506
        %v508 = vrot.slane %v494, %v507
        %v509 = vcombine.low %v390, %v438
        %v510 = vcombine.high %v390, %v438
        %v512 = vunpack.c.l.s4 1983009808
        %v513 = vunpack.c.0.s8 %v512
        %v514 = vlaneseq
        %v515 = vshrl.u32 %v514, 7
        %v516 = vsub.s32 %v513, %v515
        %v517 = vrot.slane %v509, %v516
        %v519 = vunpack.c.l.s4 1983009808
        %v520 = vunpack.c.0.s8 %v519
        %v521 = vlaneseq
        %v522 = vshrl.u32 %v521, 7
        %v523 = vsub.s32 %v520, %v522
        %v524 = vrot.slane %v510, %v523
        %v525 = vcombine.low %v469, %v485
        %v526 = vcombine.high %v469, %v485
        %v528 = vunpack.c.l.s4 1934713408
        %v529 = vunpack.c.0.s8 %v528
        %v530 = vlaneseq
        %v531 = vshrl.u32 %v530, 7
        %v532 = vsub.s32 %v529, %v531
        %v533 = vrot.slane %v525, %v532
        %v535 = vunpack.c.l.s4 1934713408
        %v536 = vunpack.c.0.s8 %v535
        %v537 = vlaneseq
        %v538 = vshrl.u32 %v537, 7
        %v539 = vsub.s32 %v536, %v538
        %v540 = vrot.slane %v526, %v539
        %v541 = vcombine.low %v476, %v492
        %v542 = vcombine.high %v476, %v492
        %v544 = vunpack.c.l.s4 1934713408
        %v545 = vunpack.c.0.s8 %v544
        %v546 = vlaneseq
        %v547 = vshrl.u32 %v546, 7
        %v548 = vsub.s32 %v545, %v547
        %v549 = vrot.slane %v541, %v548
        %v551 = vunpack.c.l.s4 1934713408
        %v552 = vunpack.c.0.s8 %v551
        %v553 = vlaneseq
        %v554 = vshrl.u32 %v553, 7
        %v555 = vsub.s32 %v552, %v554
        %v556 = vrot.slane %v542, %v555
        %v557 = vcombine.low %v501, %v517
        %v558 = vcombine.high %v501, %v517
        %v560 = vunpack.c.l.s4 1934713408
        %v561 = vunpack.c.0.s8 %v560
        %v562 = vlaneseq
        %v563 = vshrl.u32 %v562, 7
        %v564 = vsub.s32 %v561, %v563
        %v565 = vrot.slane %v557, %v564
        %v567 = vunpack.c.l.s4 1934713408
        %v568 = vunpack.c.0.s8 %v567
        %v569 = vlaneseq
        %v570 = vshrl.u32 %v569, 7
        %v571 = vsub.s32 %v568, %v570
        %v572 = vrot.slane %v558, %v571
        %v573 = vcombine.low %v508, %v524
        %v574 = vcombine.high %v508, %v524
        %v576 = vunpack.c.l.s4 1934713408
        %v577 = vunpack.c.0.s8 %v576
        %v578 = vlaneseq
        %v579 = vshrl.u32 %v578, 7
        %v580 = vsub.s32 %v577, %v579
        %v581 = vrot.slane %v573, %v580
        %v583 = vunpack.c.l.s4 1934713408
        %v584 = vunpack.c.0.s8 %v583
        %v585 = vlaneseq
        %v586 = vshrl.u32 %v585, 7
        %v587 = vsub.s32 %v584, %v586
        %v588 = vrot.slane %v574, %v587
        %v589 = vcombine.low %v533, %v565
        %v590 = vcombine.high %v533, %v565
        %v591 = vcombine.low %v540, %v572
        %v592 = vcombine.high %v540, %v572
        %v593 = vcombine.low %v549, %v581
        %v594 = vcombine.high %v549, %v581
        %v595 = vcombine.low %v556, %v588
        %v596 = vcombine.high %v556, %v588
        %v597 = vcombine.low %v278, %v320
        %v598 = vcombine.high %v278, %v320
        %v600 = vunpack.c.l.s4 1983009808
        %v601 = vunpack.c.0.s8 %v600
        %v602 = vlaneseq
        %v603 = vshrl.u32 %v602, 7
        %v604 = vsub.s32 %v601, %v603
        %v605 = vrot.slane %v597, %v604
        %v607 = vunpack.c.l.s4 1983009808
        %v608 = vunpack.c.0.s8 %v607
        %v609 = vlaneseq
        %v610 = vshrl.u32 %v609, 7
        %v611 = vsub.s32 %v608, %v610
        %v612 = vrot.slane %v598, %v611
        %v613 = vcombine.low %v296, %v344
        %v614 = vcombine.high %v296, %v344
        %v616 = vunpack.c.l.s4 1983009808
        %v617 = vunpack.c.0.s8 %v616
        %v618 = vlaneseq
        %v619 = vshrl.u32 %v618, 7
        %v620 = vsub.s32 %v617, %v619
        %v621 = vrot.slane %v613, %v620
        %v623 = vunpack.c.l.s4 1983009808
        %v624 = vunpack.c.0.s8 %v623
        %v625 = vlaneseq
        %v626 = vshrl.u32 %v625, 7
        %v627 = vsub.s32 %v624, %v626
        %v628 = vrot.slane %v614, %v627
        %v629 = vcombine.low %v368, %v416
        %v630 = vcombine.high %v368, %v416
        %v632 = vunpack.c.l.s4 1983009808
        %v633 = vunpack.c.0.s8 %v632
        %v634 = vlaneseq
        %v635 = vshrl.u32 %v634, 7
        %v636 = vsub.s32 %v633, %v635
        %v637 = vrot.slane %v629, %v636
        %v639 = vunpack.c.l.s4 1983009808
        %v640 = vunpack.c.0.s8 %v639
        %v641 = vlaneseq
        %v642 = vshrl.u32 %v641, 7
        %v643 = vsub.s32 %v640, %v642
        %v644 = vrot.slane %v630, %v643
        %v645 = vcombine.low %v392, %v440
        %v646 = vcombine.high %v392, %v440
        %v648 = vunpack.c.l.s4 1983009808
        %v649 = vunpack.c.0.s8 %v648
        %v650 = vlaneseq
        %v651 = vshrl.u32 %v650, 7
        %v652 = vsub.s32 %v649, %v651
        %v653 = vrot.slane %v645, %v652
        %v655 = vunpack.c.l.s4 1983009808
        %v656 = vunpack.c.0.s8 %v655
        %v657 = vlaneseq
        %v658 = vshrl.u32 %v657, 7
        %v659 = vsub.s32 %v656, %v658
        %v660 = vrot.slane %v646, %v659
        %v661 = vcombine.low %v605, %v621
        %v662 = vcombine.high %v605, %v621
        %v664 = vunpack.c.l.s4 1934713408
        %v665 = vunpack.c.0.s8 %v664
        %v666 = vlaneseq
        %v667 = vshrl.u32 %v666, 7
        %v668 = vsub.s32 %v665, %v667
        %v669 = vrot.slane %v661, %v668
        %v671 = vunpack.c.l.s4 1934713408
        %v672 = vunpack.c.0.s8 %v671
        %v673 = vlaneseq
        %v674 = vshrl.u32 %v673, 7
        %v675 = vsub.s32 %v672, %v674
        %v676 = vrot.slane %v662, %v675
        %v677 = vcombine.low %v612, %v628
        %v678 = vcombine.high %v612, %v628
        %v680 = vunpack.c.l.s4 1934713408
        %v681 = vunpack.c.0.s8 %v680
        %v682 = vlaneseq
        %v683 = vshrl.u32 %v682, 7
        %v684 = vsub.s32 %v681, %v683
        %v685 = vrot.slane %v677, %v684
        %v687 = vunpack.c.l.s4 1934713408
        %v688 = vunpack.c.0.s8 %v687
        %v689 = vlaneseq
        %v690 = vshrl.u32 %v689, 7
        %v691 = vsub.s32 %v688, %v690
        %v692 = vrot.slane %v678, %v691
        %v693 = vcombine.low %v637, %v653
        %v694 = vcombine.high %v637, %v653
        %v696 = vunpack.c.l.s4 1934713408
        %v697 = vunpack.c.0.s8 %v696
        %v698 = vlaneseq
        %v699 = vshrl.u32 %v698, 7
        %v700 = vsub.s32 %v697, %v699
        %v701 = vrot.slane %v693, %v700
        %v703 = vunpack.c.l.s4 1934713408
        %v704 = vunpack.c.0.s8 %v703
        %v705 = vlaneseq
        %v706 = vshrl.u32 %v705, 7
        %v707 = vsub.s32 %v704, %v706
        %v708 = vrot.slane %v694, %v707
        %v709 = vcombine.low %v644, %v660
        %v710 = vcombine.high %v644, %v660
        %v712 = vunpack.c.l.s4 1934713408
        %v713 = vunpack.c.0.s8 %v712
        %v714 = vlaneseq
        %v715 = vshrl.u32 %v714, 7
        %v716 = vsub.s32 %v713, %v715
        %v717 = vrot.slane %v709, %v716
        %v719 = vunpack.c.l.s4 1934713408
        %v720 = vunpack.c.0.s8 %v719
        %v721 = vlaneseq
        %v722 = vshrl.u32 %v721, 7
        %v723 = vsub.s32 %v720, %v722
        %v724 = vrot.slane %v710, %v723
        %v725 = vcombine.low %v669, %v701
        %v726 = vcombine.high %v669, %v701
        %v727 = vcombine.low %v676, %v708
        %v728 = vcombine.high %v676, %v708
        %v729 = vcombine.low %v685, %v717
        %v730 = vcombine.high %v685, %v717
        %v731 = vcombine.low %v692, %v724
        %v732 = vcombine.high %v692, %v724
        %v733 = vcombine.low %v279, %v322
        %v734 = vcombine.high %v279, %v322
        %v736 = vunpack.c.l.s4 1983009808
        %v737 = vunpack.c.0.s8 %v736
        %v738 = vlaneseq
        %v739 = vshrl.u32 %v738, 7
        %v740 = vsub.s32 %v737, %v739
        %v741 = vrot.slane %v733, %v740
        %v743 = vunpack.c.l.s4 1983009808
        %v744 = vunpack.c.0.s8 %v743
        %v745 = vlaneseq
        %v746 = vshrl.u32 %v745, 7
        %v747 = vsub.s32 %v744, %v746
        %v748 = vrot.slane %v734, %v747
        %v749 = vcombine.low %v298, %v346
        %v750 = vcombine.high %v298, %v346
        %v752 = vunpack.c.l.s4 1983009808
        %v753 = vunpack.c.0.s8 %v752
        %v754 = vlaneseq
        %v755 = vshrl.u32 %v754, 7
        %v756 = vsub.s32 %v753, %v755
        %v757 = vrot.slane %v749, %v756
        %v759 = vunpack.c.l.s4 1983009808
        %v760 = vunpack.c.0.s8 %v759
        %v761 = vlaneseq
        %v762 = vshrl.u32 %v761, 7
        %v763 = vsub.s32 %v760, %v762
        %v764 = vrot.slane %v750, %v763
        %v765 = vcombine.low %v370, %v418
        %v766 = vcombine.high %v370, %v418
        %v768 = vunpack.c.l.s4 1983009808
        %v769 = vunpack.c.0.s8 %v768
        %v770 = vlaneseq
        %v771 = vshrl.u32 %v770, 7
        %v772 = vsub.s32 %v769, %v771
        %v773 = vrot.slane %v765, %v772
        %v775 = vunpack.c.l.s4 1983009808
        %v776 = vunpack.c.0.s8 %v775
        %v777 = vlaneseq
        %v778 = vshrl.u32 %v777, 7
        %v779 = vsub.s32 %v776, %v778
        %v780 = vrot.slane %v766, %v779
        %v781 = vcombine.low %v394, %v442
        %v782 = vcombine.high %v394, %v442
        %v784 = vunpack.c.l.s4 1983009808
        %v785 = vunpack.c.0.s8 %v784
        %v786 = vlaneseq
        %v787 = vshrl.u32 %v786, 7
        %v788 = vsub.s32 %v785, %v787
        %v789 = vrot.slane %v781, %v788
        %v791 = vunpack.c.l.s4 1983009808
        %v792 = vunpack.c.0.s8 %v791
        %v793 = vlaneseq
        %v794 = vshrl.u32 %v793, 7
        %v795 = vsub.s32 %v792, %v794
        %v796 = vrot.slane %v782, %v795
        %v797 = vcombine.low %v741, %v757
        %v798 = vcombine.high %v741, %v757
        %v800 = vunpack.c.l.s4 1934713408
        %v801 = vunpack.c.0.s8 %v800
        %v802 = vlaneseq
        %v803 = vshrl.u32 %v802, 7
        %v804 = vsub.s32 %v801, %v803
        %v805 = vrot.slane %v797, %v804
        %v807 = vunpack.c.l.s4 1934713408
        %v808 = vunpack.c.0.s8 %v807
        %v809 = vlaneseq
        %v810 = vshrl.u32 %v809, 7
        %v811 = vsub.s32 %v808, %v810
        %v812 = vrot.slane %v798, %v811
        %v813 = vcombine.low %v748, %v764
        %v814 = vcombine.high %v748, %v764
        %v816 = vunpack.c.l.s4 1934713408
        %v817 = vunpack.c.0.s8 %v816
        %v818 = vlaneseq
        %v819 = vshrl.u32 %v818, 7
        %v820 = vsub.s32 %v817, %v819
        %v821 = vrot.slane %v813, %v820
        %v823 = vunpack.c.l.s4 1934713408
        %v824 = vunpack.c.0.s8 %v823
        %v825 = vlaneseq
        %v826 = vshrl.u32 %v825, 7
        %v827 = vsub.s32 %v824, %v826
        %v828 = vrot.slane %v814, %v827
        %v829 = vcombine.low %v773, %v789
        %v830 = vcombine.high %v773, %v789
        %v832 = vunpack.c.l.s4 1934713408
        %v833 = vunpack.c.0.s8 %v832
        %v834 = vlaneseq
        %v835 = vshrl.u32 %v834, 7
        %v836 = vsub.s32 %v833, %v835
        %v837 = vrot.slane %v829, %v836
        %v839 = vunpack.c.l.s4 1934713408
        %v840 = vunpack.c.0.s8 %v839
        %v841 = vlaneseq
        %v842 = vshrl.u32 %v841, 7
        %v843 = vsub.s32 %v840, %v842
        %v844 = vrot.slane %v830, %v843
        %v845 = vcombine.low %v780, %v796
        %v846 = vcombine.high %v780, %v796
        %v848 = vunpack.c.l.s4 1934713408
        %v849 = vunpack.c.0.s8 %v848
        %v850 = vlaneseq
        %v851 = vshrl.u32 %v850, 7
        %v852 = vsub.s32 %v849, %v851
        %v853 = vrot.slane %v845, %v852
        %v855 = vunpack.c.l.s4 1934713408
        %v856 = vunpack.c.0.s8 %v855
        %v857 = vlaneseq
        %v858 = vshrl.u32 %v857, 7
        %v859 = vsub.s32 %v856, %v858
        %v860 = vrot.slane %v846, %v859
        %v861 = vcombine.low %v805, %v837
        %v862 = vcombine.high %v805, %v837
        %v863 = vcombine.low %v812, %v844
        %v864 = vcombine.high %v812, %v844
        %v865 = vcombine.low %v821, %v853
        %v866 = vcombine.high %v821, %v853
        %v867 = vcombine.low %v828, %v860
        %v868 = vcombine.high %v828, %v860
        %v869 = vcombine.low %v280, %v324
        %v870 = vcombine.high %v280, %v324
        %v872 = vunpack.c.l.s4 1983009808
        %v873 = vunpack.c.0.s8 %v872
        %v874 = vlaneseq
        %v875 = vshrl.u32 %v874, 7
        %v876 = vsub.s32 %v873, %v875
        %v877 = vrot.slane %v869, %v876
        %v879 = vunpack.c.l.s4 1983009808
        %v880 = vunpack.c.0.s8 %v879
        %v881 = vlaneseq
        %v882 = vshrl.u32 %v881, 7
        %v883 = vsub.s32 %v880, %v882
        %v884 = vrot.slane %v870, %v883
        %v885 = vcombine.low %v300, %v348
        %v886 = vcombine.high %v300, %v348
        %v888 = vunpack.c.l.s4 1983009808
        %v889 = vunpack.c.0.s8 %v888
        %v890 = vlaneseq
        %v891 = vshrl.u32 %v890, 7
        %v892 = vsub.s32 %v889, %v891
        %v893 = vrot.slane %v885, %v892
        %v895 = vunpack.c.l.s4 1983009808
        %v896 = vunpack.c.0.s8 %v895
        %v897 = vlaneseq
        %v898 = vshrl.u32 %v897, 7
        %v899 = vsub.s32 %v896, %v898
        %v900 = vrot.slane %v886, %v899
        %v901 = vcombine.low %v372, %v420
        %v902 = vcombine.high %v372, %v420
        %v904 = vunpack.c.l.s4 1983009808
        %v905 = vunpack.c.0.s8 %v904
        %v906 = vlaneseq
        %v907 = vshrl.u32 %v906, 7
        %v908 = vsub.s32 %v905, %v907
        %v909 = vrot.slane %v901, %v908
        %v911 = vunpack.c.l.s4 1983009808
        %v912 = vunpack.c.0.s8 %v911
        %v913 = vlaneseq
        %v914 = vshrl.u32 %v913, 7
        %v915 = vsub.s32 %v912, %v914
        %v916 = vrot.slane %v902, %v915
        %v917 = vcombine.low %v396, %v444
        %v918 = vcombine.high %v396, %v444
        %v920 = vunpack.c.l.s4 1983009808
        %v921 = vunpack.c.0.s8 %v920
        %v922 = vlaneseq
        %v923 = vshrl.u32 %v922, 7
        %v924 = vsub.s32 %v921, %v923
        %v925 = vrot.slane %v917, %v924
        %v927 = vunpack.c.l.s4 1983009808
        %v928 = vunpack.c.0.s8 %v927
        %v929 = vlaneseq
        %v930 = vshrl.u32 %v929, 7
        %v931 = vsub.s32 %v928, %v930
        %v932 = vrot.slane %v918, %v931
        %v933 = vcombine.low %v877, %v893
        %v934 = vcombine.high %v877, %v893
        %v936 = vunpack.c.l.s4 1934713408
        %v937 = vunpack.c.0.s8 %v936
        %v938 = vlaneseq
        %v939 = vshrl.u32 %v938, 7
        %v940 = vsub.s32 %v937, %v939
        %v941 = vrot.slane %v933, %v940
        %v943 = vunpack.c.l.s4 1934713408
        %v944 = vunpack.c.0.s8 %v943
        %v945 = vlaneseq
        %v946 = vshrl.u32 %v945, 7
        %v947 = vsub.s32 %v944, %v946
        %v948 = vrot.slane %v934, %v947
        %v949 = vcombine.low %v884, %v900
        %v950 = vcombine.high %v884, %v900
        %v952 = vunpack.c.l.s4 1934713408
        %v953 = vunpack.c.0.s8 %v952
        %v954 = vlaneseq
        %v955 = vshrl.u32 %v954, 7
        %v956 = vsub.s32 %v953, %v955
        %v957 = vrot.slane %v949, %v956
        %v959 = vunpack.c.l.s4 1934713408
        %v960 = vunpack.c.0.s8 %v959
        %v961 = vlaneseq
        %v962 = vshrl.u32 %v961, 7
        %v963 = vsub.s32 %v960, %v962
        %v964 = vrot.slane %v950, %v963
        %v965 = vcombine.low %v909, %v925
        %v966 = vcombine.high %v909, %v925
        %v968 = vunpack.c.l.s4 1934713408
        %v969 = vunpack.c.0.s8 %v968
        %v970 = vlaneseq
        %v971 = vshrl.u32 %v970, 7
        %v972 = vsub.s32 %v969, %v971
        %v973 = vrot.slane %v965, %v972
        %v975 = vunpack.c.l.s4 1934713408
        %v976 = vunpack.c.0.s8 %v975
        %v977 = vlaneseq
        %v978 = vshrl.u32 %v977, 7
        %v979 = vsub.s32 %v976, %v978
        %v980 = vrot.slane %v966, %v979
        %v981 = vcombine.low %v916, %v932
        %v982 = vcombine.high %v916, %v932
        %v984 = vunpack.c.l.s4 1934713408
        %v985 = vunpack.c.0.s8 %v984
        %v986 = vlaneseq
        %v987 = vshrl.u32 %v986, 7
        %v988 = vsub.s32 %v985, %v987
        %v989 = vrot.slane %v981, %v988
        %v991 = vunpack.c.l.s4 1934713408
        %v992 = vunpack.c.0.s8 %v991
        %v993 = vlaneseq
        %v994 = vshrl.u32 %v993, 7
        %v995 = vsub.s32 %v992, %v994
        %v996 = vrot.slane %v982, %v995
        %v997 = vcombine.low %v941, %v973
        %v998 = vcombine.high %v941, %v973
        %v999 = vcombine.low %v948, %v980
        %v1000 = vcombine.high %v948, %v980
        %v1001 = vcombine.low %v957, %v989
        %v1002 = vcombine.high %v957, %v989
        %v1003 = vcombine.low %v964, %v996
        %v1004 = vcombine.high %v964, %v996
        %v1005 = vcombine.low %v281, %v326
        %v1006 = vcombine.high %v281, %v326
        %v1008 = vunpack.c.l.s4 1983009808
        %v1009 = vunpack.c.0.s8 %v1008
        %v1010 = vlaneseq
        %v1011 = vshrl.u32 %v1010, 7
        %v1012 = vsub.s32 %v1009, %v1011
        %v1013 = vrot.slane %v1005, %v1012
        %v1015 = vunpack.c.l.s4 1983009808
        %v1016 = vunpack.c.0.s8 %v1015
        %v1017 = vlaneseq
        %v1018 = vshrl.u32 %v1017, 7
        %v1019 = vsub.s32 %v1016, %v1018
        %v1020 = vrot.slane %v1006, %v1019
        %v1021 = vcombine.low %v302, %v350
        %v1022 = vcombine.high %v302, %v350
        %v1024 = vunpack.c.l.s4 1983009808
        %v1025 = vunpack.c.0.s8 %v1024
        %v1026 = vlaneseq
        %v1027 = vshrl.u32 %v1026, 7
        %v1028 = vsub.s32 %v1025, %v1027
        %v1029 = vrot.slane %v1021, %v1028
        %v1031 = vunpack.c.l.s4 1983009808
        %v1032 = vunpack.c.0.s8 %v1031
        %v1033 = vlaneseq
        %v1034 = vshrl.u32 %v1033, 7
        %v1035 = vsub.s32 %v1032, %v1034
        %v1036 = vrot.slane %v1022, %v1035
        %v1037 = vcombine.low %v374, %v422
        %v1038 = vcombine.high %v374, %v422
        %v1040 = vunpack.c.l.s4 1983009808
        %v1041 = vunpack.c.0.s8 %v1040
        %v1042 = vlaneseq
        %v1043 = vshrl.u32 %v1042, 7
        %v1044 = vsub.s32 %v1041, %v1043
        %v1045 = vrot.slane %v1037, %v1044
        %v1047 = vunpack.c.l.s4 1983009808
        %v1048 = vunpack.c.0.s8 %v1047
        %v1049 = vlaneseq
        %v1050 = vshrl.u32 %v1049, 7
        %v1051 = vsub.s32 %v1048, %v1050
        %v1052 = vrot.slane %v1038, %v1051
        %v1053 = vcombine.low %v398, %v446
        %v1054 = vcombine.high %v398, %v446
        %v1056 = vunpack.c.l.s4 1983009808
        %v1057 = vunpack.c.0.s8 %v1056
        %v1058 = vlaneseq
        %v1059 = vshrl.u32 %v1058, 7
        %v1060 = vsub.s32 %v1057, %v1059
        %v1061 = vrot.slane %v1053, %v1060
        %v1063 = vunpack.c.l.s4 1983009808
        %v1064 = vunpack.c.0.s8 %v1063
        %v1065 = vlaneseq
        %v1066 = vshrl.u32 %v1065, 7
        %v1067 = vsub.s32 %v1064, %v1066
        %v1068 = vrot.slane %v1054, %v1067
        %v1069 = vcombine.low %v1013, %v1029
        %v1070 = vcombine.high %v1013, %v1029
        %v1072 = vunpack.c.l.s4 1934713408
        %v1073 = vunpack.c.0.s8 %v1072
        %v1074 = vlaneseq
        %v1075 = vshrl.u32 %v1074, 7
        %v1076 = vsub.s32 %v1073, %v1075
        %v1077 = vrot.slane %v1069, %v1076
        %v1079 = vunpack.c.l.s4 1934713408
        %v1080 = vunpack.c.0.s8 %v1079
        %v1081 = vlaneseq
        %v1082 = vshrl.u32 %v1081, 7
        %v1083 = vsub.s32 %v1080, %v1082
        %v1084 = vrot.slane %v1070, %v1083
        %v1085 = vcombine.low %v1020, %v1036
        %v1086 = vcombine.high %v1020, %v1036
        %v1088 = vunpack.c.l.s4 1934713408
        %v1089 = vunpack.c.0.s8 %v1088
        %v1090 = vlaneseq
        %v1091 = vshrl.u32 %v1090, 7
        %v1092 = vsub.s32 %v1089, %v1091
        %v1093 = vrot.slane %v1085, %v1092
        %v1095 = vunpack.c.l.s4 1934713408
        %v1096 = vunpack.c.0.s8 %v1095
        %v1097 = vlaneseq
        %v1098 = vshrl.u32 %v1097, 7
        %v1099 = vsub.s32 %v1096, %v1098
        %v1100 = vrot.slane %v1086, %v1099
        %v1101 = vcombine.low %v1045, %v1061
        %v1102 = vcombine.high %v1045, %v1061
        %v1104 = vunpack.c.l.s4 1934713408
        %v1105 = vunpack.c.0.s8 %v1104
        %v1106 = vlaneseq
        %v1107 = vshrl.u32 %v1106, 7
        %v1108 = vsub.s32 %v1105, %v1107
        %v1109 = vrot.slane %v1101, %v1108
        %v1111 = vunpack.c.l.s4 1934713408
        %v1112 = vunpack.c.0.s8 %v1111
        %v1113 = vlaneseq
        %v1114 = vshrl.u32 %v1113, 7
        %v1115 = vsub.s32 %v1112, %v1114
        %v1116 = vrot.slane %v1102, %v1115
        %v1117 = vcombine.low %v1052, %v1068
        %v1118 = vcombine.high %v1052, %v1068
        %v1120 = vunpack.c.l.s4 1934713408
        %v1121 = vunpack.c.0.s8 %v1120
        %v1122 = vlaneseq
        %v1123 = vshrl.u32 %v1122, 7
        %v1124 = vsub.s32 %v1121, %v1123
        %v1125 = vrot.slane %v1117, %v1124
        %v1127 = vunpack.c.l.s4 1934713408
        %v1128 = vunpack.c.0.s8 %v1127
        %v1129 = vlaneseq
        %v1130 = vshrl.u32 %v1129, 7
        %v1131 = vsub.s32 %v1128, %v1130
        %v1132 = vrot.slane %v1118, %v1131
        %v1133 = vcombine.low %v1077, %v1109
        %v1134 = vcombine.high %v1077, %v1109
        %v1135 = vcombine.low %v1084, %v1116
        %v1136 = vcombine.high %v1084, %v1116
        %v1137 = vcombine.low %v1093, %v1125
        %v1138 = vcombine.high %v1093, %v1125
        %v1139 = vcombine.low %v1100, %v1132
        %v1140 = vcombine.high %v1100, %v1132
        %v1141 = vcombine.low %v282, %v328
        %v1142 = vcombine.high %v282, %v328
        %v1144 = vunpack.c.l.s4 1983009808
        %v1145 = vunpack.c.0.s8 %v1144
        %v1146 = vlaneseq
        %v1147 = vshrl.u32 %v1146, 7
        %v1148 = vsub.s32 %v1145, %v1147
        %v1149 = vrot.slane %v1141, %v1148
        %v1151 = vunpack.c.l.s4 1983009808
        %v1152 = vunpack.c.0.s8 %v1151
        %v1153 = vlaneseq
        %v1154 = vshrl.u32 %v1153, 7
        %v1155 = vsub.s32 %v1152, %v1154
        %v1156 = vrot.slane %v1142, %v1155
        %v1157 = vcombine.low %v304, %v352
        %v1158 = vcombine.high %v304, %v352
        %v1160 = vunpack.c.l.s4 1983009808
        %v1161 = vunpack.c.0.s8 %v1160
        %v1162 = vlaneseq
        %v1163 = vshrl.u32 %v1162, 7
        %v1164 = vsub.s32 %v1161, %v1163
        %v1165 = vrot.slane %v1157, %v1164
        %v1167 = vunpack.c.l.s4 1983009808
        %v1168 = vunpack.c.0.s8 %v1167
        %v1169 = vlaneseq
        %v1170 = vshrl.u32 %v1169, 7
        %v1171 = vsub.s32 %v1168, %v1170
        %v1172 = vrot.slane %v1158, %v1171
        %v1173 = vcombine.low %v376, %v424
        %v1174 = vcombine.high %v376, %v424
        %v1176 = vunpack.c.l.s4 1983009808
        %v1177 = vunpack.c.0.s8 %v1176
        %v1178 = vlaneseq
        %v1179 = vshrl.u32 %v1178, 7
        %v1180 = vsub.s32 %v1177, %v1179
        %v1181 = vrot.slane %v1173, %v1180
        %v1183 = vunpack.c.l.s4 1983009808
        %v1184 = vunpack.c.0.s8 %v1183
        %v1185 = vlaneseq
        %v1186 = vshrl.u32 %v1185, 7
        %v1187 = vsub.s32 %v1184, %v1186
        %v1188 = vrot.slane %v1174, %v1187
        %v1189 = vcombine.low %v400, %v448
        %v1190 = vcombine.high %v400, %v448
        %v1192 = vunpack.c.l.s4 1983009808
        %v1193 = vunpack.c.0.s8 %v1192
        %v1194 = vlaneseq
        %v1195 = vshrl.u32 %v1194, 7
        %v1196 = vsub.s32 %v1193, %v1195
        %v1197 = vrot.slane %v1189, %v1196
        %v1199 = vunpack.c.l.s4 1983009808
        %v1200 = vunpack.c.0.s8 %v1199
        %v1201 = vlaneseq
        %v1202 = vshrl.u32 %v1201, 7
        %v1203 = vsub.s32 %v1200, %v1202
        %v1204 = vrot.slane %v1190, %v1203
        %v1205 = vcombine.low %v1149, %v1165
        %v1206 = vcombine.high %v1149, %v1165
        %v1208 = vunpack.c.l.s4 1934713408
        %v1209 = vunpack.c.0.s8 %v1208
        %v1210 = vlaneseq
        %v1211 = vshrl.u32 %v1210, 7
        %v1212 = vsub.s32 %v1209, %v1211
        %v1213 = vrot.slane %v1205, %v1212
        %v1215 = vunpack.c.l.s4 1934713408
        %v1216 = vunpack.c.0.s8 %v1215
        %v1217 = vlaneseq
        %v1218 = vshrl.u32 %v1217, 7
        %v1219 = vsub.s32 %v1216, %v1218
        %v1220 = vrot.slane %v1206, %v1219
        %v1221 = vcombine.low %v1156, %v1172
        %v1222 = vcombine.high %v1156, %v1172
        %v1224 = vunpack.c.l.s4 1934713408
        %v1225 = vunpack.c.0.s8 %v1224
        %v1226 = vlaneseq
        %v1227 = vshrl.u32 %v1226, 7
        %v1228 = vsub.s32 %v1225, %v1227
        %v1229 = vrot.slane %v1221, %v1228
        %v1231 = vunpack.c.l.s4 1934713408
        %v1232 = vunpack.c.0.s8 %v1231
        %v1233 = vlaneseq
        %v1234 = vshrl.u32 %v1233, 7
        %v1235 = vsub.s32 %v1232, %v1234
        %v1236 = vrot.slane %v1222, %v1235
        %v1237 = vcombine.low %v1181, %v1197
        %v1238 = vcombine.high %v1181, %v1197
        %v1240 = vunpack.c.l.s4 1934713408
        %v1241 = vunpack.c.0.s8 %v1240
        %v1242 = vlaneseq
        %v1243 = vshrl.u32 %v1242, 7
        %v1244 = vsub.s32 %v1241, %v1243
        %v1245 = vrot.slane %v1237, %v1244
        %v1247 = vunpack.c.l.s4 1934713408
        %v1248 = vunpack.c.0.s8 %v1247
        %v1249 = vlaneseq
        %v1250 = vshrl.u32 %v1249, 7
        %v1251 = vsub.s32 %v1248, %v1250
        %v1252 = vrot.slane %v1238, %v1251
        %v1253 = vcombine.low %v1188, %v1204
        %v1254 = vcombine.high %v1188, %v1204
        %v1256 = vunpack.c.l.s4 1934713408
        %v1257 = vunpack.c.0.s8 %v1256
        %v1258 = vlaneseq
        %v1259 = vshrl.u32 %v1258, 7
        %v1260 = vsub.s32 %v1257, %v1259
        %v1261 = vrot.slane %v1253, %v1260
        %v1263 = vunpack.c.l.s4 1934713408
        %v1264 = vunpack.c.0.s8 %v1263
        %v1265 = vlaneseq
        %v1266 = vshrl.u32 %v1265, 7
        %v1267 = vsub.s32 %v1264, %v1266
        %v1268 = vrot.slane %v1254, %v1267
        %v1269 = vcombine.low %v1213, %v1245
        %v1270 = vcombine.high %v1213, %v1245
        %v1271 = vcombine.low %v1220, %v1252
        %v1272 = vcombine.high %v1220, %v1252
        %v1273 = vcombine.low %v1229, %v1261
        %v1274 = vcombine.high %v1229, %v1261
        %v1275 = vcombine.low %v1236, %v1268
        %v1276 = vcombine.high %v1236, %v1268
        %v1277 = vcombine.low %v283, %v330
        %v1278 = vcombine.high %v283, %v330
        %v1280 = vunpack.c.l.s4 1983009808
        %v1281 = vunpack.c.0.s8 %v1280
        %v1282 = vlaneseq
        %v1283 = vshrl.u32 %v1282, 7
        %v1284 = vsub.s32 %v1281, %v1283
        %v1285 = vrot.slane %v1277, %v1284
        %v1287 = vunpack.c.l.s4 1983009808
        %v1288 = vunpack.c.0.s8 %v1287
        %v1289 = vlaneseq
        %v1290 = vshrl.u32 %v1289, 7
        %v1291 = vsub.s32 %v1288, %v1290
        %v1292 = vrot.slane %v1278, %v1291
        %v1293 = vcombine.low %v306, %v354
        %v1294 = vcombine.high %v306, %v354
        %v1296 = vunpack.c.l.s4 1983009808
        %v1297 = vunpack.c.0.s8 %v1296
        %v1298 = vlaneseq
        %v1299 = vshrl.u32 %v1298, 7
        %v1300 = vsub.s32 %v1297, %v1299
        %v1301 = vrot.slane %v1293, %v1300
        %v1303 = vunpack.c.l.s4 1983009808
        %v1304 = vunpack.c.0.s8 %v1303
        %v1305 = vlaneseq
        %v1306 = vshrl.u32 %v1305, 7
        %v1307 = vsub.s32 %v1304, %v1306
        %v1308 = vrot.slane %v1294, %v1307
        %v1309 = vcombine.low %v378, %v426
        %v1310 = vcombine.high %v378, %v426
        %v1312 = vunpack.c.l.s4 1983009808
        %v1313 = vunpack.c.0.s8 %v1312
        %v1314 = vlaneseq
        %v1315 = vshrl.u32 %v1314, 7
        %v1316 = vsub.s32 %v1313, %v1315
        %v1317 = vrot.slane %v1309, %v1316
        %v1319 = vunpack.c.l.s4 1983009808
        %v1320 = vunpack.c.0.s8 %v1319
        %v1321 = vlaneseq
        %v1322 = vshrl.u32 %v1321, 7
        %v1323 = vsub.s32 %v1320, %v1322
        %v1324 = vrot.slane %v1310, %v1323
        %v1325 = vcombine.low %v402, %v450
        %v1326 = vcombine.high %v402, %v450
        %v1328 = vunpack.c.l.s4 1983009808
        %v1329 = vunpack.c.0.s8 %v1328
        %v1330 = vlaneseq
        %v1331 = vshrl.u32 %v1330, 7
        %v1332 = vsub.s32 %v1329, %v1331
        %v1333 = vrot.slane %v1325, %v1332
        %v1335 = vunpack.c.l.s4 1983009808
        %v1336 = vunpack.c.0.s8 %v1335
        %v1337 = vlaneseq
        %v1338 = vshrl.u32 %v1337, 7
        %v1339 = vsub.s32 %v1336, %v1338
        %v1340 = vrot.slane %v1326, %v1339
        %v1341 = vcombine.low %v1285, %v1301
        %v1342 = vcombine.high %v1285, %v1301
        %v1344 = vunpack.c.l.s4 1934713408
        %v1345 = vunpack.c.0.s8 %v1344
        %v1346 = vlaneseq
        %v1347 = vshrl.u32 %v1346, 7
        %v1348 = vsub.s32 %v1345, %v1347
        %v1349 = vrot.slane %v1341, %v1348
        %v1351 = vunpack.c.l.s4 1934713408
        %v1352 = vunpack.c.0.s8 %v1351
        %v1353 = vlaneseq
        %v1354 = vshrl.u32 %v1353, 7
        %v1355 = vsub.s32 %v1352, %v1354
        %v1356 = vrot.slane %v1342, %v1355
        %v1357 = vcombine.low %v1292, %v1308
        %v1358 = vcombine.high %v1292, %v1308
        %v1360 = vunpack.c.l.s4 1934713408
        %v1361 = vunpack.c.0.s8 %v1360
        %v1362 = vlaneseq
        %v1363 = vshrl.u32 %v1362, 7
        %v1364 = vsub.s32 %v1361, %v1363
        %v1365 = vrot.slane %v1357, %v1364
        %v1367 = vunpack.c.l.s4 1934713408
        %v1368 = vunpack.c.0.s8 %v1367
        %v1369 = vlaneseq
        %v1370 = vshrl.u32 %v1369, 7
        %v1371 = vsub.s32 %v1368, %v1370
        %v1372 = vrot.slane %v1358, %v1371
        %v1373 = vcombine.low %v1317, %v1333
        %v1374 = vcombine.high %v1317, %v1333
        %v1376 = vunpack.c.l.s4 1934713408
        %v1377 = vunpack.c.0.s8 %v1376
        %v1378 = vlaneseq
        %v1379 = vshrl.u32 %v1378, 7
        %v1380 = vsub.s32 %v1377, %v1379
        %v1381 = vrot.slane %v1373, %v1380
        %v1383 = vunpack.c.l.s4 1934713408
        %v1384 = vunpack.c.0.s8 %v1383
        %v1385 = vlaneseq
        %v1386 = vshrl.u32 %v1385, 7
        %v1387 = vsub.s32 %v1384, %v1386
        %v1388 = vrot.slane %v1374, %v1387
        %v1389 = vcombine.low %v1324, %v1340
        %v1390 = vcombine.high %v1324, %v1340
        %v1392 = vunpack.c.l.s4 1934713408
        %v1393 = vunpack.c.0.s8 %v1392
        %v1394 = vlaneseq
        %v1395 = vshrl.u32 %v1394, 7
        %v1396 = vsub.s32 %v1393, %v1395
        %v1397 = vrot.slane %v1389, %v1396
        %v1399 = vunpack.c.l.s4 1934713408
        %v1400 = vunpack.c.0.s8 %v1399
        %v1401 = vlaneseq
        %v1402 = vshrl.u32 %v1401, 7
        %v1403 = vsub.s32 %v1400, %v1402
        %v1404 = vrot.slane %v1390, %v1403
        %v1405 = vcombine.low %v1349, %v1381
        %v1406 = vcombine.high %v1349, %v1381
        %v1407 = vcombine.low %v1356, %v1388
        %v1408 = vcombine.high %v1356, %v1388
        %v1409 = vcombine.low %v1365, %v1397
        %v1410 = vcombine.high %v1365, %v1397
        %v1411 = vcombine.low %v1372, %v1404
        %v1412 = vcombine.high %v1372, %v1404
        %v1413 = vcombine.low %v284, %v332
        %v1414 = vcombine.high %v284, %v332
        %v1416 = vunpack.c.l.s4 1983009808
        %v1417 = vunpack.c.0.s8 %v1416
        %v1418 = vlaneseq
        %v1419 = vshrl.u32 %v1418, 7
        %v1420 = vsub.s32 %v1417, %v1419
        %v1421 = vrot.slane %v1413, %v1420
        %v1423 = vunpack.c.l.s4 1983009808
        %v1424 = vunpack.c.0.s8 %v1423
        %v1425 = vlaneseq
        %v1426 = vshrl.u32 %v1425, 7
        %v1427 = vsub.s32 %v1424, %v1426
        %v1428 = vrot.slane %v1414, %v1427
        %v1429 = vcombine.low %v308, %v356
        %v1430 = vcombine.high %v308, %v356
        %v1432 = vunpack.c.l.s4 1983009808
        %v1433 = vunpack.c.0.s8 %v1432
        %v1434 = vlaneseq
        %v1435 = vshrl.u32 %v1434, 7
        %v1436 = vsub.s32 %v1433, %v1435
        %v1437 = vrot.slane %v1429, %v1436
        %v1439 = vunpack.c.l.s4 1983009808
        %v1440 = vunpack.c.0.s8 %v1439
        %v1441 = vlaneseq
        %v1442 = vshrl.u32 %v1441, 7
        %v1443 = vsub.s32 %v1440, %v1442
        %v1444 = vrot.slane %v1430, %v1443
        %v1445 = vcombine.low %v380, %v428
        %v1446 = vcombine.high %v380, %v428
        %v1448 = vunpack.c.l.s4 1983009808
        %v1449 = vunpack.c.0.s8 %v1448
        %v1450 = vlaneseq
        %v1451 = vshrl.u32 %v1450, 7
        %v1452 = vsub.s32 %v1449, %v1451
        %v1453 = vrot.slane %v1445, %v1452
        %v1455 = vunpack.c.l.s4 1983009808
        %v1456 = vunpack.c.0.s8 %v1455
        %v1457 = vlaneseq
        %v1458 = vshrl.u32 %v1457, 7
        %v1459 = vsub.s32 %v1456, %v1458
        %v1460 = vrot.slane %v1446, %v1459
        %v1461 = vcombine.low %v404, %v452
        %v1462 = vcombine.high %v404, %v452
        %v1464 = vunpack.c.l.s4 1983009808
        %v1465 = vunpack.c.0.s8 %v1464
        %v1466 = vlaneseq
        %v1467 = vshrl.u32 %v1466, 7
        %v1468 = vsub.s32 %v1465, %v1467
        %v1469 = vrot.slane %v1461, %v1468
        %v1471 = vunpack.c.l.s4 1983009808
        %v1472 = vunpack.c.0.s8 %v1471
        %v1473 = vlaneseq
        %v1474 = vshrl.u32 %v1473, 7
        %v1475 = vsub.s32 %v1472, %v1474
        %v1476 = vrot.slane %v1462, %v1475
        %v1477 = vcombine.low %v1421, %v1437
        %v1478 = vcombine.high %v1421, %v1437
        %v1480 = vunpack.c.l.s4 1934713408
        %v1481 = vunpack.c.0.s8 %v1480
        %v1482 = vlaneseq
        %v1483 = vshrl.u32 %v1482, 7
        %v1484 = vsub.s32 %v1481, %v1483
        %v1485 = vrot.slane %v1477, %v1484
        %v1487 = vunpack.c.l.s4 1934713408
        %v1488 = vunpack.c.0.s8 %v1487
        %v1489 = vlaneseq
        %v1490 = vshrl.u32 %v1489, 7
        %v1491 = vsub.s32 %v1488, %v1490
        %v1492 = vrot.slane %v1478, %v1491
        %v1493 = vcombine.low %v1428, %v1444
        %v1494 = vcombine.high %v1428, %v1444
        %v1496 = vunpack.c.l.s4 1934713408
        %v1497 = vunpack.c.0.s8 %v1496
        %v1498 = vlaneseq
        %v1499 = vshrl.u32 %v1498, 7
        %v1500 = vsub.s32 %v1497, %v1499
        %v1501 = vrot.slane %v1493, %v1500
        %v1503 = vunpack.c.l.s4 1934713408
        %v1504 = vunpack.c.0.s8 %v1503
        %v1505 = vlaneseq
        %v1506 = vshrl.u32 %v1505, 7
        %v1507 = vsub.s32 %v1504, %v1506
        %v1508 = vrot.slane %v1494, %v1507
        %v1509 = vcombine.low %v1453, %v1469
        %v1510 = vcombine.high %v1453, %v1469
        %v1512 = vunpack.c.l.s4 1934713408
        %v1513 = vunpack.c.0.s8 %v1512
        %v1514 = vlaneseq
        %v1515 = vshrl.u32 %v1514, 7
        %v1516 = vsub.s32 %v1513, %v1515
        %v1517 = vrot.slane %v1509, %v1516
        %v1519 = vunpack.c.l.s4 1934713408
        %v1520 = vunpack.c.0.s8 %v1519
        %v1521 = vlaneseq
        %v1522 = vshrl.u32 %v1521, 7
        %v1523 = vsub.s32 %v1520, %v1522
        %v1524 = vrot.slane %v1510, %v1523
        %v1525 = vcombine.low %v1460, %v1476
        %v1526 = vcombine.high %v1460, %v1476
        %v1528 = vunpack.c.l.s4 1934713408
        %v1529 = vunpack.c.0.s8 %v1528
        %v1530 = vlaneseq
        %v1531 = vshrl.u32 %v1530, 7
        %v1532 = vsub.s32 %v1529, %v1531
        %v1533 = vrot.slane %v1525, %v1532
        %v1535 = vunpack.c.l.s4 1934713408
        %v1536 = vunpack.c.0.s8 %v1535
        %v1537 = vlaneseq
        %v1538 = vshrl.u32 %v1537, 7
        %v1539 = vsub.s32 %v1536, %v1538
        %v1540 = vrot.slane %v1526, %v1539
        %v1541 = vcombine.low %v1485, %v1517
        %v1542 = vcombine.high %v1485, %v1517
        %v1543 = vcombine.low %v1492, %v1524
        %v1544 = vcombine.high %v1492, %v1524
        %v1545 = vcombine.low %v1501, %v1533
        %v1546 = vcombine.high %v1501, %v1533
        %v1547 = vcombine.low %v1508, %v1540
        %v1548 = vcombine.high %v1508, %v1540
        %vm1549 = vcmask 15360
        %v1550 = vsel %vm1549, %v589, -inf
        %1551 = vmax.xlane.f32.xlu0 %v1550
        %v1552 = vpop.xlane.xlu0 %1551
        %v1553 = vsel %vm1549, %v590, -inf
        %1554 = vmax.xlane.f32.xlu0 %v1553
        %v1555 = vpop.xlane.xlu0 %1554
        %v1556 = vsel %vm1549, %v591, -inf
        %1557 = vmax.xlane.f32.xlu0 %v1556
        %v1558 = vpop.xlane.xlu0 %1557
        %v1559 = vsel %vm1549, %v592, -inf
        %1560 = vmax.xlane.f32.xlu0 %v1559
        %v1561 = vpop.xlane.xlu0 %1560
        %v1562 = vsel %vm1549, %v593, -inf
        %1563 = vmax.xlane.f32.xlu0 %v1562
        %v1564 = vpop.xlane.xlu0 %1563
        %v1565 = vsel %vm1549, %v594, -inf
        %1566 = vmax.xlane.f32.xlu0 %v1565
        %v1567 = vpop.xlane.xlu0 %1566
        %v1568 = vsel %vm1549, %v595, -inf
        %1569 = vmax.xlane.f32.xlu0 %v1568
        %v1570 = vpop.xlane.xlu0 %1569
        %v1571 = vsel %vm1549, %v596, -inf
        %1572 = vmax.xlane.f32.xlu0 %v1571
        %v1573 = vpop.xlane.xlu0 %1572
        %v1574 = vsel %vm1549, %v725, -inf
        %1575 = vmax.xlane.f32.xlu0 %v1574
        %v1576 = vpop.xlane.xlu0 %1575
        %v1577 = vsel %vm1549, %v726, -inf
        %1578 = vmax.xlane.f32.xlu0 %v1577
        %v1579 = vpop.xlane.xlu0 %1578
        %v1580 = vsel %vm1549, %v727, -inf
        %1581 = vmax.xlane.f32.xlu0 %v1580
        %v1582 = vpop.xlane.xlu0 %1581
        %v1583 = vsel %vm1549, %v728, -inf
        %1584 = vmax.xlane.f32.xlu0 %v1583
        %v1585 = vpop.xlane.xlu0 %1584
        %v1586 = vsel %vm1549, %v729, -inf
        %1587 = vmax.xlane.f32.xlu0 %v1586
        %v1588 = vpop.xlane.xlu0 %1587
        %v1589 = vsel %vm1549, %v730, -inf
        %1590 = vmax.xlane.f32.xlu0 %v1589
        %v1591 = vpop.xlane.xlu0 %1590
        %v1592 = vsel %vm1549, %v731, -inf
        %1593 = vmax.xlane.f32.xlu0 %v1592
        %v1594 = vpop.xlane.xlu0 %1593
        %v1595 = vsel %vm1549, %v732, -inf
        %1596 = vmax.xlane.f32.xlu0 %v1595
        %v1597 = vpop.xlane.xlu0 %1596
        %v1598 = vsel %vm1549, %v861, -inf
        %1599 = vmax.xlane.f32.xlu0 %v1598
        %v1600 = vpop.xlane.xlu0 %1599
        %v1601 = vsel %vm1549, %v862, -inf
        %1602 = vmax.xlane.f32.xlu0 %v1601
        %v1603 = vpop.xlane.xlu0 %1602
        %v1604 = vsel %vm1549, %v863, -inf
        %1605 = vmax.xlane.f32.xlu0 %v1604
        %v1606 = vpop.xlane.xlu0 %1605
        %v1607 = vsel %vm1549, %v864, -inf
        %1608 = vmax.xlane.f32.xlu0 %v1607
        %v1609 = vpop.xlane.xlu0 %1608
        %v1610 = vsel %vm1549, %v865, -inf
        %1611 = vmax.xlane.f32.xlu0 %v1610
        %v1612 = vpop.xlane.xlu0 %1611
        %v1613 = vsel %vm1549, %v866, -inf
        %1614 = vmax.xlane.f32.xlu0 %v1613
        %v1615 = vpop.xlane.xlu0 %1614
        %v1616 = vsel %vm1549, %v867, -inf
        %1617 = vmax.xlane.f32.xlu0 %v1616
        %v1618 = vpop.xlane.xlu0 %1617
        %v1619 = vsel %vm1549, %v868, -inf
        %1620 = vmax.xlane.f32.xlu0 %v1619
        %v1621 = vpop.xlane.xlu0 %1620
        %v1622 = vsel %vm1549, %v997, -inf
        %1623 = vmax.xlane.f32.xlu0 %v1622
        %v1624 = vpop.xlane.xlu0 %1623
        %v1625 = vsel %vm1549, %v998, -inf
        %1626 = vmax.xlane.f32.xlu0 %v1625
        %v1627 = vpop.xlane.xlu0 %1626
        %v1628 = vsel %vm1549, %v999, -inf
        %1629 = vmax.xlane.f32.xlu0 %v1628
        %v1630 = vpop.xlane.xlu0 %1629
        %v1631 = vsel %vm1549, %v1000, -inf
        %1632 = vmax.xlane.f32.xlu0 %v1631
        %v1633 = vpop.xlane.xlu0 %1632
        %v1634 = vsel %vm1549, %v1001, -inf
        %1635 = vmax.xlane.f32.xlu0 %v1634
        %v1636 = vpop.xlane.xlu0 %1635
        %v1637 = vsel %vm1549, %v1002, -inf
        %1638 = vmax.xlane.f32.xlu0 %v1637
        %v1639 = vpop.xlane.xlu0 %1638
        %v1640 = vsel %vm1549, %v1003, -inf
        %1641 = vmax.xlane.f32.xlu0 %v1640
        %v1642 = vpop.xlane.xlu0 %1641
        %v1643 = vsel %vm1549, %v1004, -inf
        %1644 = vmax.xlane.f32.xlu0 %v1643
        %v1645 = vpop.xlane.xlu0 %1644
        %v1646 = vsel %vm1549, %v1133, -inf
        %1647 = vmax.xlane.f32.xlu0 %v1646
        %v1648 = vpop.xlane.xlu0 %1647
        %v1649 = vsel %vm1549, %v1134, -inf
        %1650 = vmax.xlane.f32.xlu0 %v1649
        %v1651 = vpop.xlane.xlu0 %1650
        %v1652 = vsel %vm1549, %v1135, -inf
        %1653 = vmax.xlane.f32.xlu0 %v1652
        %v1654 = vpop.xlane.xlu0 %1653
        %v1655 = vsel %vm1549, %v1136, -inf
        %1656 = vmax.xlane.f32.xlu0 %v1655
        %v1657 = vpop.xlane.xlu0 %1656
        %v1658 = vsel %vm1549, %v1137, -inf
        %1659 = vmax.xlane.f32.xlu0 %v1658
        %v1660 = vpop.xlane.xlu0 %1659
        %v1661 = vsel %vm1549, %v1138, -inf
        %1662 = vmax.xlane.f32.xlu0 %v1661
        %v1663 = vpop.xlane.xlu0 %1662
        %v1664 = vsel %vm1549, %v1139, -inf
        %1665 = vmax.xlane.f32.xlu0 %v1664
        %v1666 = vpop.xlane.xlu0 %1665
        %v1667 = vsel %vm1549, %v1140, -inf
        %1668 = vmax.xlane.f32.xlu0 %v1667
        %v1669 = vpop.xlane.xlu0 %1668
        %v1670 = vsel %vm1549, %v1269, -inf
        %1671 = vmax.xlane.f32.xlu0 %v1670
        %v1672 = vpop.xlane.xlu0 %1671
        %v1673 = vsel %vm1549, %v1270, -inf
        %1674 = vmax.xlane.f32.xlu0 %v1673
        %v1675 = vpop.xlane.xlu0 %1674
        %v1676 = vsel %vm1549, %v1271, -inf
        %1677 = vmax.xlane.f32.xlu0 %v1676
        %v1678 = vpop.xlane.xlu0 %1677
        %v1679 = vsel %vm1549, %v1272, -inf
        %1680 = vmax.xlane.f32.xlu0 %v1679
        %v1681 = vpop.xlane.xlu0 %1680
        %v1682 = vsel %vm1549, %v1273, -inf
        %1683 = vmax.xlane.f32.xlu0 %v1682
        %v1684 = vpop.xlane.xlu0 %1683
        %v1685 = vsel %vm1549, %v1274, -inf
        %1686 = vmax.xlane.f32.xlu0 %v1685
        %v1687 = vpop.xlane.xlu0 %1686
        %v1688 = vsel %vm1549, %v1275, -inf
        %1689 = vmax.xlane.f32.xlu0 %v1688
        %v1690 = vpop.xlane.xlu0 %1689
        %v1691 = vsel %vm1549, %v1276, -inf
        %1692 = vmax.xlane.f32.xlu0 %v1691
        %v1693 = vpop.xlane.xlu0 %1692
        %v1694 = vsel %vm1549, %v1405, -inf
        %1695 = vmax.xlane.f32.xlu0 %v1694
        %v1696 = vpop.xlane.xlu0 %1695
        %v1697 = vsel %vm1549, %v1406, -inf
        %1698 = vmax.xlane.f32.xlu0 %v1697
        %v1699 = vpop.xlane.xlu0 %1698
        %v1700 = vsel %vm1549, %v1407, -inf
        %1701 = vmax.xlane.f32.xlu0 %v1700
        %v1702 = vpop.xlane.xlu0 %1701
        %v1703 = vsel %vm1549, %v1408, -inf
        %1704 = vmax.xlane.f32.xlu0 %v1703
        %v1705 = vpop.xlane.xlu0 %1704
        %v1706 = vsel %vm1549, %v1409, -inf
        %1707 = vmax.xlane.f32.xlu0 %v1706
        %v1708 = vpop.xlane.xlu0 %1707
        %v1709 = vsel %vm1549, %v1410, -inf
        %1710 = vmax.xlane.f32.xlu0 %v1709
        %v1711 = vpop.xlane.xlu0 %1710
        %v1712 = vsel %vm1549, %v1411, -inf
        %1713 = vmax.xlane.f32.xlu0 %v1712
        %v1714 = vpop.xlane.xlu0 %1713
        %v1715 = vsel %vm1549, %v1412, -inf
        %1716 = vmax.xlane.f32.xlu0 %v1715
        %v1717 = vpop.xlane.xlu0 %1716
        %v1718 = vsel %vm1549, %v1541, -inf
        %1719 = vmax.xlane.f32.xlu0 %v1718
        %v1720 = vpop.xlane.xlu0 %1719
        %v1721 = vsel %vm1549, %v1542, -inf
        %1722 = vmax.xlane.f32.xlu0 %v1721
        %v1723 = vpop.xlane.xlu0 %1722
        %v1724 = vsel %vm1549, %v1543, -inf
        %1725 = vmax.xlane.f32.xlu0 %v1724
        %v1726 = vpop.xlane.xlu0 %1725
        %v1727 = vsel %vm1549, %v1544, -inf
        %1728 = vmax.xlane.f32.xlu0 %v1727
        %v1729 = vpop.xlane.xlu0 %1728
        %v1730 = vsel %vm1549, %v1545, -inf
        %1731 = vmax.xlane.f32.xlu0 %v1730
        %v1732 = vpop.xlane.xlu0 %1731
        %v1733 = vsel %vm1549, %v1546, -inf
        %1734 = vmax.xlane.f32.xlu0 %v1733
        %v1735 = vpop.xlane.xlu0 %1734
        %v1736 = vsel %vm1549, %v1547, -inf
        %1737 = vmax.xlane.f32.xlu0 %v1736
        %v1738 = vpop.xlane.xlu0 %1737
        %v1739 = vsel %vm1549, %v1548, -inf
        %1740 = vmax.xlane.f32.xlu0 %v1739
        %v1741 = vpop.xlane.xlu0 %1740
        %v1742 = vmax.f32 %v1552, %v1555
        %v1743 = vmax.f32 %v1558, %v1561
        %v1744 = vmax.f32 %v1564, %v1567
        %v1745 = vmax.f32 %v1570, %v1573
        %v1746 = vmax.f32 %v1576, %v1579
        %v1747 = vmax.f32 %v1582, %v1585
        %v1748 = vmax.f32 %v1588, %v1591
        %v1749 = vmax.f32 %v1594, %v1597
        %v1750 = vmax.f32 %v1600, %v1603
        %v1751 = vmax.f32 %v1606, %v1609
        %v1752 = vmax.f32 %v1612, %v1615
        %v1753 = vmax.f32 %v1618, %v1621
        %v1754 = vmax.f32 %v1624, %v1627
        %v1755 = vmax.f32 %v1630, %v1633
        %v1756 = vmax.f32 %v1636, %v1639
        %v1757 = vmax.f32 %v1642, %v1645
        %v1758 = vmax.f32 %v1648, %v1651
        %v1759 = vmax.f32 %v1654, %v1657
        %v1760 = vmax.f32 %v1660, %v1663
        %v1761 = vmax.f32 %v1666, %v1669
        %v1762 = vmax.f32 %v1672, %v1675
        %v1763 = vmax.f32 %v1678, %v1681
        %v1764 = vmax.f32 %v1684, %v1687
        %v1765 = vmax.f32 %v1690, %v1693
        %v1766 = vmax.f32 %v1696, %v1699
        %v1767 = vmax.f32 %v1702, %v1705
        %v1768 = vmax.f32 %v1708, %v1711
        %v1769 = vmax.f32 %v1714, %v1717
        %v1770 = vmax.f32 %v1720, %v1723
        %v1771 = vmax.f32 %v1726, %v1729
        %v1772 = vmax.f32 %v1732, %v1735
        %v1773 = vmax.f32 %v1738, %v1741
        %v1774 = vld [vmem:[%s2] sm:$0xff]
        %v1775 = vld [vmem:[%s3] sm:$0xff]
        %v1808 = vlaneseq
        %v1809 = vand.u32 %v1808, 127
        %v1810 = vlaneseq
        %v1811 = vshrl.u32 %v1810, 7
        %v1812 = vsub.s32 %v1809, %v1811
        %v1813 = vrot.slane %v1742, %v1812
        %v1814 = vlaneseq
        %v1815 = vshrl.u32 %v1814, 7
        %v1816 = vsub.s32 %v1809, %v1815
        %v1817 = vrot.slane %v1743, %v1816
        %v1818 = vlaneseq
        %v1819 = vshrl.u32 %v1818, 7
        %v1820 = vsub.s32 %v1809, %v1819
        %v1821 = vrot.slane %v1744, %v1820
        %v1822 = vlaneseq
        %v1823 = vshrl.u32 %v1822, 7
        %v1824 = vsub.s32 %v1809, %v1823
        %v1825 = vrot.slane %v1745, %v1824
        %v1826 = vlaneseq
        %v1827 = vshrl.u32 %v1826, 7
        %v1828 = vsub.s32 %v1809, %v1827
        %v1829 = vrot.slane %v1746, %v1828
        %v1830 = vlaneseq
        %v1831 = vshrl.u32 %v1830, 7
        %v1832 = vsub.s32 %v1809, %v1831
        %v1833 = vrot.slane %v1747, %v1832
        %v1834 = vlaneseq
        %v1835 = vshrl.u32 %v1834, 7
        %v1836 = vsub.s32 %v1809, %v1835
        %v1837 = vrot.slane %v1748, %v1836
        %v1838 = vlaneseq
        %v1839 = vshrl.u32 %v1838, 7
        %v1840 = vsub.s32 %v1809, %v1839
        %v1841 = vrot.slane %v1749, %v1840
        %v1842 = vlaneseq
        %v1843 = vshrl.u32 %v1842, 7
        %v1844 = vsub.s32 %v1809, %v1843
        %v1845 = vrot.slane %v1750, %v1844
        %v1846 = vlaneseq
        %v1847 = vshrl.u32 %v1846, 7
        %v1848 = vsub.s32 %v1809, %v1847
        %v1849 = vrot.slane %v1751, %v1848
        %v1850 = vlaneseq
        %v1851 = vshrl.u32 %v1850, 7
        %v1852 = vsub.s32 %v1809, %v1851
        %v1853 = vrot.slane %v1752, %v1852
        %v1854 = vlaneseq
        %v1855 = vshrl.u32 %v1854, 7
        %v1856 = vsub.s32 %v1809, %v1855
        %v1857 = vrot.slane %v1753, %v1856
        %v1858 = vlaneseq
        %v1859 = vshrl.u32 %v1858, 7
        %v1860 = vsub.s32 %v1809, %v1859
        %v1861 = vrot.slane %v1754, %v1860
        %v1862 = vlaneseq
        %v1863 = vshrl.u32 %v1862, 7
        %v1864 = vsub.s32 %v1809, %v1863
        %v1865 = vrot.slane %v1755, %v1864
        %v1866 = vlaneseq
        %v1867 = vshrl.u32 %v1866, 7
        %v1868 = vsub.s32 %v1809, %v1867
        %v1869 = vrot.slane %v1756, %v1868
        %v1870 = vlaneseq
        %v1871 = vshrl.u32 %v1870, 7
        %v1872 = vsub.s32 %v1809, %v1871
        %v1873 = vrot.slane %v1757, %v1872
        %v1874 = vlaneseq
        %v1875 = vshrl.u32 %v1874, 7
        %v1876 = vsub.s32 %v1809, %v1875
        %v1877 = vrot.slane %v1758, %v1876
        %v1878 = vlaneseq
        %v1879 = vshrl.u32 %v1878, 7
        %v1880 = vsub.s32 %v1809, %v1879
        %v1881 = vrot.slane %v1759, %v1880
        %v1882 = vlaneseq
        %v1883 = vshrl.u32 %v1882, 7
        %v1884 = vsub.s32 %v1809, %v1883
        %v1885 = vrot.slane %v1760, %v1884
        %v1886 = vlaneseq
        %v1887 = vshrl.u32 %v1886, 7
        %v1888 = vsub.s32 %v1809, %v1887
        %v1889 = vrot.slane %v1761, %v1888
        %v1890 = vlaneseq
        %v1891 = vshrl.u32 %v1890, 7
        %v1892 = vsub.s32 %v1809, %v1891
        %v1893 = vrot.slane %v1762, %v1892
        %v1894 = vlaneseq
        %v1895 = vshrl.u32 %v1894, 7
        %v1896 = vsub.s32 %v1809, %v1895
        %v1897 = vrot.slane %v1763, %v1896
        %v1898 = vlaneseq
        %v1899 = vshrl.u32 %v1898, 7
        %v1900 = vsub.s32 %v1809, %v1899
        %v1901 = vrot.slane %v1764, %v1900
        %v1902 = vlaneseq
        %v1903 = vshrl.u32 %v1902, 7
        %v1904 = vsub.s32 %v1809, %v1903
        %v1905 = vrot.slane %v1765, %v1904
        %v1906 = vlaneseq
        %v1907 = vshrl.u32 %v1906, 7
        %v1908 = vsub.s32 %v1809, %v1907
        %v1909 = vrot.slane %v1766, %v1908
        %v1910 = vlaneseq
        %v1911 = vshrl.u32 %v1910, 7
        %v1912 = vsub.s32 %v1809, %v1911
        %v1913 = vrot.slane %v1767, %v1912
        %v1914 = vlaneseq
        %v1915 = vshrl.u32 %v1914, 7
        %v1916 = vsub.s32 %v1809, %v1915
        %v1917 = vrot.slane %v1768, %v1916
        %v1918 = vlaneseq
        %v1919 = vshrl.u32 %v1918, 7
        %v1920 = vsub.s32 %v1809, %v1919
        %v1921 = vrot.slane %v1769, %v1920
        %v1922 = vlaneseq
        %v1923 = vshrl.u32 %v1922, 7
        %v1924 = vsub.s32 %v1809, %v1923
        %v1925 = vrot.slane %v1770, %v1924
        %v1926 = vlaneseq
        %v1927 = vshrl.u32 %v1926, 7
        %v1928 = vsub.s32 %v1809, %v1927
        %v1929 = vrot.slane %v1771, %v1928
        %v1930 = vlaneseq
        %v1931 = vshrl.u32 %v1930, 7
        %v1932 = vsub.s32 %v1809, %v1931
        %v1933 = vrot.slane %v1772, %v1932
        %v1934 = vlaneseq
        %v1935 = vshrl.u32 %v1934, 7
        %v1936 = vsub.s32 %v1809, %v1935
        %v1937 = vrot.slane %v1773, %v1936
        %vm1938 = vcmask 1042434
        %v1939 = vsel %vm1938, %v1817, %v1813
        %vm1940 = vcmask 1043459
        %v1941 = vsel %vm1940, %v1821, %v1939
        %vm1942 = vcmask 1044484
        %v1943 = vsel %vm1942, %v1825, %v1941
        %vm1944 = vcmask 1045509
        %v1945 = vsel %vm1944, %v1829, %v1943
        %vm1946 = vcmask 1046534
        %v1947 = vsel %vm1946, %v1833, %v1945
        %vm1948 = vcmask 1047559
        %v1949 = vsel %vm1948, %v1837, %v1947
        %v1950 = vsel %vm1938, %v1849, %v1845
        %v1951 = vsel %vm1940, %v1853, %v1950
        %v1952 = vsel %vm1942, %v1857, %v1951
        %v1953 = vsel %vm1944, %v1861, %v1952
        %v1954 = vsel %vm1946, %v1865, %v1953
        %v1955 = vsel %vm1948, %v1869, %v1954
        %v1956 = vsel %vm1938, %v1881, %v1877
        %v1957 = vsel %vm1940, %v1885, %v1956
        %v1958 = vsel %vm1942, %v1889, %v1957
        %v1959 = vsel %vm1944, %v1893, %v1958
        %v1960 = vsel %vm1946, %v1897, %v1959
        %v1961 = vsel %vm1948, %v1901, %v1960
        %v1962 = vsel %vm1938, %v1913, %v1909
        %v1963 = vsel %vm1940, %v1917, %v1962
        %v1964 = vsel %vm1942, %v1921, %v1963
        %v1965 = vsel %vm1944, %v1925, %v1964
        %v1966 = vsel %vm1946, %v1929, %v1965
        %v1967 = vsel %vm1948, %v1933, %v1966
        %vm1976 = vcmask 1040384
        %v1977 = vsel %vm1976, 0.0, %v1949
        %v1978 = vsel %vm1976, 0.0, %v1955
        %v1979 = vsel %vm1976, 0.0, %v1961
        %v1980 = vsel %vm1976, 0.0, %v1967
        %v1981 = vsel %vm1976, %v1841, 0.0
        %v1982 = vsel %vm1976, %v1873, 0.0
        %v1983 = vsel %vm1976, %v1905, 0.0
        %v1984 = vsel %vm1976, %v1937, 0.0
        %1993 = vrot.lane.b32.xlu0 %v1977, 1
        %v1994 = vpop.permute.xlu0 %1993
        %1995 = vrot.lane.b32.xlu0 %v1981, 1
        %v1996 = vpop.permute.xlu0 %1995
        %1997 = vrot.lane.b32.xlu0 %v1978, 1
        %v1998 = vpop.permute.xlu0 %1997
        %1999 = vrot.lane.b32.xlu0 %v1982, 1
        %v2000 = vpop.permute.xlu0 %1999
        %2001 = vrot.lane.b32.xlu0 %v1979, 1
        %v2002 = vpop.permute.xlu0 %2001
        %2003 = vrot.lane.b32.xlu0 %v1983, 1
        %v2004 = vpop.permute.xlu0 %2003
        %2005 = vrot.lane.b32.xlu0 %v1980, 1
        %v2006 = vpop.permute.xlu0 %2005
        %2007 = vrot.lane.b32.xlu0 %v1984, 1
        %v2008 = vpop.permute.xlu0 %2007
        %vm2017 = vcmask 7168
        %v2018 = vsel %vm2017, 0.0, %v1994
        %v2019 = vsel %vm2017, 0.0, %v1996
        %v2020 = vsel %vm2017, 0.0, %v1998
        %v2021 = vsel %vm2017, 0.0, %v2000
        %v2022 = vsel %vm2017, 0.0, %v2002
        %v2023 = vsel %vm2017, 0.0, %v2004
        %v2024 = vsel %vm2017, 0.0, %v2006
        %v2025 = vsel %vm2017, 0.0, %v2008
        %vm2026 = vcmask 72704
        %v2027 = vsel %vm2026, %v2018, 0.0
        %v2028 = vsel %vm2026, %v2019, 0.0
        %v2029 = vsel %vm2026, %v2020, 0.0
        %v2030 = vsel %vm2026, %v2021, 0.0
        %v2031 = vsel %vm2026, %v2022, 0.0
        %v2032 = vsel %vm2026, %v2023, 0.0
        %v2033 = vsel %vm2026, %v2024, 0.0
        %v2034 = vsel %vm2026, %v2025, 0.0
        %v2035 = vcombine.low %v2027, %v2031
        %v2036 = vcombine.high %v2027, %v2031
        %v2038 = vunpack.c.l.s4 1983009808
        %v2039 = vunpack.c.0.s8 %v2038
        %v2040 = vlaneseq
        %v2041 = vshrl.u32 %v2040, 7
        %v2042 = vsub.s32 %v2039, %v2041
        %v2043 = vrot.slane %v2035, %v2042
        %v2045 = vunpack.c.l.s4 1983009808
        %v2046 = vunpack.c.0.s8 %v2045
        %v2047 = vlaneseq
        %v2048 = vshrl.u32 %v2047, 7
        %v2049 = vsub.s32 %v2046, %v2048
        %v2050 = vrot.slane %v2036, %v2049
        %v2051 = vcombine.low %v2029, %v2033
        %v2052 = vcombine.high %v2029, %v2033
        %v2054 = vunpack.c.l.s4 1983009808
        %v2055 = vunpack.c.0.s8 %v2054
        %v2056 = vlaneseq
        %v2057 = vshrl.u32 %v2056, 7
        %v2058 = vsub.s32 %v2055, %v2057
        %v2059 = vrot.slane %v2051, %v2058
        %v2061 = vunpack.c.l.s4 1983009808
        %v2062 = vunpack.c.0.s8 %v2061
        %v2063 = vlaneseq
        %v2064 = vshrl.u32 %v2063, 7
        %v2065 = vsub.s32 %v2062, %v2064
        %v2066 = vrot.slane %v2052, %v2065
        %v2067 = vcombine.low %v2043, %v2059
        %v2068 = vcombine.high %v2043, %v2059
        %v2070 = vunpack.c.l.s4 1934713408
        %v2071 = vunpack.c.0.s8 %v2070
        %v2072 = vlaneseq
        %v2073 = vshrl.u32 %v2072, 7
        %v2074 = vsub.s32 %v2071, %v2073
        %v2075 = vrot.slane %v2067, %v2074
        %v2077 = vunpack.c.l.s4 1934713408
        %v2078 = vunpack.c.0.s8 %v2077
        %v2079 = vlaneseq
        %v2080 = vshrl.u32 %v2079, 7
        %v2081 = vsub.s32 %v2078, %v2080
        %v2082 = vrot.slane %v2068, %v2081
        %v2083 = vcombine.low %v2050, %v2066
        %v2084 = vcombine.high %v2050, %v2066
        %v2086 = vunpack.c.l.s4 1934713408
        %v2087 = vunpack.c.0.s8 %v2086
        %v2088 = vlaneseq
        %v2089 = vshrl.u32 %v2088, 7
        %v2090 = vsub.s32 %v2087, %v2089
        %v2091 = vrot.slane %v2083, %v2090
        %v2093 = vunpack.c.l.s4 1934713408
        %v2094 = vunpack.c.0.s8 %v2093
        %v2095 = vlaneseq
        %v2096 = vshrl.u32 %v2095, 7
        %v2097 = vsub.s32 %v2094, %v2096
        %v2098 = vrot.slane %v2084, %v2097
        %v2099 = vcombine.high %v2075, 0.0
        %v2100 = vcombine.high %v2082, 0.0
        %v2101 = vcombine.high %v2091, 0.0
        %v2102 = vcombine.high %v2098, 0.0
        %2104 = vrot.lane.b32.xlu0 %v2099, 8
        %v2105 = vpop.permute.xlu0 %2104
        %2108 = vrot.lane.b32.xlu0 %v2082, 16
        %v2109 = vpop.permute.xlu0 %2108
        %2112 = vrot.lane.b32.xlu0 %v2100, 24
        %v2113 = vpop.permute.xlu0 %2112
        %2116 = vrot.lane.b32.xlu0 %v2091, 32
        %v2117 = vpop.permute.xlu0 %2116
        %2120 = vrot.lane.b32.xlu0 %v2101, 40
        %v2121 = vpop.permute.xlu0 %2120
        %2124 = vrot.lane.b32.xlu0 %v2098, 48
        %v2125 = vpop.permute.xlu0 %2124
        %2128 = vrot.lane.b32.xlu0 %v2102, 56
        %v2129 = vpop.permute.xlu0 %2128
        %vm2131 = vcmask 64512
        %v2132 = vsel %vm2131, %v2075, %v2105
        %vm2133 = vcmask 130048
        %v2134 = vsel %vm2133, %v2132, %v2109
        %vm2135 = vcmask 195584
        %v2136 = vsel %vm2135, %v2134, %v2113
        %vm2137 = vcmask 261120
        %v2138 = vsel %vm2137, %v2136, %v2117
        %vm2139 = vcmask 326656
        %v2140 = vsel %vm2139, %v2138, %v2121
        %vm2141 = vcmask 392192
        %v2142 = vsel %vm2141, %v2140, %v2125
        %vm2143 = vcmask 457728
        %v2144 = vsel %vm2143, %v2142, %v2129
        %v2145 = vld [vmem:[%s1] sm:$0xff]
        %2147 = vset.pattern.permute.xlu0 0
        %2148 = vperm.xlu0 %2147, %v2145
        %v2149 = vpop.permute.xlu0 %2148
        %v2151 = vlaneseq
        %v2152 = vshrl.u32 %v2151, 7
        %v2153 = vsub.s32 0, %v2152
        %v2154 = vrot.slane %v2144, %v2153
        %v2155 = vmul.f32 %v2149, %v2154
        %v2156 = vadd.f32 %v2155, 0.0
        %2157 = vset.pattern.permute.xlu0 1
        %2158 = vperm.xlu0 %2157, %v2145
        %v2159 = vpop.permute.xlu0 %2158
        %v2161 = vlaneseq
        %v2162 = vshrl.u32 %v2161, 7
        %v2163 = vsub.s32 1, %v2162
        %v2164 = vrot.slane %v2144, %v2163
        %v2165 = vmul.f32 %v2159, %v2164
        %v2166 = vadd.f32 %v2156, %v2165
        %2167 = vset.pattern.permute.xlu0 2
        %2168 = vperm.xlu0 %2167, %v2145
        %v2169 = vpop.permute.xlu0 %2168
        %v2171 = vlaneseq
        %v2172 = vshrl.u32 %v2171, 7
        %v2173 = vsub.s32 2, %v2172
        %v2174 = vrot.slane %v2144, %v2173
        %v2175 = vmul.f32 %v2169, %v2174
        %v2176 = vadd.f32 %v2166, %v2175
        %2177 = vset.pattern.permute.xlu0 3
        %2178 = vperm.xlu0 %2177, %v2145
        %v2179 = vpop.permute.xlu0 %2178
        %v2181 = vlaneseq
        %v2182 = vshrl.u32 %v2181, 7
        %v2183 = vsub.s32 3, %v2182
        %v2184 = vrot.slane %v2144, %v2183
        %v2185 = vmul.f32 %v2179, %v2184
        %v2186 = vadd.f32 %v2176, %v2185
        %2191 = vrot.lane.b32.xlu0 %v2027, 127
        %v2192 = vpop.permute.xlu0 %2191
        %2193 = vrot.lane.b32.xlu0 %v2029, 127
        %v2194 = vpop.permute.xlu0 %2193
        %2195 = vrot.lane.b32.xlu0 %v2031, 127
        %v2196 = vpop.permute.xlu0 %2195
        %2197 = vrot.lane.b32.xlu0 %v2033, 127
        %v2198 = vpop.permute.xlu0 %2197
        %v2203 = vcombine.low %v2192, %v2196
        %v2204 = vcombine.high %v2192, %v2196
        %v2206 = vunpack.c.l.s4 1983009808
        %v2207 = vunpack.c.0.s8 %v2206
        %v2208 = vlaneseq
        %v2209 = vshrl.u32 %v2208, 7
        %v2210 = vsub.s32 %v2207, %v2209
        %v2211 = vrot.slane %v2203, %v2210
        %v2213 = vunpack.c.l.s4 1983009808
        %v2214 = vunpack.c.0.s8 %v2213
        %v2215 = vlaneseq
        %v2216 = vshrl.u32 %v2215, 7
        %v2217 = vsub.s32 %v2214, %v2216
        %v2218 = vrot.slane %v2204, %v2217
        %v2219 = vcombine.low %v2194, %v2198
        %v2220 = vcombine.high %v2194, %v2198
        %v2222 = vunpack.c.l.s4 1983009808
        %v2223 = vunpack.c.0.s8 %v2222
        %v2224 = vlaneseq
        %v2225 = vshrl.u32 %v2224, 7
        %v2226 = vsub.s32 %v2223, %v2225
        %v2227 = vrot.slane %v2219, %v2226
        %v2229 = vunpack.c.l.s4 1983009808
        %v2230 = vunpack.c.0.s8 %v2229
        %v2231 = vlaneseq
        %v2232 = vshrl.u32 %v2231, 7
        %v2233 = vsub.s32 %v2230, %v2232
        %v2234 = vrot.slane %v2220, %v2233
        %v2235 = vcombine.low %v2211, %v2227
        %v2236 = vcombine.high %v2211, %v2227
        %v2238 = vunpack.c.l.s4 1934713408
        %v2239 = vunpack.c.0.s8 %v2238
        %v2240 = vlaneseq
        %v2241 = vshrl.u32 %v2240, 7
        %v2242 = vsub.s32 %v2239, %v2241
        %v2243 = vrot.slane %v2235, %v2242
        %v2245 = vunpack.c.l.s4 1934713408
        %v2246 = vunpack.c.0.s8 %v2245
        %v2247 = vlaneseq
        %v2248 = vshrl.u32 %v2247, 7
        %v2249 = vsub.s32 %v2246, %v2248
        %v2250 = vrot.slane %v2236, %v2249
        %v2251 = vcombine.low %v2218, %v2234
        %v2252 = vcombine.high %v2218, %v2234
        %v2254 = vunpack.c.l.s4 1934713408
        %v2255 = vunpack.c.0.s8 %v2254
        %v2256 = vlaneseq
        %v2257 = vshrl.u32 %v2256, 7
        %v2258 = vsub.s32 %v2255, %v2257
        %v2259 = vrot.slane %v2251, %v2258
        %v2261 = vunpack.c.l.s4 1934713408
        %v2262 = vunpack.c.0.s8 %v2261
        %v2263 = vlaneseq
        %v2264 = vshrl.u32 %v2263, 7
        %v2265 = vsub.s32 %v2262, %v2264
        %v2266 = vrot.slane %v2252, %v2265
        %v2267 = vcombine.high %v2243, 0.0
        %v2268 = vcombine.high %v2250, 0.0
        %v2269 = vcombine.high %v2259, 0.0
        %v2270 = vcombine.high %v2266, 0.0
        %2272 = vrot.lane.b32.xlu0 %v2267, 8
        %v2273 = vpop.permute.xlu0 %2272
        %2276 = vrot.lane.b32.xlu0 %v2250, 16
        %v2277 = vpop.permute.xlu0 %2276
        %2280 = vrot.lane.b32.xlu0 %v2268, 24
        %v2281 = vpop.permute.xlu0 %2280
        %2284 = vrot.lane.b32.xlu0 %v2259, 32
        %v2285 = vpop.permute.xlu0 %2284
        %2288 = vrot.lane.b32.xlu0 %v2269, 40
        %v2289 = vpop.permute.xlu0 %2288
        %2292 = vrot.lane.b32.xlu0 %v2266, 48
        %v2293 = vpop.permute.xlu0 %2292
        %2296 = vrot.lane.b32.xlu0 %v2270, 56
        %v2297 = vpop.permute.xlu0 %2296
        %v2299 = vsel %vm2131, %v2243, %v2273
        %v2300 = vsel %vm2133, %v2299, %v2277
        %v2301 = vsel %vm2135, %v2300, %v2281
        %v2302 = vsel %vm2137, %v2301, %v2285
        %v2303 = vsel %vm2139, %v2302, %v2289
        %v2304 = vsel %vm2141, %v2303, %v2293
        %v2305 = vsel %vm2143, %v2304, %v2297
        %s2306 = scalar_lea.vmem %s1, 8
        %v2307 = vld [vmem:[%s2306] sm:$0xff]
        %2309 = vset.pattern.permute.xlu0 0
        %2310 = vperm.xlu0 %2309, %v2307
        %v2311 = vpop.permute.xlu0 %2310
        %v2313 = vlaneseq
        %v2314 = vshrl.u32 %v2313, 7
        %v2315 = vsub.s32 0, %v2314
        %v2316 = vrot.slane %v2305, %v2315
        %v2317 = vmul.f32 %v2311, %v2316
        %v2318 = vadd.f32 %v2186, %v2317
        %2319 = vset.pattern.permute.xlu0 1
        %2320 = vperm.xlu0 %2319, %v2307
        %v2321 = vpop.permute.xlu0 %2320
        %v2323 = vlaneseq
        %v2324 = vshrl.u32 %v2323, 7
        %v2325 = vsub.s32 1, %v2324
        %v2326 = vrot.slane %v2305, %v2325
        %v2327 = vmul.f32 %v2321, %v2326
        %v2328 = vadd.f32 %v2318, %v2327
        %2329 = vset.pattern.permute.xlu0 2
        %2330 = vperm.xlu0 %2329, %v2307
        %v2331 = vpop.permute.xlu0 %2330
        %v2333 = vlaneseq
        %v2334 = vshrl.u32 %v2333, 7
        %v2335 = vsub.s32 2, %v2334
        %v2336 = vrot.slane %v2305, %v2335
        %v2337 = vmul.f32 %v2331, %v2336
        %v2338 = vadd.f32 %v2328, %v2337
        %2339 = vset.pattern.permute.xlu0 3
        %2340 = vperm.xlu0 %2339, %v2307
        %v2341 = vpop.permute.xlu0 %2340
        %v2343 = vlaneseq
        %v2344 = vshrl.u32 %v2343, 7
        %v2345 = vsub.s32 3, %v2344
        %v2346 = vrot.slane %v2305, %v2345
        %v2347 = vmul.f32 %v2341, %v2346
        %v2348 = vadd.f32 %v2338, %v2347
        %2349 = vrot.lane.b32.xlu0 %v2027, 126
        %v2350 = vpop.permute.xlu0 %2349
        %2351 = vrot.lane.b32.xlu0 %v2029, 126
        %v2352 = vpop.permute.xlu0 %2351
        %2353 = vrot.lane.b32.xlu0 %v2031, 126
        %v2354 = vpop.permute.xlu0 %2353
        %2355 = vrot.lane.b32.xlu0 %v2033, 126
        %v2356 = vpop.permute.xlu0 %2355
        %v2361 = vcombine.low %v2350, %v2354
        %v2362 = vcombine.high %v2350, %v2354
        %v2364 = vunpack.c.l.s4 1983009808
        %v2365 = vunpack.c.0.s8 %v2364
        %v2366 = vlaneseq
        %v2367 = vshrl.u32 %v2366, 7
        %v2368 = vsub.s32 %v2365, %v2367
        %v2369 = vrot.slane %v2361, %v2368
        %v2371 = vunpack.c.l.s4 1983009808
        %v2372 = vunpack.c.0.s8 %v2371
        %v2373 = vlaneseq
        %v2374 = vshrl.u32 %v2373, 7
        %v2375 = vsub.s32 %v2372, %v2374
        %v2376 = vrot.slane %v2362, %v2375
        %v2377 = vcombine.low %v2352, %v2356
        %v2378 = vcombine.high %v2352, %v2356
        %v2380 = vunpack.c.l.s4 1983009808
        %v2381 = vunpack.c.0.s8 %v2380
        %v2382 = vlaneseq
        %v2383 = vshrl.u32 %v2382, 7
        %v2384 = vsub.s32 %v2381, %v2383
        %v2385 = vrot.slane %v2377, %v2384
        %v2387 = vunpack.c.l.s4 1983009808
        %v2388 = vunpack.c.0.s8 %v2387
        %v2389 = vlaneseq
        %v2390 = vshrl.u32 %v2389, 7
        %v2391 = vsub.s32 %v2388, %v2390
        %v2392 = vrot.slane %v2378, %v2391
        %v2393 = vcombine.low %v2369, %v2385
        %v2394 = vcombine.high %v2369, %v2385
        %v2396 = vunpack.c.l.s4 1934713408
        %v2397 = vunpack.c.0.s8 %v2396
        %v2398 = vlaneseq
        %v2399 = vshrl.u32 %v2398, 7
        %v2400 = vsub.s32 %v2397, %v2399
        %v2401 = vrot.slane %v2393, %v2400
        %v2403 = vunpack.c.l.s4 1934713408
        %v2404 = vunpack.c.0.s8 %v2403
        %v2405 = vlaneseq
        %v2406 = vshrl.u32 %v2405, 7
        %v2407 = vsub.s32 %v2404, %v2406
        %v2408 = vrot.slane %v2394, %v2407
        %v2409 = vcombine.low %v2376, %v2392
        %v2410 = vcombine.high %v2376, %v2392
        %v2412 = vunpack.c.l.s4 1934713408
        %v2413 = vunpack.c.0.s8 %v2412
        %v2414 = vlaneseq
        %v2415 = vshrl.u32 %v2414, 7
        %v2416 = vsub.s32 %v2413, %v2415
        %v2417 = vrot.slane %v2409, %v2416
        %v2419 = vunpack.c.l.s4 1934713408
        %v2420 = vunpack.c.0.s8 %v2419
        %v2421 = vlaneseq
        %v2422 = vshrl.u32 %v2421, 7
        %v2423 = vsub.s32 %v2420, %v2422
        %v2424 = vrot.slane %v2410, %v2423
        %v2425 = vcombine.high %v2401, 0.0
        %v2426 = vcombine.high %v2408, 0.0
        %v2427 = vcombine.high %v2417, 0.0
        %v2428 = vcombine.high %v2424, 0.0
        %2430 = vrot.lane.b32.xlu0 %v2425, 8
        %v2431 = vpop.permute.xlu0 %2430
        %2434 = vrot.lane.b32.xlu0 %v2408, 16
        %v2435 = vpop.permute.xlu0 %2434
        %2438 = vrot.lane.b32.xlu0 %v2426, 24
        %v2439 = vpop.permute.xlu0 %2438
        %2442 = vrot.lane.b32.xlu0 %v2417, 32
        %v2443 = vpop.permute.xlu0 %2442
        %2446 = vrot.lane.b32.xlu0 %v2427, 40
        %v2447 = vpop.permute.xlu0 %2446
        %2450 = vrot.lane.b32.xlu0 %v2424, 48
        %v2451 = vpop.permute.xlu0 %2450
        %2454 = vrot.lane.b32.xlu0 %v2428, 56
        %v2455 = vpop.permute.xlu0 %2454
        %v2457 = vsel %vm2131, %v2401, %v2431
        %v2458 = vsel %vm2133, %v2457, %v2435
        %v2459 = vsel %vm2135, %v2458, %v2439
        %v2460 = vsel %vm2137, %v2459, %v2443
        %v2461 = vsel %vm2139, %v2460, %v2447
        %v2462 = vsel %vm2141, %v2461, %v2451
        %v2463 = vsel %vm2143, %v2462, %v2455
        %s2464 = scalar_lea.vmem %s1, 16
        %v2465 = vld [vmem:[%s2464] sm:$0xff]
        %2467 = vset.pattern.permute.xlu0 0
        %2468 = vperm.xlu0 %2467, %v2465
        %v2469 = vpop.permute.xlu0 %2468
        %v2471 = vlaneseq
        %v2472 = vshrl.u32 %v2471, 7
        %v2473 = vsub.s32 0, %v2472
        %v2474 = vrot.slane %v2463, %v2473
        %v2475 = vmul.f32 %v2469, %v2474
        %v2476 = vadd.f32 %v2348, %v2475
        %2477 = vset.pattern.permute.xlu0 1
        %2478 = vperm.xlu0 %2477, %v2465
        %v2479 = vpop.permute.xlu0 %2478
        %v2481 = vlaneseq
        %v2482 = vshrl.u32 %v2481, 7
        %v2483 = vsub.s32 1, %v2482
        %v2484 = vrot.slane %v2463, %v2483
        %v2485 = vmul.f32 %v2479, %v2484
        %v2486 = vadd.f32 %v2476, %v2485
        %2487 = vset.pattern.permute.xlu0 2
        %2488 = vperm.xlu0 %2487, %v2465
        %v2489 = vpop.permute.xlu0 %2488
        %v2491 = vlaneseq
        %v2492 = vshrl.u32 %v2491, 7
        %v2493 = vsub.s32 2, %v2492
        %v2494 = vrot.slane %v2463, %v2493
        %v2495 = vmul.f32 %v2489, %v2494
        %v2496 = vadd.f32 %v2486, %v2495
        %2497 = vset.pattern.permute.xlu0 3
        %2498 = vperm.xlu0 %2497, %v2465
        %v2499 = vpop.permute.xlu0 %2498
        %v2501 = vlaneseq
        %v2502 = vshrl.u32 %v2501, 7
        %v2503 = vsub.s32 3, %v2502
        %v2504 = vrot.slane %v2463, %v2503
        %v2505 = vmul.f32 %v2499, %v2504
        %v2506 = vadd.f32 %v2496, %v2505
        %vm2511 = vcmask 1046528
        %v2512 = vrot.slane %v2027, 1
        %v2513 = vrot.slane %v2028, 1
        %v2514 = vsel %vm2511, %v2512, %v2513
        %v2515 = vrot.slane %v2029, 1
        %v2516 = vrot.slane %v2030, 1
        %v2517 = vsel %vm2511, %v2515, %v2516
        %v2518 = vrot.slane %v2031, 1
        %v2519 = vrot.slane %v2032, 1
        %v2520 = vsel %vm2511, %v2518, %v2519
        %v2521 = vrot.slane %v2033, 1
        %v2522 = vrot.slane %v2034, 1
        %v2523 = vsel %vm2511, %v2521, %v2522
        %v2528 = vcombine.low %v2514, %v2520
        %v2529 = vcombine.high %v2514, %v2520
        %v2531 = vunpack.c.l.s4 1983009808
        %v2532 = vunpack.c.0.s8 %v2531
        %v2533 = vlaneseq
        %v2534 = vshrl.u32 %v2533, 7
        %v2535 = vsub.s32 %v2532, %v2534
        %v2536 = vrot.slane %v2528, %v2535
        %v2538 = vunpack.c.l.s4 1983009808
        %v2539 = vunpack.c.0.s8 %v2538
        %v2540 = vlaneseq
        %v2541 = vshrl.u32 %v2540, 7
        %v2542 = vsub.s32 %v2539, %v2541
        %v2543 = vrot.slane %v2529, %v2542
        %v2544 = vcombine.low %v2517, %v2523
        %v2545 = vcombine.high %v2517, %v2523
        %v2547 = vunpack.c.l.s4 1983009808
        %v2548 = vunpack.c.0.s8 %v2547
        %v2549 = vlaneseq
        %v2550 = vshrl.u32 %v2549, 7
        %v2551 = vsub.s32 %v2548, %v2550
        %v2552 = vrot.slane %v2544, %v2551
        %v2554 = vunpack.c.l.s4 1983009808
        %v2555 = vunpack.c.0.s8 %v2554
        %v2556 = vlaneseq
        %v2557 = vshrl.u32 %v2556, 7
        %v2558 = vsub.s32 %v2555, %v2557
        %v2559 = vrot.slane %v2545, %v2558
        %v2560 = vcombine.low %v2536, %v2552
        %v2561 = vcombine.high %v2536, %v2552
        %v2563 = vunpack.c.l.s4 1934713408
        %v2564 = vunpack.c.0.s8 %v2563
        %v2565 = vlaneseq
        %v2566 = vshrl.u32 %v2565, 7
        %v2567 = vsub.s32 %v2564, %v2566
        %v2568 = vrot.slane %v2560, %v2567
        %v2570 = vunpack.c.l.s4 1934713408
        %v2571 = vunpack.c.0.s8 %v2570
        %v2572 = vlaneseq
        %v2573 = vshrl.u32 %v2572, 7
        %v2574 = vsub.s32 %v2571, %v2573
        %v2575 = vrot.slane %v2561, %v2574
        %v2576 = vcombine.low %v2543, %v2559
        %v2577 = vcombine.high %v2543, %v2559
        %v2579 = vunpack.c.l.s4 1934713408
        %v2580 = vunpack.c.0.s8 %v2579
        %v2581 = vlaneseq
        %v2582 = vshrl.u32 %v2581, 7
        %v2583 = vsub.s32 %v2580, %v2582
        %v2584 = vrot.slane %v2576, %v2583
        %v2586 = vunpack.c.l.s4 1934713408
        %v2587 = vunpack.c.0.s8 %v2586
        %v2588 = vlaneseq
        %v2589 = vshrl.u32 %v2588, 7
        %v2590 = vsub.s32 %v2587, %v2589
        %v2591 = vrot.slane %v2577, %v2590
        %v2592 = vcombine.high %v2568, 0.0
        %v2593 = vcombine.high %v2575, 0.0
        %v2594 = vcombine.high %v2584, 0.0
        %v2595 = vcombine.high %v2591, 0.0
        %2597 = vrot.lane.b32.xlu0 %v2592, 8
        %v2598 = vpop.permute.xlu0 %2597
        %2601 = vrot.lane.b32.xlu0 %v2575, 16
        %v2602 = vpop.permute.xlu0 %2601
        %2605 = vrot.lane.b32.xlu0 %v2593, 24
        %v2606 = vpop.permute.xlu0 %2605
        %2609 = vrot.lane.b32.xlu0 %v2584, 32
        %v2610 = vpop.permute.xlu0 %2609
        %2613 = vrot.lane.b32.xlu0 %v2594, 40
        %v2614 = vpop.permute.xlu0 %2613
        %2617 = vrot.lane.b32.xlu0 %v2591, 48
        %v2618 = vpop.permute.xlu0 %2617
        %2621 = vrot.lane.b32.xlu0 %v2595, 56
        %v2622 = vpop.permute.xlu0 %2621
        %v2624 = vsel %vm2131, %v2568, %v2598
        %v2625 = vsel %vm2133, %v2624, %v2602
        %v2626 = vsel %vm2135, %v2625, %v2606
        %v2627 = vsel %vm2137, %v2626, %v2610
        %v2628 = vsel %vm2139, %v2627, %v2614
        %v2629 = vsel %vm2141, %v2628, %v2618
        %v2630 = vsel %vm2143, %v2629, %v2622
        %s2631 = scalar_lea.vmem %s1, 24
        %v2632 = vld [vmem:[%s2631] sm:$0xff]
        %2634 = vset.pattern.permute.xlu0 0
        %2635 = vperm.xlu0 %2634, %v2632
        %v2636 = vpop.permute.xlu0 %2635
        %v2638 = vlaneseq
        %v2639 = vshrl.u32 %v2638, 7
        %v2640 = vsub.s32 0, %v2639
        %v2641 = vrot.slane %v2630, %v2640
        %v2642 = vmul.f32 %v2636, %v2641
        %v2643 = vadd.f32 %v2506, %v2642
        %2644 = vset.pattern.permute.xlu0 1
        %2645 = vperm.xlu0 %2644, %v2632
        %v2646 = vpop.permute.xlu0 %2645
        %v2648 = vlaneseq
        %v2649 = vshrl.u32 %v2648, 7
        %v2650 = vsub.s32 1, %v2649
        %v2651 = vrot.slane %v2630, %v2650
        %v2652 = vmul.f32 %v2646, %v2651
        %v2653 = vadd.f32 %v2643, %v2652
        %2654 = vset.pattern.permute.xlu0 2
        %2655 = vperm.xlu0 %2654, %v2632
        %v2656 = vpop.permute.xlu0 %2655
        %v2658 = vlaneseq
        %v2659 = vshrl.u32 %v2658, 7
        %v2660 = vsub.s32 2, %v2659
        %v2661 = vrot.slane %v2630, %v2660
        %v2662 = vmul.f32 %v2656, %v2661
        %v2663 = vadd.f32 %v2653, %v2662
        %2664 = vset.pattern.permute.xlu0 3
        %2665 = vperm.xlu0 %2664, %v2632
        %v2666 = vpop.permute.xlu0 %2665
        %v2668 = vlaneseq
        %v2669 = vshrl.u32 %v2668, 7
        %v2670 = vsub.s32 3, %v2669
        %v2671 = vrot.slane %v2630, %v2670
        %v2672 = vmul.f32 %v2666, %v2671
        %v2673 = vadd.f32 %v2663, %v2672
        %2674 = vrot.lane.b32.xlu0 %v2514, 127
        %v2675 = vpop.permute.xlu0 %2674
        %2676 = vrot.lane.b32.xlu0 %v2517, 127
        %v2677 = vpop.permute.xlu0 %2676
        %2678 = vrot.lane.b32.xlu0 %v2520, 127
        %v2679 = vpop.permute.xlu0 %2678
        %2680 = vrot.lane.b32.xlu0 %v2523, 127
        %v2681 = vpop.permute.xlu0 %2680
        %v2686 = vcombine.low %v2675, %v2679
        %v2687 = vcombine.high %v2675, %v2679
        %v2689 = vunpack.c.l.s4 1983009808
        %v2690 = vunpack.c.0.s8 %v2689
        %v2691 = vlaneseq
        %v2692 = vshrl.u32 %v2691, 7
        %v2693 = vsub.s32 %v2690, %v2692
        %v2694 = vrot.slane %v2686, %v2693
        %v2696 = vunpack.c.l.s4 1983009808
        %v2697 = vunpack.c.0.s8 %v2696
        %v2698 = vlaneseq
        %v2699 = vshrl.u32 %v2698, 7
        %v2700 = vsub.s32 %v2697, %v2699
        %v2701 = vrot.slane %v2687, %v2700
        %v2702 = vcombine.low %v2677, %v2681
        %v2703 = vcombine.high %v2677, %v2681
        %v2705 = vunpack.c.l.s4 1983009808
        %v2706 = vunpack.c.0.s8 %v2705
        %v2707 = vlaneseq
        %v2708 = vshrl.u32 %v2707, 7
        %v2709 = vsub.s32 %v2706, %v2708
        %v2710 = vrot.slane %v2702, %v2709
        %v2712 = vunpack.c.l.s4 1983009808
        %v2713 = vunpack.c.0.s8 %v2712
        %v2714 = vlaneseq
        %v2715 = vshrl.u32 %v2714, 7
        %v2716 = vsub.s32 %v2713, %v2715
        %v2717 = vrot.slane %v2703, %v2716
        %v2718 = vcombine.low %v2694, %v2710
        %v2719 = vcombine.high %v2694, %v2710
        %v2721 = vunpack.c.l.s4 1934713408
        %v2722 = vunpack.c.0.s8 %v2721
        %v2723 = vlaneseq
        %v2724 = vshrl.u32 %v2723, 7
        %v2725 = vsub.s32 %v2722, %v2724
        %v2726 = vrot.slane %v2718, %v2725
        %v2728 = vunpack.c.l.s4 1934713408
        %v2729 = vunpack.c.0.s8 %v2728
        %v2730 = vlaneseq
        %v2731 = vshrl.u32 %v2730, 7
        %v2732 = vsub.s32 %v2729, %v2731
        %v2733 = vrot.slane %v2719, %v2732
        %v2734 = vcombine.low %v2701, %v2717
        %v2735 = vcombine.high %v2701, %v2717
        %v2737 = vunpack.c.l.s4 1934713408
        %v2738 = vunpack.c.0.s8 %v2737
        %v2739 = vlaneseq
        %v2740 = vshrl.u32 %v2739, 7
        %v2741 = vsub.s32 %v2738, %v2740
        %v2742 = vrot.slane %v2734, %v2741
        %v2744 = vunpack.c.l.s4 1934713408
        %v2745 = vunpack.c.0.s8 %v2744
        %v2746 = vlaneseq
        %v2747 = vshrl.u32 %v2746, 7
        %v2748 = vsub.s32 %v2745, %v2747
        %v2749 = vrot.slane %v2735, %v2748
        %v2750 = vcombine.high %v2726, 0.0
        %v2751 = vcombine.high %v2733, 0.0
        %v2752 = vcombine.high %v2742, 0.0
        %v2753 = vcombine.high %v2749, 0.0
        %2755 = vrot.lane.b32.xlu0 %v2750, 8
        %v2756 = vpop.permute.xlu0 %2755
        %2759 = vrot.lane.b32.xlu0 %v2733, 16
        %v2760 = vpop.permute.xlu0 %2759
        %2763 = vrot.lane.b32.xlu0 %v2751, 24
        %v2764 = vpop.permute.xlu0 %2763
        %2767 = vrot.lane.b32.xlu0 %v2742, 32
        %v2768 = vpop.permute.xlu0 %2767
        %2771 = vrot.lane.b32.xlu0 %v2752, 40
        %v2772 = vpop.permute.xlu0 %2771
        %2775 = vrot.lane.b32.xlu0 %v2749, 48
        %v2776 = vpop.permute.xlu0 %2775
        %2779 = vrot.lane.b32.xlu0 %v2753, 56
        %v2780 = vpop.permute.xlu0 %2779
        %v2782 = vsel %vm2131, %v2726, %v2756
        %v2783 = vsel %vm2133, %v2782, %v2760
        %v2784 = vsel %vm2135, %v2783, %v2764
        %v2785 = vsel %vm2137, %v2784, %v2768
        %v2786 = vsel %vm2139, %v2785, %v2772
        %v2787 = vsel %vm2141, %v2786, %v2776
        %v2788 = vsel %vm2143, %v2787, %v2780
        %s2789 = scalar_lea.vmem %s1, 32
        %v2790 = vld [vmem:[%s2789] sm:$0xff]
        %2792 = vset.pattern.permute.xlu0 0
        %2793 = vperm.xlu0 %2792, %v2790
        %v2794 = vpop.permute.xlu0 %2793
        %v2796 = vlaneseq
        %v2797 = vshrl.u32 %v2796, 7
        %v2798 = vsub.s32 0, %v2797
        %v2799 = vrot.slane %v2788, %v2798
        %v2800 = vmul.f32 %v2794, %v2799
        %v2801 = vadd.f32 %v2673, %v2800
        %2802 = vset.pattern.permute.xlu0 1
        %2803 = vperm.xlu0 %2802, %v2790
        %v2804 = vpop.permute.xlu0 %2803
        %v2806 = vlaneseq
        %v2807 = vshrl.u32 %v2806, 7
        %v2808 = vsub.s32 1, %v2807
        %v2809 = vrot.slane %v2788, %v2808
        %v2810 = vmul.f32 %v2804, %v2809
        %v2811 = vadd.f32 %v2801, %v2810
        %2812 = vset.pattern.permute.xlu0 2
        %2813 = vperm.xlu0 %2812, %v2790
        %v2814 = vpop.permute.xlu0 %2813
        %v2816 = vlaneseq
        %v2817 = vshrl.u32 %v2816, 7
        %v2818 = vsub.s32 2, %v2817
        %v2819 = vrot.slane %v2788, %v2818
        %v2820 = vmul.f32 %v2814, %v2819
        %v2821 = vadd.f32 %v2811, %v2820
        %2822 = vset.pattern.permute.xlu0 3
        %2823 = vperm.xlu0 %2822, %v2790
        %v2824 = vpop.permute.xlu0 %2823
        %v2826 = vlaneseq
        %v2827 = vshrl.u32 %v2826, 7
        %v2828 = vsub.s32 3, %v2827
        %v2829 = vrot.slane %v2788, %v2828
        %v2830 = vmul.f32 %v2824, %v2829
        %v2831 = vadd.f32 %v2821, %v2830
        %2832 = vrot.lane.b32.xlu0 %v2514, 126
        %v2833 = vpop.permute.xlu0 %2832
        %2834 = vrot.lane.b32.xlu0 %v2517, 126
        %v2835 = vpop.permute.xlu0 %2834
        %2836 = vrot.lane.b32.xlu0 %v2520, 126
        %v2837 = vpop.permute.xlu0 %2836
        %2838 = vrot.lane.b32.xlu0 %v2523, 126
        %v2839 = vpop.permute.xlu0 %2838
        %v2844 = vcombine.low %v2833, %v2837
        %v2845 = vcombine.high %v2833, %v2837
        %v2847 = vunpack.c.l.s4 1983009808
        %v2848 = vunpack.c.0.s8 %v2847
        %v2849 = vlaneseq
        %v2850 = vshrl.u32 %v2849, 7
        %v2851 = vsub.s32 %v2848, %v2850
        %v2852 = vrot.slane %v2844, %v2851
        %v2854 = vunpack.c.l.s4 1983009808
        %v2855 = vunpack.c.0.s8 %v2854
        %v2856 = vlaneseq
        %v2857 = vshrl.u32 %v2856, 7
        %v2858 = vsub.s32 %v2855, %v2857
        %v2859 = vrot.slane %v2845, %v2858
        %v2860 = vcombine.low %v2835, %v2839
        %v2861 = vcombine.high %v2835, %v2839
        %v2863 = vunpack.c.l.s4 1983009808
        %v2864 = vunpack.c.0.s8 %v2863
        %v2865 = vlaneseq
        %v2866 = vshrl.u32 %v2865, 7
        %v2867 = vsub.s32 %v2864, %v2866
        %v2868 = vrot.slane %v2860, %v2867
        %v2870 = vunpack.c.l.s4 1983009808
        %v2871 = vunpack.c.0.s8 %v2870
        %v2872 = vlaneseq
        %v2873 = vshrl.u32 %v2872, 7
        %v2874 = vsub.s32 %v2871, %v2873
        %v2875 = vrot.slane %v2861, %v2874
        %v2876 = vcombine.low %v2852, %v2868
        %v2877 = vcombine.high %v2852, %v2868
        %v2879 = vunpack.c.l.s4 1934713408
        %v2880 = vunpack.c.0.s8 %v2879
        %v2881 = vlaneseq
        %v2882 = vshrl.u32 %v2881, 7
        %v2883 = vsub.s32 %v2880, %v2882
        %v2884 = vrot.slane %v2876, %v2883
        %v2886 = vunpack.c.l.s4 1934713408
        %v2887 = vunpack.c.0.s8 %v2886
        %v2888 = vlaneseq
        %v2889 = vshrl.u32 %v2888, 7
        %v2890 = vsub.s32 %v2887, %v2889
        %v2891 = vrot.slane %v2877, %v2890
        %v2892 = vcombine.low %v2859, %v2875
        %v2893 = vcombine.high %v2859, %v2875
        %v2895 = vunpack.c.l.s4 1934713408
        %v2896 = vunpack.c.0.s8 %v2895
        %v2897 = vlaneseq
        %v2898 = vshrl.u32 %v2897, 7
        %v2899 = vsub.s32 %v2896, %v2898
        %v2900 = vrot.slane %v2892, %v2899
        %v2902 = vunpack.c.l.s4 1934713408
        %v2903 = vunpack.c.0.s8 %v2902
        %v2904 = vlaneseq
        %v2905 = vshrl.u32 %v2904, 7
        %v2906 = vsub.s32 %v2903, %v2905
        %v2907 = vrot.slane %v2893, %v2906
        %v2908 = vcombine.high %v2884, 0.0
        %v2909 = vcombine.high %v2891, 0.0
        %v2910 = vcombine.high %v2900, 0.0
        %v2911 = vcombine.high %v2907, 0.0
        %2913 = vrot.lane.b32.xlu0 %v2908, 8
        %v2914 = vpop.permute.xlu0 %2913
        %2917 = vrot.lane.b32.xlu0 %v2891, 16
        %v2918 = vpop.permute.xlu0 %2917
        %2921 = vrot.lane.b32.xlu0 %v2909, 24
        %v2922 = vpop.permute.xlu0 %2921
        %2925 = vrot.lane.b32.xlu0 %v2900, 32
        %v2926 = vpop.permute.xlu0 %2925
        %2929 = vrot.lane.b32.xlu0 %v2910, 40
        %v2930 = vpop.permute.xlu0 %2929
        %2933 = vrot.lane.b32.xlu0 %v2907, 48
        %v2934 = vpop.permute.xlu0 %2933
        %2937 = vrot.lane.b32.xlu0 %v2911, 56
        %v2938 = vpop.permute.xlu0 %2937
        %v2940 = vsel %vm2131, %v2884, %v2914
        %v2941 = vsel %vm2133, %v2940, %v2918
        %v2942 = vsel %vm2135, %v2941, %v2922
        %v2943 = vsel %vm2137, %v2942, %v2926
        %v2944 = vsel %vm2139, %v2943, %v2930
        %v2945 = vsel %vm2141, %v2944, %v2934
        %v2946 = vsel %vm2143, %v2945, %v2938
        %s2947 = scalar_lea.vmem %s1, 40
        %v2948 = vld [vmem:[%s2947] sm:$0xff]
        %2950 = vset.pattern.permute.xlu0 0
        %2951 = vperm.xlu0 %2950, %v2948
        %v2952 = vpop.permute.xlu0 %2951
        %v2954 = vlaneseq
        %v2955 = vshrl.u32 %v2954, 7
        %v2956 = vsub.s32 0, %v2955
        %v2957 = vrot.slane %v2946, %v2956
        %v2958 = vmul.f32 %v2952, %v2957
        %v2959 = vadd.f32 %v2831, %v2958
        %2960 = vset.pattern.permute.xlu0 1
        %2961 = vperm.xlu0 %2960, %v2948
        %v2962 = vpop.permute.xlu0 %2961
        %v2964 = vlaneseq
        %v2965 = vshrl.u32 %v2964, 7
        %v2966 = vsub.s32 1, %v2965
        %v2967 = vrot.slane %v2946, %v2966
        %v2968 = vmul.f32 %v2962, %v2967
        %v2969 = vadd.f32 %v2959, %v2968
        %2970 = vset.pattern.permute.xlu0 2
        %2971 = vperm.xlu0 %2970, %v2948
        %v2972 = vpop.permute.xlu0 %2971
        %v2974 = vlaneseq
        %v2975 = vshrl.u32 %v2974, 7
        %v2976 = vsub.s32 2, %v2975
        %v2977 = vrot.slane %v2946, %v2976
        %v2978 = vmul.f32 %v2972, %v2977
        %v2979 = vadd.f32 %v2969, %v2978
        %2980 = vset.pattern.permute.xlu0 3
        %2981 = vperm.xlu0 %2980, %v2948
        %v2982 = vpop.permute.xlu0 %2981
        %v2984 = vlaneseq
        %v2985 = vshrl.u32 %v2984, 7
        %v2986 = vsub.s32 3, %v2985
        %v2987 = vrot.slane %v2946, %v2986
        %v2988 = vmul.f32 %v2982, %v2987
        %v2989 = vadd.f32 %v2979, %v2988
        %vm2990 = vcmask 1045504
        %v2991 = vrot.slane %v2027, 2
        %v2992 = vrot.slane %v2028, 2
        %v2993 = vsel %vm2990, %v2991, %v2992
        %v2994 = vrot.slane %v2029, 2
        %v2995 = vrot.slane %v2030, 2
        %v2996 = vsel %vm2990, %v2994, %v2995
        %v2997 = vrot.slane %v2031, 2
        %v2998 = vrot.slane %v2032, 2
        %v2999 = vsel %vm2990, %v2997, %v2998
        %v3000 = vrot.slane %v2033, 2
        %v3001 = vrot.slane %v2034, 2
        %v3002 = vsel %vm2990, %v3000, %v3001
        %v3007 = vcombine.low %v2993, %v2999
        %v3008 = vcombine.high %v2993, %v2999
        %v3010 = vunpack.c.l.s4 1983009808
        %v3011 = vunpack.c.0.s8 %v3010
        %v3012 = vlaneseq
        %v3013 = vshrl.u32 %v3012, 7
        %v3014 = vsub.s32 %v3011, %v3013
        %v3015 = vrot.slane %v3007, %v3014
        %v3017 = vunpack.c.l.s4 1983009808
        %v3018 = vunpack.c.0.s8 %v3017
        %v3019 = vlaneseq
        %v3020 = vshrl.u32 %v3019, 7
        %v3021 = vsub.s32 %v3018, %v3020
        %v3022 = vrot.slane %v3008, %v3021
        %v3023 = vcombine.low %v2996, %v3002
        %v3024 = vcombine.high %v2996, %v3002
        %v3026 = vunpack.c.l.s4 1983009808
        %v3027 = vunpack.c.0.s8 %v3026
        %v3028 = vlaneseq
        %v3029 = vshrl.u32 %v3028, 7
        %v3030 = vsub.s32 %v3027, %v3029
        %v3031 = vrot.slane %v3023, %v3030
        %v3033 = vunpack.c.l.s4 1983009808
        %v3034 = vunpack.c.0.s8 %v3033
        %v3035 = vlaneseq
        %v3036 = vshrl.u32 %v3035, 7
        %v3037 = vsub.s32 %v3034, %v3036
        %v3038 = vrot.slane %v3024, %v3037
        %v3039 = vcombine.low %v3015, %v3031
        %v3040 = vcombine.high %v3015, %v3031
        %v3042 = vunpack.c.l.s4 1934713408
        %v3043 = vunpack.c.0.s8 %v3042
        %v3044 = vlaneseq
        %v3045 = vshrl.u32 %v3044, 7
        %v3046 = vsub.s32 %v3043, %v3045
        %v3047 = vrot.slane %v3039, %v3046
        %v3049 = vunpack.c.l.s4 1934713408
        %v3050 = vunpack.c.0.s8 %v3049
        %v3051 = vlaneseq
        %v3052 = vshrl.u32 %v3051, 7
        %v3053 = vsub.s32 %v3050, %v3052
        %v3054 = vrot.slane %v3040, %v3053
        %v3055 = vcombine.low %v3022, %v3038
        %v3056 = vcombine.high %v3022, %v3038
        %v3058 = vunpack.c.l.s4 1934713408
        %v3059 = vunpack.c.0.s8 %v3058
        %v3060 = vlaneseq
        %v3061 = vshrl.u32 %v3060, 7
        %v3062 = vsub.s32 %v3059, %v3061
        %v3063 = vrot.slane %v3055, %v3062
        %v3065 = vunpack.c.l.s4 1934713408
        %v3066 = vunpack.c.0.s8 %v3065
        %v3067 = vlaneseq
        %v3068 = vshrl.u32 %v3067, 7
        %v3069 = vsub.s32 %v3066, %v3068
        %v3070 = vrot.slane %v3056, %v3069
        %v3071 = vcombine.high %v3047, 0.0
        %v3072 = vcombine.high %v3054, 0.0
        %v3073 = vcombine.high %v3063, 0.0
        %v3074 = vcombine.high %v3070, 0.0
        %3076 = vrot.lane.b32.xlu0 %v3071, 8
        %v3077 = vpop.permute.xlu0 %3076
        %3080 = vrot.lane.b32.xlu0 %v3054, 16
        %v3081 = vpop.permute.xlu0 %3080
        %3084 = vrot.lane.b32.xlu0 %v3072, 24
        %v3085 = vpop.permute.xlu0 %3084
        %3088 = vrot.lane.b32.xlu0 %v3063, 32
        %v3089 = vpop.permute.xlu0 %3088
        %3092 = vrot.lane.b32.xlu0 %v3073, 40
        %v3093 = vpop.permute.xlu0 %3092
        %3096 = vrot.lane.b32.xlu0 %v3070, 48
        %v3097 = vpop.permute.xlu0 %3096
        %3100 = vrot.lane.b32.xlu0 %v3074, 56
        %v3101 = vpop.permute.xlu0 %3100
        %v3103 = vsel %vm2131, %v3047, %v3077
        %v3104 = vsel %vm2133, %v3103, %v3081
        %v3105 = vsel %vm2135, %v3104, %v3085
        %v3106 = vsel %vm2137, %v3105, %v3089
        %v3107 = vsel %vm2139, %v3106, %v3093
        %v3108 = vsel %vm2141, %v3107, %v3097
        %v3109 = vsel %vm2143, %v3108, %v3101
        %s3110 = scalar_lea.vmem %s1, 48
        %v3111 = vld [vmem:[%s3110] sm:$0xff]
        %3113 = vset.pattern.permute.xlu0 0
        %3114 = vperm.xlu0 %3113, %v3111
        %v3115 = vpop.permute.xlu0 %3114
        %v3117 = vlaneseq
        %v3118 = vshrl.u32 %v3117, 7
        %v3119 = vsub.s32 0, %v3118
        %v3120 = vrot.slane %v3109, %v3119
        %v3121 = vmul.f32 %v3115, %v3120
        %v3122 = vadd.f32 %v2989, %v3121
        %3123 = vset.pattern.permute.xlu0 1
        %3124 = vperm.xlu0 %3123, %v3111
        %v3125 = vpop.permute.xlu0 %3124
        %v3127 = vlaneseq
        %v3128 = vshrl.u32 %v3127, 7
        %v3129 = vsub.s32 1, %v3128
        %v3130 = vrot.slane %v3109, %v3129
        %v3131 = vmul.f32 %v3125, %v3130
        %v3132 = vadd.f32 %v3122, %v3131
        %3133 = vset.pattern.permute.xlu0 2
        %3134 = vperm.xlu0 %3133, %v3111
        %v3135 = vpop.permute.xlu0 %3134
        %v3137 = vlaneseq
        %v3138 = vshrl.u32 %v3137, 7
        %v3139 = vsub.s32 2, %v3138
        %v3140 = vrot.slane %v3109, %v3139
        %v3141 = vmul.f32 %v3135, %v3140
        %v3142 = vadd.f32 %v3132, %v3141
        %3143 = vset.pattern.permute.xlu0 3
        %3144 = vperm.xlu0 %3143, %v3111
        %v3145 = vpop.permute.xlu0 %3144
        %v3147 = vlaneseq
        %v3148 = vshrl.u32 %v3147, 7
        %v3149 = vsub.s32 3, %v3148
        %v3150 = vrot.slane %v3109, %v3149
        %v3151 = vmul.f32 %v3145, %v3150
        %v3152 = vadd.f32 %v3142, %v3151
        %3153 = vrot.lane.b32.xlu0 %v2993, 127
        %v3154 = vpop.permute.xlu0 %3153
        %3155 = vrot.lane.b32.xlu0 %v2996, 127
        %v3156 = vpop.permute.xlu0 %3155
        %3157 = vrot.lane.b32.xlu0 %v2999, 127
        %v3158 = vpop.permute.xlu0 %3157
        %3159 = vrot.lane.b32.xlu0 %v3002, 127
        %v3160 = vpop.permute.xlu0 %3159
        %v3165 = vcombine.low %v3154, %v3158
        %v3166 = vcombine.high %v3154, %v3158
        %v3168 = vunpack.c.l.s4 1983009808
        %v3169 = vunpack.c.0.s8 %v3168
        %v3170 = vlaneseq
        %v3171 = vshrl.u32 %v3170, 7
        %v3172 = vsub.s32 %v3169, %v3171
        %v3173 = vrot.slane %v3165, %v3172
        %v3175 = vunpack.c.l.s4 1983009808
        %v3176 = vunpack.c.0.s8 %v3175
        %v3177 = vlaneseq
        %v3178 = vshrl.u32 %v3177, 7
        %v3179 = vsub.s32 %v3176, %v3178
        %v3180 = vrot.slane %v3166, %v3179
        %v3181 = vcombine.low %v3156, %v3160
        %v3182 = vcombine.high %v3156, %v3160
        %v3184 = vunpack.c.l.s4 1983009808
        %v3185 = vunpack.c.0.s8 %v3184
        %v3186 = vlaneseq
        %v3187 = vshrl.u32 %v3186, 7
        %v3188 = vsub.s32 %v3185, %v3187
        %v3189 = vrot.slane %v3181, %v3188
        %v3191 = vunpack.c.l.s4 1983009808
        %v3192 = vunpack.c.0.s8 %v3191
        %v3193 = vlaneseq
        %v3194 = vshrl.u32 %v3193, 7
        %v3195 = vsub.s32 %v3192, %v3194
        %v3196 = vrot.slane %v3182, %v3195
        %v3197 = vcombine.low %v3173, %v3189
        %v3198 = vcombine.high %v3173, %v3189
        %v3200 = vunpack.c.l.s4 1934713408
        %v3201 = vunpack.c.0.s8 %v3200
        %v3202 = vlaneseq
        %v3203 = vshrl.u32 %v3202, 7
        %v3204 = vsub.s32 %v3201, %v3203
        %v3205 = vrot.slane %v3197, %v3204
        %v3207 = vunpack.c.l.s4 1934713408
        %v3208 = vunpack.c.0.s8 %v3207
        %v3209 = vlaneseq
        %v3210 = vshrl.u32 %v3209, 7
        %v3211 = vsub.s32 %v3208, %v3210
        %v3212 = vrot.slane %v3198, %v3211
        %v3213 = vcombine.low %v3180, %v3196
        %v3214 = vcombine.high %v3180, %v3196
        %v3216 = vunpack.c.l.s4 1934713408
        %v3217 = vunpack.c.0.s8 %v3216
        %v3218 = vlaneseq
        %v3219 = vshrl.u32 %v3218, 7
        %v3220 = vsub.s32 %v3217, %v3219
        %v3221 = vrot.slane %v3213, %v3220
        %v3223 = vunpack.c.l.s4 1934713408
        %v3224 = vunpack.c.0.s8 %v3223
        %v3225 = vlaneseq
        %v3226 = vshrl.u32 %v3225, 7
        %v3227 = vsub.s32 %v3224, %v3226
        %v3228 = vrot.slane %v3214, %v3227
        %v3229 = vcombine.high %v3205, 0.0
        %v3230 = vcombine.high %v3212, 0.0
        %v3231 = vcombine.high %v3221, 0.0
        %v3232 = vcombine.high %v3228, 0.0
        %3234 = vrot.lane.b32.xlu0 %v3229, 8
        %v3235 = vpop.permute.xlu0 %3234
        %3238 = vrot.lane.b32.xlu0 %v3212, 16
        %v3239 = vpop.permute.xlu0 %3238
        %3242 = vrot.lane.b32.xlu0 %v3230, 24
        %v3243 = vpop.permute.xlu0 %3242
        %3246 = vrot.lane.b32.xlu0 %v3221, 32
        %v3247 = vpop.permute.xlu0 %3246
        %3250 = vrot.lane.b32.xlu0 %v3231, 40
        %v3251 = vpop.permute.xlu0 %3250
        %3254 = vrot.lane.b32.xlu0 %v3228, 48
        %v3255 = vpop.permute.xlu0 %3254
        %3258 = vrot.lane.b32.xlu0 %v3232, 56
        %v3259 = vpop.permute.xlu0 %3258
        %v3261 = vsel %vm2131, %v3205, %v3235
        %v3262 = vsel %vm2133, %v3261, %v3239
        %v3263 = vsel %vm2135, %v3262, %v3243
        %v3264 = vsel %vm2137, %v3263, %v3247
        %v3265 = vsel %vm2139, %v3264, %v3251
        %v3266 = vsel %vm2141, %v3265, %v3255
        %v3267 = vsel %vm2143, %v3266, %v3259
        %s3268 = scalar_lea.vmem %s1, 56
        %v3269 = vld [vmem:[%s3268] sm:$0xff]
        %3271 = vset.pattern.permute.xlu0 0
        %3272 = vperm.xlu0 %3271, %v3269
        %v3273 = vpop.permute.xlu0 %3272
        %v3275 = vlaneseq
        %v3276 = vshrl.u32 %v3275, 7
        %v3277 = vsub.s32 0, %v3276
        %v3278 = vrot.slane %v3267, %v3277
        %v3279 = vmul.f32 %v3273, %v3278
        %v3280 = vadd.f32 %v3152, %v3279
        %3281 = vset.pattern.permute.xlu0 1
        %3282 = vperm.xlu0 %3281, %v3269
        %v3283 = vpop.permute.xlu0 %3282
        %v3285 = vlaneseq
        %v3286 = vshrl.u32 %v3285, 7
        %v3287 = vsub.s32 1, %v3286
        %v3288 = vrot.slane %v3267, %v3287
        %v3289 = vmul.f32 %v3283, %v3288
        %v3290 = vadd.f32 %v3280, %v3289
        %3291 = vset.pattern.permute.xlu0 2
        %3292 = vperm.xlu0 %3291, %v3269
        %v3293 = vpop.permute.xlu0 %3292
        %v3295 = vlaneseq
        %v3296 = vshrl.u32 %v3295, 7
        %v3297 = vsub.s32 2, %v3296
        %v3298 = vrot.slane %v3267, %v3297
        %v3299 = vmul.f32 %v3293, %v3298
        %v3300 = vadd.f32 %v3290, %v3299
        %3301 = vset.pattern.permute.xlu0 3
        %3302 = vperm.xlu0 %3301, %v3269
        %v3303 = vpop.permute.xlu0 %3302
        %v3305 = vlaneseq
        %v3306 = vshrl.u32 %v3305, 7
        %v3307 = vsub.s32 3, %v3306
        %v3308 = vrot.slane %v3267, %v3307
        %v3309 = vmul.f32 %v3303, %v3308
        %v3310 = vadd.f32 %v3300, %v3309
        %3311 = vrot.lane.b32.xlu0 %v2993, 126
        %v3312 = vpop.permute.xlu0 %3311
        %3313 = vrot.lane.b32.xlu0 %v2996, 126
        %v3314 = vpop.permute.xlu0 %3313
        %3315 = vrot.lane.b32.xlu0 %v2999, 126
        %v3316 = vpop.permute.xlu0 %3315
        %3317 = vrot.lane.b32.xlu0 %v3002, 126
        %v3318 = vpop.permute.xlu0 %3317
        %v3323 = vcombine.low %v3312, %v3316
        %v3324 = vcombine.high %v3312, %v3316
        %v3326 = vunpack.c.l.s4 1983009808
        %v3327 = vunpack.c.0.s8 %v3326
        %v3328 = vlaneseq
        %v3329 = vshrl.u32 %v3328, 7
        %v3330 = vsub.s32 %v3327, %v3329
        %v3331 = vrot.slane %v3323, %v3330
        %v3333 = vunpack.c.l.s4 1983009808
        %v3334 = vunpack.c.0.s8 %v3333
        %v3335 = vlaneseq
        %v3336 = vshrl.u32 %v3335, 7
        %v3337 = vsub.s32 %v3334, %v3336
        %v3338 = vrot.slane %v3324, %v3337
        %v3339 = vcombine.low %v3314, %v3318
        %v3340 = vcombine.high %v3314, %v3318
        %v3342 = vunpack.c.l.s4 1983009808
        %v3343 = vunpack.c.0.s8 %v3342
        %v3344 = vlaneseq
        %v3345 = vshrl.u32 %v3344, 7
        %v3346 = vsub.s32 %v3343, %v3345
        %v3347 = vrot.slane %v3339, %v3346
        %v3349 = vunpack.c.l.s4 1983009808
        %v3350 = vunpack.c.0.s8 %v3349
        %v3351 = vlaneseq
        %v3352 = vshrl.u32 %v3351, 7
        %v3353 = vsub.s32 %v3350, %v3352
        %v3354 = vrot.slane %v3340, %v3353
        %v3355 = vcombine.low %v3331, %v3347
        %v3356 = vcombine.high %v3331, %v3347
        %v3358 = vunpack.c.l.s4 1934713408
        %v3359 = vunpack.c.0.s8 %v3358
        %v3360 = vlaneseq
        %v3361 = vshrl.u32 %v3360, 7
        %v3362 = vsub.s32 %v3359, %v3361
        %v3363 = vrot.slane %v3355, %v3362
        %v3365 = vunpack.c.l.s4 1934713408
        %v3366 = vunpack.c.0.s8 %v3365
        %v3367 = vlaneseq
        %v3368 = vshrl.u32 %v3367, 7
        %v3369 = vsub.s32 %v3366, %v3368
        %v3370 = vrot.slane %v3356, %v3369
        %v3371 = vcombine.low %v3338, %v3354
        %v3372 = vcombine.high %v3338, %v3354
        %v3374 = vunpack.c.l.s4 1934713408
        %v3375 = vunpack.c.0.s8 %v3374
        %v3376 = vlaneseq
        %v3377 = vshrl.u32 %v3376, 7
        %v3378 = vsub.s32 %v3375, %v3377
        %v3379 = vrot.slane %v3371, %v3378
        %v3381 = vunpack.c.l.s4 1934713408
        %v3382 = vunpack.c.0.s8 %v3381
        %v3383 = vlaneseq
        %v3384 = vshrl.u32 %v3383, 7
        %v3385 = vsub.s32 %v3382, %v3384
        %v3386 = vrot.slane %v3372, %v3385
        %v3387 = vcombine.high %v3363, 0.0
        %v3388 = vcombine.high %v3370, 0.0
        %v3389 = vcombine.high %v3379, 0.0
        %v3390 = vcombine.high %v3386, 0.0
        %3392 = vrot.lane.b32.xlu0 %v3387, 8
        %v3393 = vpop.permute.xlu0 %3392
        %3396 = vrot.lane.b32.xlu0 %v3370, 16
        %v3397 = vpop.permute.xlu0 %3396
        %3400 = vrot.lane.b32.xlu0 %v3388, 24
        %v3401 = vpop.permute.xlu0 %3400
        %3404 = vrot.lane.b32.xlu0 %v3379, 32
        %v3405 = vpop.permute.xlu0 %3404
        %3408 = vrot.lane.b32.xlu0 %v3389, 40
        %v3409 = vpop.permute.xlu0 %3408
        %3412 = vrot.lane.b32.xlu0 %v3386, 48
        %v3413 = vpop.permute.xlu0 %3412
        %3416 = vrot.lane.b32.xlu0 %v3390, 56
        %v3417 = vpop.permute.xlu0 %3416
        %v3419 = vsel %vm2131, %v3363, %v3393
        %v3420 = vsel %vm2133, %v3419, %v3397
        %v3421 = vsel %vm2135, %v3420, %v3401
        %v3422 = vsel %vm2137, %v3421, %v3405
        %v3423 = vsel %vm2139, %v3422, %v3409
        %v3424 = vsel %vm2141, %v3423, %v3413
        %v3425 = vsel %vm2143, %v3424, %v3417
        %s3426 = scalar_lea.vmem %s1, 64
        %v3427 = vld [vmem:[%s3426] sm:$0xff]
        %3429 = vset.pattern.permute.xlu0 0
        %3430 = vperm.xlu0 %3429, %v3427
        %v3431 = vpop.permute.xlu0 %3430
        %v3433 = vlaneseq
        %v3434 = vshrl.u32 %v3433, 7
        %v3435 = vsub.s32 0, %v3434
        %v3436 = vrot.slane %v3425, %v3435
        %v3437 = vmul.f32 %v3431, %v3436
        %v3438 = vadd.f32 %v3310, %v3437
        %3439 = vset.pattern.permute.xlu0 1
        %3440 = vperm.xlu0 %3439, %v3427
        %v3441 = vpop.permute.xlu0 %3440
        %v3443 = vlaneseq
        %v3444 = vshrl.u32 %v3443, 7
        %v3445 = vsub.s32 1, %v3444
        %v3446 = vrot.slane %v3425, %v3445
        %v3447 = vmul.f32 %v3441, %v3446
        %v3448 = vadd.f32 %v3438, %v3447
        %3449 = vset.pattern.permute.xlu0 2
        %3450 = vperm.xlu0 %3449, %v3427
        %v3451 = vpop.permute.xlu0 %3450
        %v3453 = vlaneseq
        %v3454 = vshrl.u32 %v3453, 7
        %v3455 = vsub.s32 2, %v3454
        %v3456 = vrot.slane %v3425, %v3455
        %v3457 = vmul.f32 %v3451, %v3456
        %v3458 = vadd.f32 %v3448, %v3457
        %3459 = vset.pattern.permute.xlu0 3
        %3460 = vperm.xlu0 %3459, %v3427
        %v3461 = vpop.permute.xlu0 %3460
        %v3463 = vlaneseq
        %v3464 = vshrl.u32 %v3463, 7
        %v3465 = vsub.s32 3, %v3464
        %v3466 = vrot.slane %v3425, %v3465
        %v3467 = vmul.f32 %v3461, %v3466
        %v3468 = vadd.f32 %v3458, %v3467
        %3470 = vset.pattern.permute.xlu0 0
        %3471 = vperm.xlu0 %3470, %v1774
        %v3472 = vpop.permute.xlu0 %3471
        %v3474 = vmul.f32 %v3468, %v3472
        %3476 = vset.pattern.permute.xlu0 0
        %3477 = vperm.xlu0 %3476, %v1775
        %v3478 = vpop.permute.xlu0 %3477
        %v3480 = vadd.f32 %v3474, %v3478
        %v3481 = vmax.f32 %v3480, 0.0
        %3483 = vrot.lane.b32.xlu0 %v3481, 120
        %v3484 = vpop.permute.xlu0 %3483
        %3486 = vrot.lane.b32.xlu0 %v3481, 112
        %v3487 = vpop.permute.xlu0 %3486
        %3489 = vrot.lane.b32.xlu0 %v3481, 104
        %v3490 = vpop.permute.xlu0 %3489
        %3492 = vrot.lane.b32.xlu0 %v3481, 96
        %v3493 = vpop.permute.xlu0 %3492
        %3495 = vrot.lane.b32.xlu0 %v3481, 88
        %v3496 = vpop.permute.xlu0 %3495
        %3498 = vrot.lane.b32.xlu0 %v3481, 80
        %v3499 = vpop.permute.xlu0 %3498
        %3501 = vrot.lane.b32.xlu0 %v3481, 72
        %v3502 = vpop.permute.xlu0 %3501
        %v3504 = vcombine.low %v3481, %v3487
        %v3505 = vcombine.high %v3481, %v3487
        %v3507 = vunpack.c.l.s4 1983009808
        %v3508 = vunpack.c.0.s8 %v3507
        %v3509 = vlaneseq
        %v3510 = vshrl.u32 %v3509, 7
        %v3511 = vsub.s32 %v3508, %v3510
        %v3512 = vrot.slane %v3504, %v3511
        %v3514 = vunpack.c.l.s4 1983009808
        %v3515 = vunpack.c.0.s8 %v3514
        %v3516 = vlaneseq
        %v3517 = vshrl.u32 %v3516, 7
        %v3518 = vsub.s32 %v3515, %v3517
        %v3519 = vrot.slane %v3505, %v3518
        %v3520 = vcombine.low %v3484, %v3490
        %v3521 = vcombine.high %v3484, %v3490
        %v3523 = vunpack.c.l.s4 1983009808
        %v3524 = vunpack.c.0.s8 %v3523
        %v3525 = vlaneseq
        %v3526 = vshrl.u32 %v3525, 7
        %v3527 = vsub.s32 %v3524, %v3526
        %v3528 = vrot.slane %v3520, %v3527
        %v3530 = vunpack.c.l.s4 1983009808
        %v3531 = vunpack.c.0.s8 %v3530
        %v3532 = vlaneseq
        %v3533 = vshrl.u32 %v3532, 7
        %v3534 = vsub.s32 %v3531, %v3533
        %v3535 = vrot.slane %v3521, %v3534
        %v3536 = vcombine.low %v3493, %v3499
        %v3537 = vcombine.high %v3493, %v3499
        %v3539 = vunpack.c.l.s4 1983009808
        %v3540 = vunpack.c.0.s8 %v3539
        %v3541 = vlaneseq
        %v3542 = vshrl.u32 %v3541, 7
        %v3543 = vsub.s32 %v3540, %v3542
        %v3544 = vrot.slane %v3536, %v3543
        %v3546 = vunpack.c.l.s4 1983009808
        %v3547 = vunpack.c.0.s8 %v3546
        %v3548 = vlaneseq
        %v3549 = vshrl.u32 %v3548, 7
        %v3550 = vsub.s32 %v3547, %v3549
        %v3551 = vrot.slane %v3537, %v3550
        %v3552 = vcombine.low %v3496, %v3502
        %v3553 = vcombine.high %v3496, %v3502
        %v3555 = vunpack.c.l.s4 1983009808
        %v3556 = vunpack.c.0.s8 %v3555
        %v3557 = vlaneseq
        %v3558 = vshrl.u32 %v3557, 7
        %v3559 = vsub.s32 %v3556, %v3558
        %v3560 = vrot.slane %v3552, %v3559
        %v3562 = vunpack.c.l.s4 1983009808
        %v3563 = vunpack.c.0.s8 %v3562
        %v3564 = vlaneseq
        %v3565 = vshrl.u32 %v3564, 7
        %v3566 = vsub.s32 %v3563, %v3565
        %v3567 = vrot.slane %v3553, %v3566
        %v3568 = vcombine.low %v3512, %v3528
        %v3569 = vcombine.high %v3512, %v3528
        %v3571 = vunpack.c.l.s4 1934713408
        %v3572 = vunpack.c.0.s8 %v3571
        %v3573 = vlaneseq
        %v3574 = vshrl.u32 %v3573, 7
        %v3575 = vsub.s32 %v3572, %v3574
        %v3576 = vrot.slane %v3568, %v3575
        %v3578 = vunpack.c.l.s4 1934713408
        %v3579 = vunpack.c.0.s8 %v3578
        %v3580 = vlaneseq
        %v3581 = vshrl.u32 %v3580, 7
        %v3582 = vsub.s32 %v3579, %v3581
        %v3583 = vrot.slane %v3569, %v3582
        %v3584 = vcombine.low %v3519, %v3535
        %v3585 = vcombine.high %v3519, %v3535
        %v3587 = vunpack.c.l.s4 1934713408
        %v3588 = vunpack.c.0.s8 %v3587
        %v3589 = vlaneseq
        %v3590 = vshrl.u32 %v3589, 7
        %v3591 = vsub.s32 %v3588, %v3590
        %v3592 = vrot.slane %v3584, %v3591
        %v3594 = vunpack.c.l.s4 1934713408
        %v3595 = vunpack.c.0.s8 %v3594
        %v3596 = vlaneseq
        %v3597 = vshrl.u32 %v3596, 7
        %v3598 = vsub.s32 %v3595, %v3597
        %v3599 = vrot.slane %v3585, %v3598
        %v3600 = vcombine.low %v3544, %v3560
        %v3601 = vcombine.high %v3544, %v3560
        %v3603 = vunpack.c.l.s4 1934713408
        %v3604 = vunpack.c.0.s8 %v3603
        %v3605 = vlaneseq
        %v3606 = vshrl.u32 %v3605, 7
        %v3607 = vsub.s32 %v3604, %v3606
        %v3608 = vrot.slane %v3600, %v3607
        %v3610 = vunpack.c.l.s4 1934713408
        %v3611 = vunpack.c.0.s8 %v3610
        %v3612 = vlaneseq
        %v3613 = vshrl.u32 %v3612, 7
        %v3614 = vsub.s32 %v3611, %v3613
        %v3615 = vrot.slane %v3601, %v3614
        %v3616 = vcombine.low %v3551, %v3567
        %v3617 = vcombine.high %v3551, %v3567
        %v3619 = vunpack.c.l.s4 1934713408
        %v3620 = vunpack.c.0.s8 %v3619
        %v3621 = vlaneseq
        %v3622 = vshrl.u32 %v3621, 7
        %v3623 = vsub.s32 %v3620, %v3622
        %v3624 = vrot.slane %v3616, %v3623
        %v3626 = vunpack.c.l.s4 1934713408
        %v3627 = vunpack.c.0.s8 %v3626
        %v3628 = vlaneseq
        %v3629 = vshrl.u32 %v3628, 7
        %v3630 = vsub.s32 %v3627, %v3629
        %v3631 = vrot.slane %v3617, %v3630
        %v3632 = vcombine.low %v3576, %v3608
        %v3633 = vcombine.high %v3576, %v3608
        %v3634 = vcombine.low %v3583, %v3615
        %v3635 = vcombine.high %v3583, %v3615
        %v3636 = vcombine.low %v3592, %v3624
        %v3637 = vcombine.high %v3592, %v3624
        %v3638 = vcombine.low %v3599, %v3631
        %v3639 = vcombine.high %v3599, %v3631
        %v3640 = vld [vmem:[%s5] sm:$0xff]
        %v3641 = vld [vmem:[%s6] sm:$0xff]
        %v3650 = vrot.slane %v3632, 7
        %v3651 = vrot.slane %v3633, 7
        %v3652 = vrot.slane %v3634, 7
        %v3653 = vrot.slane %v3635, 7
        %v3654 = vrot.slane %v3636, 7
        %v3655 = vrot.slane %v3637, 7
        %v3656 = vrot.slane %v3638, 7
        %v3657 = vrot.slane %v3639, 7
        %v3666 = vsel %vm1976, 0.0, %v3650
        %v3667 = vsel %vm1976, 0.0, %v3651
        %v3668 = vsel %vm1976, 0.0, %v3652
        %v3669 = vsel %vm1976, 0.0, %v3653
        %v3670 = vsel %vm1976, 0.0, %v3654
        %v3671 = vsel %vm1976, 0.0, %v3655
        %v3672 = vsel %vm1976, 0.0, %v3656
        %v3673 = vsel %vm1976, 0.0, %v3657
        %v3674 = vsel %vm1976, %v3650, 0.0
        %v3675 = vsel %vm1976, %v3651, 0.0
        %v3676 = vsel %vm1976, %v3652, 0.0
        %v3677 = vsel %vm1976, %v3653, 0.0
        %v3678 = vsel %vm1976, %v3654, 0.0
        %v3679 = vsel %vm1976, %v3655, 0.0
        %v3680 = vsel %vm1976, %v3656, 0.0
        %v3681 = vsel %vm1976, %v3657, 0.0
        %3698 = vrot.lane.b32.xlu0 %v3666, 1
        %v3699 = vpop.permute.xlu0 %3698
        %3700 = vrot.lane.b32.xlu0 %v3674, 1
        %v3701 = vpop.permute.xlu0 %3700
        %3702 = vrot.lane.b32.xlu0 %v3667, 1
        %v3703 = vpop.permute.xlu0 %3702
        %3704 = vrot.lane.b32.xlu0 %v3675, 1
        %v3705 = vpop.permute.xlu0 %3704
        %3706 = vrot.lane.b32.xlu0 %v3668, 1
        %v3707 = vpop.permute.xlu0 %3706
        %3708 = vrot.lane.b32.xlu0 %v3676, 1
        %v3709 = vpop.permute.xlu0 %3708
        %3710 = vrot.lane.b32.xlu0 %v3669, 1
        %v3711 = vpop.permute.xlu0 %3710
        %3712 = vrot.lane.b32.xlu0 %v3677, 1
        %v3713 = vpop.permute.xlu0 %3712
        %3714 = vrot.lane.b32.xlu0 %v3670, 1
        %v3715 = vpop.permute.xlu0 %3714
        %3716 = vrot.lane.b32.xlu0 %v3678, 1
        %v3717 = vpop.permute.xlu0 %3716
        %3718 = vrot.lane.b32.xlu0 %v3671, 1
        %v3719 = vpop.permute.xlu0 %3718
        %3720 = vrot.lane.b32.xlu0 %v3679, 1
        %v3721 = vpop.permute.xlu0 %3720
        %3722 = vrot.lane.b32.xlu0 %v3672, 1
        %v3723 = vpop.permute.xlu0 %3722
        %3724 = vrot.lane.b32.xlu0 %v3680, 1
        %v3725 = vpop.permute.xlu0 %3724
        %3726 = vrot.lane.b32.xlu0 %v3673, 1
        %v3727 = vpop.permute.xlu0 %3726
        %3728 = vrot.lane.b32.xlu0 %v3681, 1
        %v3729 = vpop.permute.xlu0 %3728
        %v3746 = vsel %vm2017, 0.0, %v3699
        %v3747 = vsel %vm2017, 0.0, %v3701
        %v3748 = vsel %vm2017, 0.0, %v3703
        %v3749 = vsel %vm2017, 0.0, %v3705
        %v3750 = vsel %vm2017, 0.0, %v3707
        %v3751 = vsel %vm2017, 0.0, %v3709
        %v3752 = vsel %vm2017, 0.0, %v3711
        %v3753 = vsel %vm2017, 0.0, %v3713
        %v3754 = vsel %vm2017, 0.0, %v3715
        %v3755 = vsel %vm2017, 0.0, %v3717
        %v3756 = vsel %vm2017, 0.0, %v3719
        %v3757 = vsel %vm2017, 0.0, %v3721
        %v3758 = vsel %vm2017, 0.0, %v3723
        %v3759 = vsel %vm2017, 0.0, %v3725
        %v3760 = vsel %vm2017, 0.0, %v3727
        %v3761 = vsel %vm2017, 0.0, %v3729
        %v3762 = vsel %vm2026, %v3746, 0.0
        %v3763 = vsel %vm2026, %v3747, 0.0
        %v3764 = vsel %vm2026, %v3748, 0.0
        %v3765 = vsel %vm2026, %v3749, 0.0
        %v3766 = vsel %vm2026, %v3750, 0.0
        %v3767 = vsel %vm2026, %v3751, 0.0
        %v3768 = vsel %vm2026, %v3752, 0.0
        %v3769 = vsel %vm2026, %v3753, 0.0
        %v3770 = vsel %vm2026, %v3754, 0.0
        %v3771 = vsel %vm2026, %v3755, 0.0
        %v3772 = vsel %vm2026, %v3756, 0.0
        %v3773 = vsel %vm2026, %v3757, 0.0
        %v3774 = vsel %vm2026, %v3758, 0.0
        %v3775 = vsel %vm2026, %v3759, 0.0
        %v3776 = vsel %vm2026, %v3760, 0.0
        %v3777 = vsel %vm2026, %v3761, 0.0
        %v3778 = vcombine.low %v3762, %v3766
        %v3779 = vcombine.high %v3762, %v3766
        %v3781 = vunpack.c.l.s4 1983009808
        %v3782 = vunpack.c.0.s8 %v3781
        %v3783 = vlaneseq
        %v3784 = vshrl.u32 %v3783, 7
        %v3785 = vsub.s32 %v3782, %v3784
        %v3786 = vrot.slane %v3778, %v3785
        %v3788 = vunpack.c.l.s4 1983009808
        %v3789 = vunpack.c.0.s8 %v3788
        %v3790 = vlaneseq
        %v3791 = vshrl.u32 %v3790, 7
        %v3792 = vsub.s32 %v3789, %v3791
        %v3793 = vrot.slane %v3779, %v3792
        %v3794 = vcombine.low %v3764, %v3768
        %v3795 = vcombine.high %v3764, %v3768
        %v3797 = vunpack.c.l.s4 1983009808
        %v3798 = vunpack.c.0.s8 %v3797
        %v3799 = vlaneseq
        %v3800 = vshrl.u32 %v3799, 7
        %v3801 = vsub.s32 %v3798, %v3800
        %v3802 = vrot.slane %v3794, %v3801
        %v3804 = vunpack.c.l.s4 1983009808
        %v3805 = vunpack.c.0.s8 %v3804
        %v3806 = vlaneseq
        %v3807 = vshrl.u32 %v3806, 7
        %v3808 = vsub.s32 %v3805, %v3807
        %v3809 = vrot.slane %v3795, %v3808
        %v3810 = vcombine.low %v3770, %v3774
        %v3811 = vcombine.high %v3770, %v3774
        %v3813 = vunpack.c.l.s4 1983009808
        %v3814 = vunpack.c.0.s8 %v3813
        %v3815 = vlaneseq
        %v3816 = vshrl.u32 %v3815, 7
        %v3817 = vsub.s32 %v3814, %v3816
        %v3818 = vrot.slane %v3810, %v3817
        %v3820 = vunpack.c.l.s4 1983009808
        %v3821 = vunpack.c.0.s8 %v3820
        %v3822 = vlaneseq
        %v3823 = vshrl.u32 %v3822, 7
        %v3824 = vsub.s32 %v3821, %v3823
        %v3825 = vrot.slane %v3811, %v3824
        %v3826 = vcombine.low %v3772, %v3776
        %v3827 = vcombine.high %v3772, %v3776
        %v3829 = vunpack.c.l.s4 1983009808
        %v3830 = vunpack.c.0.s8 %v3829
        %v3831 = vlaneseq
        %v3832 = vshrl.u32 %v3831, 7
        %v3833 = vsub.s32 %v3830, %v3832
        %v3834 = vrot.slane %v3826, %v3833
        %v3836 = vunpack.c.l.s4 1983009808
        %v3837 = vunpack.c.0.s8 %v3836
        %v3838 = vlaneseq
        %v3839 = vshrl.u32 %v3838, 7
        %v3840 = vsub.s32 %v3837, %v3839
        %v3841 = vrot.slane %v3827, %v3840
        %v3842 = vcombine.low %v3786, %v3802
        %v3843 = vcombine.high %v3786, %v3802
        %v3845 = vunpack.c.l.s4 1934713408
        %v3846 = vunpack.c.0.s8 %v3845
        %v3847 = vlaneseq
        %v3848 = vshrl.u32 %v3847, 7
        %v3849 = vsub.s32 %v3846, %v3848
        %v3850 = vrot.slane %v3842, %v3849
        %v3852 = vunpack.c.l.s4 1934713408
        %v3853 = vunpack.c.0.s8 %v3852
        %v3854 = vlaneseq
        %v3855 = vshrl.u32 %v3854, 7
        %v3856 = vsub.s32 %v3853, %v3855
        %v3857 = vrot.slane %v3843, %v3856
        %v3858 = vcombine.low %v3793, %v3809
        %v3859 = vcombine.high %v3793, %v3809
        %v3861 = vunpack.c.l.s4 1934713408
        %v3862 = vunpack.c.0.s8 %v3861
        %v3863 = vlaneseq
        %v3864 = vshrl.u32 %v3863, 7
        %v3865 = vsub.s32 %v3862, %v3864
        %v3866 = vrot.slane %v3858, %v3865
        %v3868 = vunpack.c.l.s4 1934713408
        %v3869 = vunpack.c.0.s8 %v3868
        %v3870 = vlaneseq
        %v3871 = vshrl.u32 %v3870, 7
        %v3872 = vsub.s32 %v3869, %v3871
        %v3873 = vrot.slane %v3859, %v3872
        %v3874 = vcombine.low %v3818, %v3834
        %v3875 = vcombine.high %v3818, %v3834
        %v3877 = vunpack.c.l.s4 1934713408
        %v3878 = vunpack.c.0.s8 %v3877
        %v3879 = vlaneseq
        %v3880 = vshrl.u32 %v3879, 7
        %v3881 = vsub.s32 %v3878, %v3880
        %v3882 = vrot.slane %v3874, %v3881
        %v3884 = vunpack.c.l.s4 1934713408
        %v3885 = vunpack.c.0.s8 %v3884
        %v3886 = vlaneseq
        %v3887 = vshrl.u32 %v3886, 7
        %v3888 = vsub.s32 %v3885, %v3887
        %v3889 = vrot.slane %v3875, %v3888
        %v3890 = vcombine.low %v3825, %v3841
        %v3891 = vcombine.high %v3825, %v3841
        %v3893 = vunpack.c.l.s4 1934713408
        %v3894 = vunpack.c.0.s8 %v3893
        %v3895 = vlaneseq
        %v3896 = vshrl.u32 %v3895, 7
        %v3897 = vsub.s32 %v3894, %v3896
        %v3898 = vrot.slane %v3890, %v3897
        %v3900 = vunpack.c.l.s4 1934713408
        %v3901 = vunpack.c.0.s8 %v3900
        %v3902 = vlaneseq
        %v3903 = vshrl.u32 %v3902, 7
        %v3904 = vsub.s32 %v3901, %v3903
        %v3905 = vrot.slane %v3891, %v3904
        %v3906 = vcombine.low %v3850, %v3882
        %v3907 = vcombine.high %v3850, %v3882
        %v3908 = vcombine.low %v3857, %v3889
        %v3909 = vcombine.high %v3857, %v3889
        %v3910 = vcombine.low %v3866, %v3898
        %v3911 = vcombine.high %v3866, %v3898
        %v3912 = vcombine.low %v3873, %v3905
        %v3913 = vcombine.high %v3873, %v3905
        %3915 = vrot.lane.b32.xlu0 %v3907, 8
        %v3916 = vpop.permute.xlu0 %3915
        %3919 = vrot.lane.b32.xlu0 %v3908, 16
        %v3920 = vpop.permute.xlu0 %3919
        %3923 = vrot.lane.b32.xlu0 %v3909, 24
        %v3924 = vpop.permute.xlu0 %3923
        %3927 = vrot.lane.b32.xlu0 %v3910, 32
        %v3928 = vpop.permute.xlu0 %3927
        %3931 = vrot.lane.b32.xlu0 %v3911, 40
        %v3932 = vpop.permute.xlu0 %3931
        %3935 = vrot.lane.b32.xlu0 %v3912, 48
        %v3936 = vpop.permute.xlu0 %3935
        %3939 = vrot.lane.b32.xlu0 %v3913, 56
        %v3940 = vpop.permute.xlu0 %3939
        %v3942 = vsel %vm2131, %v3906, %v3916
        %v3943 = vsel %vm2133, %v3942, %v3920
        %v3944 = vsel %vm2135, %v3943, %v3924
        %v3945 = vsel %vm2137, %v3944, %v3928
        %v3946 = vsel %vm2139, %v3945, %v3932
        %v3947 = vsel %vm2141, %v3946, %v3936
        %v3948 = vsel %vm2143, %v3947, %v3940
        %v3949 = vld [vmem:[%s4] sm:$0xff]
        %3951 = vset.pattern.permute.xlu0 0
        %3952 = vperm.xlu0 %3951, %v3949
        %v3953 = vpop.permute.xlu0 %3952
        %v3955 = vlaneseq
        %v3956 = vshrl.u32 %v3955, 7
        %v3957 = vsub.s32 0, %v3956
        %v3958 = vrot.slane %v3948, %v3957
        %v3959 = vmul.f32 %v3953, %v3958
        %v3960 = vadd.f32 %v3959, 0.0
        %3961 = vset.pattern.permute.xlu0 1
        %3962 = vperm.xlu0 %3961, %v3949
        %v3963 = vpop.permute.xlu0 %3962
        %v3965 = vlaneseq
        %v3966 = vshrl.u32 %v3965, 7
        %v3967 = vsub.s32 1, %v3966
        %v3968 = vrot.slane %v3948, %v3967
        %v3969 = vmul.f32 %v3963, %v3968
        %v3970 = vadd.f32 %v3960, %v3969
        %3971 = vset.pattern.permute.xlu0 2
        %3972 = vperm.xlu0 %3971, %v3949
        %v3973 = vpop.permute.xlu0 %3972
        %v3975 = vlaneseq
        %v3976 = vshrl.u32 %v3975, 7
        %v3977 = vsub.s32 2, %v3976
        %v3978 = vrot.slane %v3948, %v3977
        %v3979 = vmul.f32 %v3973, %v3978
        %v3980 = vadd.f32 %v3970, %v3979
        %3981 = vset.pattern.permute.xlu0 3
        %3982 = vperm.xlu0 %3981, %v3949
        %v3983 = vpop.permute.xlu0 %3982
        %v3985 = vlaneseq
        %v3986 = vshrl.u32 %v3985, 7
        %v3987 = vsub.s32 3, %v3986
        %v3988 = vrot.slane %v3948, %v3987
        %v3989 = vmul.f32 %v3983, %v3988
        %v3990 = vadd.f32 %v3980, %v3989
        %3991 = vset.pattern.permute.xlu0 4
        %3992 = vperm.xlu0 %3991, %v3949
        %v3993 = vpop.permute.xlu0 %3992
        %v3995 = vlaneseq
        %v3996 = vshrl.u32 %v3995, 7
        %v3997 = vsub.s32 4, %v3996
        %v3998 = vrot.slane %v3948, %v3997
        %v3999 = vmul.f32 %v3993, %v3998
        %v4000 = vadd.f32 %v3990, %v3999
        %4001 = vset.pattern.permute.xlu0 5
        %4002 = vperm.xlu0 %4001, %v3949
        %v4003 = vpop.permute.xlu0 %4002
        %v4005 = vlaneseq
        %v4006 = vshrl.u32 %v4005, 7
        %v4007 = vsub.s32 5, %v4006
        %v4008 = vrot.slane %v3948, %v4007
        %v4009 = vmul.f32 %v4003, %v4008
        %v4010 = vadd.f32 %v4000, %v4009
        %4011 = vset.pattern.permute.xlu0 6
        %4012 = vperm.xlu0 %4011, %v3949
        %v4013 = vpop.permute.xlu0 %4012
        %v4015 = vlaneseq
        %v4016 = vshrl.u32 %v4015, 7
        %v4017 = vsub.s32 6, %v4016
        %v4018 = vrot.slane %v3948, %v4017
        %v4019 = vmul.f32 %v4013, %v4018
        %v4020 = vadd.f32 %v4010, %v4019
        %4021 = vset.pattern.permute.xlu0 7
        %4022 = vperm.xlu0 %4021, %v3949
        %v4023 = vpop.permute.xlu0 %4022
        %v4025 = vlaneseq
        %v4026 = vshrl.u32 %v4025, 7
        %v4027 = vsub.s32 7, %v4026
        %v4028 = vrot.slane %v3948, %v4027
        %v4029 = vmul.f32 %v4023, %v4028
        %v4030 = vadd.f32 %v4020, %v4029
        %4039 = vrot.lane.b32.xlu0 %v3762, 127
        %v4040 = vpop.permute.xlu0 %4039
        %4041 = vrot.lane.b32.xlu0 %v3764, 127
        %v4042 = vpop.permute.xlu0 %4041
        %4043 = vrot.lane.b32.xlu0 %v3766, 127
        %v4044 = vpop.permute.xlu0 %4043
        %4045 = vrot.lane.b32.xlu0 %v3768, 127
        %v4046 = vpop.permute.xlu0 %4045
        %4047 = vrot.lane.b32.xlu0 %v3770, 127
        %v4048 = vpop.permute.xlu0 %4047
        %4049 = vrot.lane.b32.xlu0 %v3772, 127
        %v4050 = vpop.permute.xlu0 %4049
        %4051 = vrot.lane.b32.xlu0 %v3774, 127
        %v4052 = vpop.permute.xlu0 %4051
        %4053 = vrot.lane.b32.xlu0 %v3776, 127
        %v4054 = vpop.permute.xlu0 %4053
        %v4063 = vcombine.low %v4040, %v4044
        %v4064 = vcombine.high %v4040, %v4044
        %v4066 = vunpack.c.l.s4 1983009808
        %v4067 = vunpack.c.0.s8 %v4066
        %v4068 = vlaneseq
        %v4069 = vshrl.u32 %v4068, 7
        %v4070 = vsub.s32 %v4067, %v4069
        %v4071 = vrot.slane %v4063, %v4070
        %v4073 = vunpack.c.l.s4 1983009808
        %v4074 = vunpack.c.0.s8 %v4073
        %v4075 = vlaneseq
        %v4076 = vshrl.u32 %v4075, 7
        %v4077 = vsub.s32 %v4074, %v4076
        %v4078 = vrot.slane %v4064, %v4077
        %v4079 = vcombine.low %v4042, %v4046
        %v4080 = vcombine.high %v4042, %v4046
        %v4082 = vunpack.c.l.s4 1983009808
        %v4083 = vunpack.c.0.s8 %v4082
        %v4084 = vlaneseq
        %v4085 = vshrl.u32 %v4084, 7
        %v4086 = vsub.s32 %v4083, %v4085
        %v4087 = vrot.slane %v4079, %v4086
        %v4089 = vunpack.c.l.s4 1983009808
        %v4090 = vunpack.c.0.s8 %v4089
        %v4091 = vlaneseq
        %v4092 = vshrl.u32 %v4091, 7
        %v4093 = vsub.s32 %v4090, %v4092
        %v4094 = vrot.slane %v4080, %v4093
        %v4095 = vcombine.low %v4048, %v4052
        %v4096 = vcombine.high %v4048, %v4052
        %v4098 = vunpack.c.l.s4 1983009808
        %v4099 = vunpack.c.0.s8 %v4098
        %v4100 = vlaneseq
        %v4101 = vshrl.u32 %v4100, 7
        %v4102 = vsub.s32 %v4099, %v4101
        %v4103 = vrot.slane %v4095, %v4102
        %v4105 = vunpack.c.l.s4 1983009808
        %v4106 = vunpack.c.0.s8 %v4105
        %v4107 = vlaneseq
        %v4108 = vshrl.u32 %v4107, 7
        %v4109 = vsub.s32 %v4106, %v4108
        %v4110 = vrot.slane %v4096, %v4109
        %v4111 = vcombine.low %v4050, %v4054
        %v4112 = vcombine.high %v4050, %v4054
        %v4114 = vunpack.c.l.s4 1983009808
        %v4115 = vunpack.c.0.s8 %v4114
        %v4116 = vlaneseq
        %v4117 = vshrl.u32 %v4116, 7
        %v4118 = vsub.s32 %v4115, %v4117
        %v4119 = vrot.slane %v4111, %v4118
        %v4121 = vunpack.c.l.s4 1983009808
        %v4122 = vunpack.c.0.s8 %v4121
        %v4123 = vlaneseq
        %v4124 = vshrl.u32 %v4123, 7
        %v4125 = vsub.s32 %v4122, %v4124
        %v4126 = vrot.slane %v4112, %v4125
        %v4127 = vcombine.low %v4071, %v4087
        %v4128 = vcombine.high %v4071, %v4087
        %v4130 = vunpack.c.l.s4 1934713408
        %v4131 = vunpack.c.0.s8 %v4130
        %v4132 = vlaneseq
        %v4133 = vshrl.u32 %v4132, 7
        %v4134 = vsub.s32 %v4131, %v4133
        %v4135 = vrot.slane %v4127, %v4134
        %v4137 = vunpack.c.l.s4 1934713408
        %v4138 = vunpack.c.0.s8 %v4137
        %v4139 = vlaneseq
        %v4140 = vshrl.u32 %v4139, 7
        %v4141 = vsub.s32 %v4138, %v4140
        %v4142 = vrot.slane %v4128, %v4141
        %v4143 = vcombine.low %v4078, %v4094
        %v4144 = vcombine.high %v4078, %v4094
        %v4146 = vunpack.c.l.s4 1934713408
        %v4147 = vunpack.c.0.s8 %v4146
        %v4148 = vlaneseq
        %v4149 = vshrl.u32 %v4148, 7
        %v4150 = vsub.s32 %v4147, %v4149
        %v4151 = vrot.slane %v4143, %v4150
        %v4153 = vunpack.c.l.s4 1934713408
        %v4154 = vunpack.c.0.s8 %v4153
        %v4155 = vlaneseq
        %v4156 = vshrl.u32 %v4155, 7
        %v4157 = vsub.s32 %v4154, %v4156
        %v4158 = vrot.slane %v4144, %v4157
        %v4159 = vcombine.low %v4103, %v4119
        %v4160 = vcombine.high %v4103, %v4119
        %v4162 = vunpack.c.l.s4 1934713408
        %v4163 = vunpack.c.0.s8 %v4162
        %v4164 = vlaneseq
        %v4165 = vshrl.u32 %v4164, 7
        %v4166 = vsub.s32 %v4163, %v4165
        %v4167 = vrot.slane %v4159, %v4166
        %v4169 = vunpack.c.l.s4 1934713408
        %v4170 = vunpack.c.0.s8 %v4169
        %v4171 = vlaneseq
        %v4172 = vshrl.u32 %v4171, 7
        %v4173 = vsub.s32 %v4170, %v4172
        %v4174 = vrot.slane %v4160, %v4173
        %v4175 = vcombine.low %v4110, %v4126
        %v4176 = vcombine.high %v4110, %v4126
        %v4178 = vunpack.c.l.s4 1934713408
        %v4179 = vunpack.c.0.s8 %v4178
        %v4180 = vlaneseq
        %v4181 = vshrl.u32 %v4180, 7
        %v4182 = vsub.s32 %v4179, %v4181
        %v4183 = vrot.slane %v4175, %v4182
        %v4185 = vunpack.c.l.s4 1934713408
        %v4186 = vunpack.c.0.s8 %v4185
        %v4187 = vlaneseq
        %v4188 = vshrl.u32 %v4187, 7
        %v4189 = vsub.s32 %v4186, %v4188
        %v4190 = vrot.slane %v4176, %v4189
        %v4191 = vcombine.low %v4135, %v4167
        %v4192 = vcombine.high %v4135, %v4167
        %v4193 = vcombine.low %v4142, %v4174
        %v4194 = vcombine.high %v4142, %v4174
        %v4195 = vcombine.low %v4151, %v4183
        %v4196 = vcombine.high %v4151, %v4183
        %v4197 = vcombine.low %v4158, %v4190
        %v4198 = vcombine.high %v4158, %v4190
        %4200 = vrot.lane.b32.xlu0 %v4192, 8
        %v4201 = vpop.permute.xlu0 %4200
        %4204 = vrot.lane.b32.xlu0 %v4193, 16
        %v4205 = vpop.permute.xlu0 %4204
        %4208 = vrot.lane.b32.xlu0 %v4194, 24
        %v4209 = vpop.permute.xlu0 %4208
        %4212 = vrot.lane.b32.xlu0 %v4195, 32
        %v4213 = vpop.permute.xlu0 %4212
        %4216 = vrot.lane.b32.xlu0 %v4196, 40
        %v4217 = vpop.permute.xlu0 %4216
        %4220 = vrot.lane.b32.xlu0 %v4197, 48
        %v4221 = vpop.permute.xlu0 %4220
        %4224 = vrot.lane.b32.xlu0 %v4198, 56
        %v4225 = vpop.permute.xlu0 %4224
        %v4227 = vsel %vm2131, %v4191, %v4201
        %v4228 = vsel %vm2133, %v4227, %v4205
        %v4229 = vsel %vm2135, %v4228, %v4209
        %v4230 = vsel %vm2137, %v4229, %v4213
        %v4231 = vsel %vm2139, %v4230, %v4217
        %v4232 = vsel %vm2141, %v4231, %v4221
        %v4233 = vsel %vm2143, %v4232, %v4225
        %s4234 = scalar_lea.vmem %s4, 8
        %v4235 = vld [vmem:[%s4234] sm:$0xff]
        %4237 = vset.pattern.permute.xlu0 0
        %4238 = vperm.xlu0 %4237, %v4235
        %v4239 = vpop.permute.xlu0 %4238
        %v4241 = vlaneseq
        %v4242 = vshrl.u32 %v4241, 7
        %v4243 = vsub.s32 0, %v4242
        %v4244 = vrot.slane %v4233, %v4243
        %v4245 = vmul.f32 %v4239, %v4244
        %v4246 = vadd.f32 %v4030, %v4245
        %4247 = vset.pattern.permute.xlu0 1
        %4248 = vperm.xlu0 %4247, %v4235
        %v4249 = vpop.permute.xlu0 %4248
        %v4251 = vlaneseq
        %v4252 = vshrl.u32 %v4251, 7
        %v4253 = vsub.s32 1, %v4252
        %v4254 = vrot.slane %v4233, %v4253
        %v4255 = vmul.f32 %v4249, %v4254
        %v4256 = vadd.f32 %v4246, %v4255
        %4257 = vset.pattern.permute.xlu0 2
        %4258 = vperm.xlu0 %4257, %v4235
        %v4259 = vpop.permute.xlu0 %4258
        %v4261 = vlaneseq
        %v4262 = vshrl.u32 %v4261, 7
        %v4263 = vsub.s32 2, %v4262
        %v4264 = vrot.slane %v4233, %v4263
        %v4265 = vmul.f32 %v4259, %v4264
        %v4266 = vadd.f32 %v4256, %v4265
        %4267 = vset.pattern.permute.xlu0 3
        %4268 = vperm.xlu0 %4267, %v4235
        %v4269 = vpop.permute.xlu0 %4268
        %v4271 = vlaneseq
        %v4272 = vshrl.u32 %v4271, 7
        %v4273 = vsub.s32 3, %v4272
        %v4274 = vrot.slane %v4233, %v4273
        %v4275 = vmul.f32 %v4269, %v4274
        %v4276 = vadd.f32 %v4266, %v4275
        %4277 = vset.pattern.permute.xlu0 4
        %4278 = vperm.xlu0 %4277, %v4235
        %v4279 = vpop.permute.xlu0 %4278
        %v4281 = vlaneseq
        %v4282 = vshrl.u32 %v4281, 7
        %v4283 = vsub.s32 4, %v4282
        %v4284 = vrot.slane %v4233, %v4283
        %v4285 = vmul.f32 %v4279, %v4284
        %v4286 = vadd.f32 %v4276, %v4285
        %4287 = vset.pattern.permute.xlu0 5
        %4288 = vperm.xlu0 %4287, %v4235
        %v4289 = vpop.permute.xlu0 %4288
        %v4291 = vlaneseq
        %v4292 = vshrl.u32 %v4291, 7
        %v4293 = vsub.s32 5, %v4292
        %v4294 = vrot.slane %v4233, %v4293
        %v4295 = vmul.f32 %v4289, %v4294
        %v4296 = vadd.f32 %v4286, %v4295
        %4297 = vset.pattern.permute.xlu0 6
        %4298 = vperm.xlu0 %4297, %v4235
        %v4299 = vpop.permute.xlu0 %4298
        %v4301 = vlaneseq
        %v4302 = vshrl.u32 %v4301, 7
        %v4303 = vsub.s32 6, %v4302
        %v4304 = vrot.slane %v4233, %v4303
        %v4305 = vmul.f32 %v4299, %v4304
        %v4306 = vadd.f32 %v4296, %v4305
        %4307 = vset.pattern.permute.xlu0 7
        %4308 = vperm.xlu0 %4307, %v4235
        %v4309 = vpop.permute.xlu0 %4308
        %v4311 = vlaneseq
        %v4312 = vshrl.u32 %v4311, 7
        %v4313 = vsub.s32 7, %v4312
        %v4314 = vrot.slane %v4233, %v4313
        %v4315 = vmul.f32 %v4309, %v4314
        %v4316 = vadd.f32 %v4306, %v4315
        %4317 = vrot.lane.b32.xlu0 %v3762, 126
        %v4318 = vpop.permute.xlu0 %4317
        %4319 = vrot.lane.b32.xlu0 %v3764, 126
        %v4320 = vpop.permute.xlu0 %4319
        %4321 = vrot.lane.b32.xlu0 %v3766, 126
        %v4322 = vpop.permute.xlu0 %4321
        %4323 = vrot.lane.b32.xlu0 %v3768, 126
        %v4324 = vpop.permute.xlu0 %4323
        %4325 = vrot.lane.b32.xlu0 %v3770, 126
        %v4326 = vpop.permute.xlu0 %4325
        %4327 = vrot.lane.b32.xlu0 %v3772, 126
        %v4328 = vpop.permute.xlu0 %4327
        %4329 = vrot.lane.b32.xlu0 %v3774, 126
        %v4330 = vpop.permute.xlu0 %4329
        %4331 = vrot.lane.b32.xlu0 %v3776, 126
        %v4332 = vpop.permute.xlu0 %4331
        %v4341 = vcombine.low %v4318, %v4322
        %v4342 = vcombine.high %v4318, %v4322
        %v4344 = vunpack.c.l.s4 1983009808
        %v4345 = vunpack.c.0.s8 %v4344
        %v4346 = vlaneseq
        %v4347 = vshrl.u32 %v4346, 7
        %v4348 = vsub.s32 %v4345, %v4347
        %v4349 = vrot.slane %v4341, %v4348
        %v4351 = vunpack.c.l.s4 1983009808
        %v4352 = vunpack.c.0.s8 %v4351
        %v4353 = vlaneseq
        %v4354 = vshrl.u32 %v4353, 7
        %v4355 = vsub.s32 %v4352, %v4354
        %v4356 = vrot.slane %v4342, %v4355
        %v4357 = vcombine.low %v4320, %v4324
        %v4358 = vcombine.high %v4320, %v4324
        %v4360 = vunpack.c.l.s4 1983009808
        %v4361 = vunpack.c.0.s8 %v4360
        %v4362 = vlaneseq
        %v4363 = vshrl.u32 %v4362, 7
        %v4364 = vsub.s32 %v4361, %v4363
        %v4365 = vrot.slane %v4357, %v4364
        %v4367 = vunpack.c.l.s4 1983009808
        %v4368 = vunpack.c.0.s8 %v4367
        %v4369 = vlaneseq
        %v4370 = vshrl.u32 %v4369, 7
        %v4371 = vsub.s32 %v4368, %v4370
        %v4372 = vrot.slane %v4358, %v4371
        %v4373 = vcombine.low %v4326, %v4330
        %v4374 = vcombine.high %v4326, %v4330
        %v4376 = vunpack.c.l.s4 1983009808
        %v4377 = vunpack.c.0.s8 %v4376
        %v4378 = vlaneseq
        %v4379 = vshrl.u32 %v4378, 7
        %v4380 = vsub.s32 %v4377, %v4379
        %v4381 = vrot.slane %v4373, %v4380
        %v4383 = vunpack.c.l.s4 1983009808
        %v4384 = vunpack.c.0.s8 %v4383
        %v4385 = vlaneseq
        %v4386 = vshrl.u32 %v4385, 7
        %v4387 = vsub.s32 %v4384, %v4386
        %v4388 = vrot.slane %v4374, %v4387
        %v4389 = vcombine.low %v4328, %v4332
        %v4390 = vcombine.high %v4328, %v4332
        %v4392 = vunpack.c.l.s4 1983009808
        %v4393 = vunpack.c.0.s8 %v4392
        %v4394 = vlaneseq
        %v4395 = vshrl.u32 %v4394, 7
        %v4396 = vsub.s32 %v4393, %v4395
        %v4397 = vrot.slane %v4389, %v4396
        %v4399 = vunpack.c.l.s4 1983009808
        %v4400 = vunpack.c.0.s8 %v4399
        %v4401 = vlaneseq
        %v4402 = vshrl.u32 %v4401, 7
        %v4403 = vsub.s32 %v4400, %v4402
        %v4404 = vrot.slane %v4390, %v4403
        %v4405 = vcombine.low %v4349, %v4365
        %v4406 = vcombine.high %v4349, %v4365
        %v4408 = vunpack.c.l.s4 1934713408
        %v4409 = vunpack.c.0.s8 %v4408
        %v4410 = vlaneseq
        %v4411 = vshrl.u32 %v4410, 7
        %v4412 = vsub.s32 %v4409, %v4411
        %v4413 = vrot.slane %v4405, %v4412
        %v4415 = vunpack.c.l.s4 1934713408
        %v4416 = vunpack.c.0.s8 %v4415
        %v4417 = vlaneseq
        %v4418 = vshrl.u32 %v4417, 7
        %v4419 = vsub.s32 %v4416, %v4418
        %v4420 = vrot.slane %v4406, %v4419
        %v4421 = vcombine.low %v4356, %v4372
        %v4422 = vcombine.high %v4356, %v4372
        %v4424 = vunpack.c.l.s4 1934713408
        %v4425 = vunpack.c.0.s8 %v4424
        %v4426 = vlaneseq
        %v4427 = vshrl.u32 %v4426, 7
        %v4428 = vsub.s32 %v4425, %v4427
        %v4429 = vrot.slane %v4421, %v4428
        %v4431 = vunpack.c.l.s4 1934713408
        %v4432 = vunpack.c.0.s8 %v4431
        %v4433 = vlaneseq
        %v4434 = vshrl.u32 %v4433, 7
        %v4435 = vsub.s32 %v4432, %v4434
        %v4436 = vrot.slane %v4422, %v4435
        %v4437 = vcombine.low %v4381, %v4397
        %v4438 = vcombine.high %v4381, %v4397
        %v4440 = vunpack.c.l.s4 1934713408
        %v4441 = vunpack.c.0.s8 %v4440
        %v4442 = vlaneseq
        %v4443 = vshrl.u32 %v4442, 7
        %v4444 = vsub.s32 %v4441, %v4443
        %v4445 = vrot.slane %v4437, %v4444
        %v4447 = vunpack.c.l.s4 1934713408
        %v4448 = vunpack.c.0.s8 %v4447
        %v4449 = vlaneseq
        %v4450 = vshrl.u32 %v4449, 7
        %v4451 = vsub.s32 %v4448, %v4450
        %v4452 = vrot.slane %v4438, %v4451
        %v4453 = vcombine.low %v4388, %v4404
        %v4454 = vcombine.high %v4388, %v4404
        %v4456 = vunpack.c.l.s4 1934713408
        %v4457 = vunpack.c.0.s8 %v4456
        %v4458 = vlaneseq
        %v4459 = vshrl.u32 %v4458, 7
        %v4460 = vsub.s32 %v4457, %v4459
        %v4461 = vrot.slane %v4453, %v4460
        %v4463 = vunpack.c.l.s4 1934713408
        %v4464 = vunpack.c.0.s8 %v4463
        %v4465 = vlaneseq
        %v4466 = vshrl.u32 %v4465, 7
        %v4467 = vsub.s32 %v4464, %v4466
        %v4468 = vrot.slane %v4454, %v4467
        %v4469 = vcombine.low %v4413, %v4445
        %v4470 = vcombine.high %v4413, %v4445
        %v4471 = vcombine.low %v4420, %v4452
        %v4472 = vcombine.high %v4420, %v4452
        %v4473 = vcombine.low %v4429, %v4461
        %v4474 = vcombine.high %v4429, %v4461
        %v4475 = vcombine.low %v4436, %v4468
        %v4476 = vcombine.high %v4436, %v4468
        %4478 = vrot.lane.b32.xlu0 %v4470, 8
        %v4479 = vpop.permute.xlu0 %4478
        %4482 = vrot.lane.b32.xlu0 %v4471, 16
        %v4483 = vpop.permute.xlu0 %4482
        %4486 = vrot.lane.b32.xlu0 %v4472, 24
        %v4487 = vpop.permute.xlu0 %4486
        %4490 = vrot.lane.b32.xlu0 %v4473, 32
        %v4491 = vpop.permute.xlu0 %4490
        %4494 = vrot.lane.b32.xlu0 %v4474, 40
        %v4495 = vpop.permute.xlu0 %4494
        %4498 = vrot.lane.b32.xlu0 %v4475, 48
        %v4499 = vpop.permute.xlu0 %4498
        %4502 = vrot.lane.b32.xlu0 %v4476, 56
        %v4503 = vpop.permute.xlu0 %4502
        %v4505 = vsel %vm2131, %v4469, %v4479
        %v4506 = vsel %vm2133, %v4505, %v4483
        %v4507 = vsel %vm2135, %v4506, %v4487
        %v4508 = vsel %vm2137, %v4507, %v4491
        %v4509 = vsel %vm2139, %v4508, %v4495
        %v4510 = vsel %vm2141, %v4509, %v4499
        %v4511 = vsel %vm2143, %v4510, %v4503
        %s4512 = scalar_lea.vmem %s4, 16
        %v4513 = vld [vmem:[%s4512] sm:$0xff]
        %4515 = vset.pattern.permute.xlu0 0
        %4516 = vperm.xlu0 %4515, %v4513
        %v4517 = vpop.permute.xlu0 %4516
        %v4519 = vlaneseq
        %v4520 = vshrl.u32 %v4519, 7
        %v4521 = vsub.s32 0, %v4520
        %v4522 = vrot.slane %v4511, %v4521
        %v4523 = vmul.f32 %v4517, %v4522
        %v4524 = vadd.f32 %v4316, %v4523
        %4525 = vset.pattern.permute.xlu0 1
        %4526 = vperm.xlu0 %4525, %v4513
        %v4527 = vpop.permute.xlu0 %4526
        %v4529 = vlaneseq
        %v4530 = vshrl.u32 %v4529, 7
        %v4531 = vsub.s32 1, %v4530
        %v4532 = vrot.slane %v4511, %v4531
        %v4533 = vmul.f32 %v4527, %v4532
        %v4534 = vadd.f32 %v4524, %v4533
        %4535 = vset.pattern.permute.xlu0 2
        %4536 = vperm.xlu0 %4535, %v4513
        %v4537 = vpop.permute.xlu0 %4536
        %v4539 = vlaneseq
        %v4540 = vshrl.u32 %v4539, 7
        %v4541 = vsub.s32 2, %v4540
        %v4542 = vrot.slane %v4511, %v4541
        %v4543 = vmul.f32 %v4537, %v4542
        %v4544 = vadd.f32 %v4534, %v4543
        %4545 = vset.pattern.permute.xlu0 3
        %4546 = vperm.xlu0 %4545, %v4513
        %v4547 = vpop.permute.xlu0 %4546
        %v4549 = vlaneseq
        %v4550 = vshrl.u32 %v4549, 7
        %v4551 = vsub.s32 3, %v4550
        %v4552 = vrot.slane %v4511, %v4551
        %v4553 = vmul.f32 %v4547, %v4552
        %v4554 = vadd.f32 %v4544, %v4553
        %4555 = vset.pattern.permute.xlu0 4
        %4556 = vperm.xlu0 %4555, %v4513
        %v4557 = vpop.permute.xlu0 %4556
        %v4559 = vlaneseq
        %v4560 = vshrl.u32 %v4559, 7
        %v4561 = vsub.s32 4, %v4560
        %v4562 = vrot.slane %v4511, %v4561
        %v4563 = vmul.f32 %v4557, %v4562
        %v4564 = vadd.f32 %v4554, %v4563
        %4565 = vset.pattern.permute.xlu0 5
        %4566 = vperm.xlu0 %4565, %v4513
        %v4567 = vpop.permute.xlu0 %4566
        %v4569 = vlaneseq
        %v4570 = vshrl.u32 %v4569, 7
        %v4571 = vsub.s32 5, %v4570
        %v4572 = vrot.slane %v4511, %v4571
        %v4573 = vmul.f32 %v4567, %v4572
        %v4574 = vadd.f32 %v4564, %v4573
        %4575 = vset.pattern.permute.xlu0 6
        %4576 = vperm.xlu0 %4575, %v4513
        %v4577 = vpop.permute.xlu0 %4576
        %v4579 = vlaneseq
        %v4580 = vshrl.u32 %v4579, 7
        %v4581 = vsub.s32 6, %v4580
        %v4582 = vrot.slane %v4511, %v4581
        %v4583 = vmul.f32 %v4577, %v4582
        %v4584 = vadd.f32 %v4574, %v4583
        %4585 = vset.pattern.permute.xlu0 7
        %4586 = vperm.xlu0 %4585, %v4513
        %v4587 = vpop.permute.xlu0 %4586
        %v4589 = vlaneseq
        %v4590 = vshrl.u32 %v4589, 7
        %v4591 = vsub.s32 7, %v4590
        %v4592 = vrot.slane %v4511, %v4591
        %v4593 = vmul.f32 %v4587, %v4592
        %v4594 = vadd.f32 %v4584, %v4593
        %v4603 = vrot.slane %v3762, 1
        %v4604 = vrot.slane %v3763, 1
        %v4605 = vsel %vm2511, %v4603, %v4604
        %v4606 = vrot.slane %v3764, 1
        %v4607 = vrot.slane %v3765, 1
        %v4608 = vsel %vm2511, %v4606, %v4607
        %v4609 = vrot.slane %v3766, 1
        %v4610 = vrot.slane %v3767, 1
        %v4611 = vsel %vm2511, %v4609, %v4610
        %v4612 = vrot.slane %v3768, 1
        %v4613 = vrot.slane %v3769, 1
        %v4614 = vsel %vm2511, %v4612, %v4613
        %v4615 = vrot.slane %v3770, 1
        %v4616 = vrot.slane %v3771, 1
        %v4617 = vsel %vm2511, %v4615, %v4616
        %v4618 = vrot.slane %v3772, 1
        %v4619 = vrot.slane %v3773, 1
        %v4620 = vsel %vm2511, %v4618, %v4619
        %v4621 = vrot.slane %v3774, 1
        %v4622 = vrot.slane %v3775, 1
        %v4623 = vsel %vm2511, %v4621, %v4622
        %v4624 = vrot.slane %v3776, 1
        %v4625 = vrot.slane %v3777, 1
        %v4626 = vsel %vm2511, %v4624, %v4625
        %v4635 = vcombine.low %v4605, %v4611
        %v4636 = vcombine.high %v4605, %v4611
        %v4638 = vunpack.c.l.s4 1983009808
        %v4639 = vunpack.c.0.s8 %v4638
        %v4640 = vlaneseq
        %v4641 = vshrl.u32 %v4640, 7
        %v4642 = vsub.s32 %v4639, %v4641
        %v4643 = vrot.slane %v4635, %v4642
        %v4645 = vunpack.c.l.s4 1983009808
        %v4646 = vunpack.c.0.s8 %v4645
        %v4647 = vlaneseq
        %v4648 = vshrl.u32 %v4647, 7
        %v4649 = vsub.s32 %v4646, %v4648
        %v4650 = vrot.slane %v4636, %v4649
        %v4651 = vcombine.low %v4608, %v4614
        %v4652 = vcombine.high %v4608, %v4614
        %v4654 = vunpack.c.l.s4 1983009808
        %v4655 = vunpack.c.0.s8 %v4654
        %v4656 = vlaneseq
        %v4657 = vshrl.u32 %v4656, 7
        %v4658 = vsub.s32 %v4655, %v4657
        %v4659 = vrot.slane %v4651, %v4658
        %v4661 = vunpack.c.l.s4 1983009808
        %v4662 = vunpack.c.0.s8 %v4661
        %v4663 = vlaneseq
        %v4664 = vshrl.u32 %v4663, 7
        %v4665 = vsub.s32 %v4662, %v4664
        %v4666 = vrot.slane %v4652, %v4665
        %v4667 = vcombine.low %v4617, %v4623
        %v4668 = vcombine.high %v4617, %v4623
        %v4670 = vunpack.c.l.s4 1983009808
        %v4671 = vunpack.c.0.s8 %v4670
        %v4672 = vlaneseq
        %v4673 = vshrl.u32 %v4672, 7
        %v4674 = vsub.s32 %v4671, %v4673
        %v4675 = vrot.slane %v4667, %v4674
        %v4677 = vunpack.c.l.s4 1983009808
        %v4678 = vunpack.c.0.s8 %v4677
        %v4679 = vlaneseq
        %v4680 = vshrl.u32 %v4679, 7
        %v4681 = vsub.s32 %v4678, %v4680
        %v4682 = vrot.slane %v4668, %v4681
        %v4683 = vcombine.low %v4620, %v4626
        %v4684 = vcombine.high %v4620, %v4626
        %v4686 = vunpack.c.l.s4 1983009808
        %v4687 = vunpack.c.0.s8 %v4686
        %v4688 = vlaneseq
        %v4689 = vshrl.u32 %v4688, 7
        %v4690 = vsub.s32 %v4687, %v4689
        %v4691 = vrot.slane %v4683, %v4690
        %v4693 = vunpack.c.l.s4 1983009808
        %v4694 = vunpack.c.0.s8 %v4693
        %v4695 = vlaneseq
        %v4696 = vshrl.u32 %v4695, 7
        %v4697 = vsub.s32 %v4694, %v4696
        %v4698 = vrot.slane %v4684, %v4697
        %v4699 = vcombine.low %v4643, %v4659
        %v4700 = vcombine.high %v4643, %v4659
        %v4702 = vunpack.c.l.s4 1934713408
        %v4703 = vunpack.c.0.s8 %v4702
        %v4704 = vlaneseq
        %v4705 = vshrl.u32 %v4704, 7
        %v4706 = vsub.s32 %v4703, %v4705
        %v4707 = vrot.slane %v4699, %v4706
        %v4709 = vunpack.c.l.s4 1934713408
        %v4710 = vunpack.c.0.s8 %v4709
        %v4711 = vlaneseq
        %v4712 = vshrl.u32 %v4711, 7
        %v4713 = vsub.s32 %v4710, %v4712
        %v4714 = vrot.slane %v4700, %v4713
        %v4715 = vcombine.low %v4650, %v4666
        %v4716 = vcombine.high %v4650, %v4666
        %v4718 = vunpack.c.l.s4 1934713408
        %v4719 = vunpack.c.0.s8 %v4718
        %v4720 = vlaneseq
        %v4721 = vshrl.u32 %v4720, 7
        %v4722 = vsub.s32 %v4719, %v4721
        %v4723 = vrot.slane %v4715, %v4722
        %v4725 = vunpack.c.l.s4 1934713408
        %v4726 = vunpack.c.0.s8 %v4725
        %v4727 = vlaneseq
        %v4728 = vshrl.u32 %v4727, 7
        %v4729 = vsub.s32 %v4726, %v4728
        %v4730 = vrot.slane %v4716, %v4729
        %v4731 = vcombine.low %v4675, %v4691
        %v4732 = vcombine.high %v4675, %v4691
        %v4734 = vunpack.c.l.s4 1934713408
        %v4735 = vunpack.c.0.s8 %v4734
        %v4736 = vlaneseq
        %v4737 = vshrl.u32 %v4736, 7
        %v4738 = vsub.s32 %v4735, %v4737
        %v4739 = vrot.slane %v4731, %v4738
        %v4741 = vunpack.c.l.s4 1934713408
        %v4742 = vunpack.c.0.s8 %v4741
        %v4743 = vlaneseq
        %v4744 = vshrl.u32 %v4743, 7
        %v4745 = vsub.s32 %v4742, %v4744
        %v4746 = vrot.slane %v4732, %v4745
        %v4747 = vcombine.low %v4682, %v4698
        %v4748 = vcombine.high %v4682, %v4698
        %v4750 = vunpack.c.l.s4 1934713408
        %v4751 = vunpack.c.0.s8 %v4750
        %v4752 = vlaneseq
        %v4753 = vshrl.u32 %v4752, 7
        %v4754 = vsub.s32 %v4751, %v4753
        %v4755 = vrot.slane %v4747, %v4754
        %v4757 = vunpack.c.l.s4 1934713408
        %v4758 = vunpack.c.0.s8 %v4757
        %v4759 = vlaneseq
        %v4760 = vshrl.u32 %v4759, 7
        %v4761 = vsub.s32 %v4758, %v4760
        %v4762 = vrot.slane %v4748, %v4761
        %v4763 = vcombine.low %v4707, %v4739
        %v4764 = vcombine.high %v4707, %v4739
        %v4765 = vcombine.low %v4714, %v4746
        %v4766 = vcombine.high %v4714, %v4746
        %v4767 = vcombine.low %v4723, %v4755
        %v4768 = vcombine.high %v4723, %v4755
        %v4769 = vcombine.low %v4730, %v4762
        %v4770 = vcombine.high %v4730, %v4762
        %4772 = vrot.lane.b32.xlu0 %v4764, 8
        %v4773 = vpop.permute.xlu0 %4772
        %4776 = vrot.lane.b32.xlu0 %v4765, 16
        %v4777 = vpop.permute.xlu0 %4776
        %4780 = vrot.lane.b32.xlu0 %v4766, 24
        %v4781 = vpop.permute.xlu0 %4780
        %4784 = vrot.lane.b32.xlu0 %v4767, 32
        %v4785 = vpop.permute.xlu0 %4784
        %4788 = vrot.lane.b32.xlu0 %v4768, 40
        %v4789 = vpop.permute.xlu0 %4788
        %4792 = vrot.lane.b32.xlu0 %v4769, 48
        %v4793 = vpop.permute.xlu0 %4792
        %4796 = vrot.lane.b32.xlu0 %v4770, 56
        %v4797 = vpop.permute.xlu0 %4796
        %v4799 = vsel %vm2131, %v4763, %v4773
        %v4800 = vsel %vm2133, %v4799, %v4777
        %v4801 = vsel %vm2135, %v4800, %v4781
        %v4802 = vsel %vm2137, %v4801, %v4785
        %v4803 = vsel %vm2139, %v4802, %v4789
        %v4804 = vsel %vm2141, %v4803, %v4793
        %v4805 = vsel %vm2143, %v4804, %v4797
        %s4806 = scalar_lea.vmem %s4, 24
        %v4807 = vld [vmem:[%s4806] sm:$0xff]
        %4809 = vset.pattern.permute.xlu0 0
        %4810 = vperm.xlu0 %4809, %v4807
        %v4811 = vpop.permute.xlu0 %4810
        %v4813 = vlaneseq
        %v4814 = vshrl.u32 %v4813, 7
        %v4815 = vsub.s32 0, %v4814
        %v4816 = vrot.slane %v4805, %v4815
        %v4817 = vmul.f32 %v4811, %v4816
        %v4818 = vadd.f32 %v4594, %v4817
        %4819 = vset.pattern.permute.xlu0 1
        %4820 = vperm.xlu0 %4819, %v4807
        %v4821 = vpop.permute.xlu0 %4820
        %v4823 = vlaneseq
        %v4824 = vshrl.u32 %v4823, 7
        %v4825 = vsub.s32 1, %v4824
        %v4826 = vrot.slane %v4805, %v4825
        %v4827 = vmul.f32 %v4821, %v4826
        %v4828 = vadd.f32 %v4818, %v4827
        %4829 = vset.pattern.permute.xlu0 2
        %4830 = vperm.xlu0 %4829, %v4807
        %v4831 = vpop.permute.xlu0 %4830
        %v4833 = vlaneseq
        %v4834 = vshrl.u32 %v4833, 7
        %v4835 = vsub.s32 2, %v4834
        %v4836 = vrot.slane %v4805, %v4835
        %v4837 = vmul.f32 %v4831, %v4836
        %v4838 = vadd.f32 %v4828, %v4837
        %4839 = vset.pattern.permute.xlu0 3
        %4840 = vperm.xlu0 %4839, %v4807
        %v4841 = vpop.permute.xlu0 %4840
        %v4843 = vlaneseq
        %v4844 = vshrl.u32 %v4843, 7
        %v4845 = vsub.s32 3, %v4844
        %v4846 = vrot.slane %v4805, %v4845
        %v4847 = vmul.f32 %v4841, %v4846
        %v4848 = vadd.f32 %v4838, %v4847
        %4849 = vset.pattern.permute.xlu0 4
        %4850 = vperm.xlu0 %4849, %v4807
        %v4851 = vpop.permute.xlu0 %4850
        %v4853 = vlaneseq
        %v4854 = vshrl.u32 %v4853, 7
        %v4855 = vsub.s32 4, %v4854
        %v4856 = vrot.slane %v4805, %v4855
        %v4857 = vmul.f32 %v4851, %v4856
        %v4858 = vadd.f32 %v4848, %v4857
        %4859 = vset.pattern.permute.xlu0 5
        %4860 = vperm.xlu0 %4859, %v4807
        %v4861 = vpop.permute.xlu0 %4860
        %v4863 = vlaneseq
        %v4864 = vshrl.u32 %v4863, 7
        %v4865 = vsub.s32 5, %v4864
        %v4866 = vrot.slane %v4805, %v4865
        %v4867 = vmul.f32 %v4861, %v4866
        %v4868 = vadd.f32 %v4858, %v4867
        %4869 = vset.pattern.permute.xlu0 6
        %4870 = vperm.xlu0 %4869, %v4807
        %v4871 = vpop.permute.xlu0 %4870
        %v4873 = vlaneseq
        %v4874 = vshrl.u32 %v4873, 7
        %v4875 = vsub.s32 6, %v4874
        %v4876 = vrot.slane %v4805, %v4875
        %v4877 = vmul.f32 %v4871, %v4876
        %v4878 = vadd.f32 %v4868, %v4877
        %4879 = vset.pattern.permute.xlu0 7
        %4880 = vperm.xlu0 %4879, %v4807
        %v4881 = vpop.permute.xlu0 %4880
        %v4883 = vlaneseq
        %v4884 = vshrl.u32 %v4883, 7
        %v4885 = vsub.s32 7, %v4884
        %v4886 = vrot.slane %v4805, %v4885
        %v4887 = vmul.f32 %v4881, %v4886
        %v4888 = vadd.f32 %v4878, %v4887
        %4889 = vrot.lane.b32.xlu0 %v4605, 127
        %v4890 = vpop.permute.xlu0 %4889
        %4891 = vrot.lane.b32.xlu0 %v4608, 127
        %v4892 = vpop.permute.xlu0 %4891
        %4893 = vrot.lane.b32.xlu0 %v4611, 127
        %v4894 = vpop.permute.xlu0 %4893
        %4895 = vrot.lane.b32.xlu0 %v4614, 127
        %v4896 = vpop.permute.xlu0 %4895
        %4897 = vrot.lane.b32.xlu0 %v4617, 127
        %v4898 = vpop.permute.xlu0 %4897
        %4899 = vrot.lane.b32.xlu0 %v4620, 127
        %v4900 = vpop.permute.xlu0 %4899
        %4901 = vrot.lane.b32.xlu0 %v4623, 127
        %v4902 = vpop.permute.xlu0 %4901
        %4903 = vrot.lane.b32.xlu0 %v4626, 127
        %v4904 = vpop.permute.xlu0 %4903
        %v4913 = vcombine.low %v4890, %v4894
        %v4914 = vcombine.high %v4890, %v4894
        %v4916 = vunpack.c.l.s4 1983009808
        %v4917 = vunpack.c.0.s8 %v4916
        %v4918 = vlaneseq
        %v4919 = vshrl.u32 %v4918, 7
        %v4920 = vsub.s32 %v4917, %v4919
        %v4921 = vrot.slane %v4913, %v4920
        %v4923 = vunpack.c.l.s4 1983009808
        %v4924 = vunpack.c.0.s8 %v4923
        %v4925 = vlaneseq
        %v4926 = vshrl.u32 %v4925, 7
        %v4927 = vsub.s32 %v4924, %v4926
        %v4928 = vrot.slane %v4914, %v4927
        %v4929 = vcombine.low %v4892, %v4896
        %v4930 = vcombine.high %v4892, %v4896
        %v4932 = vunpack.c.l.s4 1983009808
        %v4933 = vunpack.c.0.s8 %v4932
        %v4934 = vlaneseq
        %v4935 = vshrl.u32 %v4934, 7
        %v4936 = vsub.s32 %v4933, %v4935
        %v4937 = vrot.slane %v4929, %v4936
        %v4939 = vunpack.c.l.s4 1983009808
        %v4940 = vunpack.c.0.s8 %v4939
        %v4941 = vlaneseq
        %v4942 = vshrl.u32 %v4941, 7
        %v4943 = vsub.s32 %v4940, %v4942
        %v4944 = vrot.slane %v4930, %v4943
        %v4945 = vcombine.low %v4898, %v4902
        %v4946 = vcombine.high %v4898, %v4902
        %v4948 = vunpack.c.l.s4 1983009808
        %v4949 = vunpack.c.0.s8 %v4948
        %v4950 = vlaneseq
        %v4951 = vshrl.u32 %v4950, 7
        %v4952 = vsub.s32 %v4949, %v4951
        %v4953 = vrot.slane %v4945, %v4952
        %v4955 = vunpack.c.l.s4 1983009808
        %v4956 = vunpack.c.0.s8 %v4955
        %v4957 = vlaneseq
        %v4958 = vshrl.u32 %v4957, 7
        %v4959 = vsub.s32 %v4956, %v4958
        %v4960 = vrot.slane %v4946, %v4959
        %v4961 = vcombine.low %v4900, %v4904
        %v4962 = vcombine.high %v4900, %v4904
        %v4964 = vunpack.c.l.s4 1983009808
        %v4965 = vunpack.c.0.s8 %v4964
        %v4966 = vlaneseq
        %v4967 = vshrl.u32 %v4966, 7
        %v4968 = vsub.s32 %v4965, %v4967
        %v4969 = vrot.slane %v4961, %v4968
        %v4971 = vunpack.c.l.s4 1983009808
        %v4972 = vunpack.c.0.s8 %v4971
        %v4973 = vlaneseq
        %v4974 = vshrl.u32 %v4973, 7
        %v4975 = vsub.s32 %v4972, %v4974
        %v4976 = vrot.slane %v4962, %v4975
        %v4977 = vcombine.low %v4921, %v4937
        %v4978 = vcombine.high %v4921, %v4937
        %v4980 = vunpack.c.l.s4 1934713408
        %v4981 = vunpack.c.0.s8 %v4980
        %v4982 = vlaneseq
        %v4983 = vshrl.u32 %v4982, 7
        %v4984 = vsub.s32 %v4981, %v4983
        %v4985 = vrot.slane %v4977, %v4984
        %v4987 = vunpack.c.l.s4 1934713408
        %v4988 = vunpack.c.0.s8 %v4987
        %v4989 = vlaneseq
        %v4990 = vshrl.u32 %v4989, 7
        %v4991 = vsub.s32 %v4988, %v4990
        %v4992 = vrot.slane %v4978, %v4991
        %v4993 = vcombine.low %v4928, %v4944
        %v4994 = vcombine.high %v4928, %v4944
        %v4996 = vunpack.c.l.s4 1934713408
        %v4997 = vunpack.c.0.s8 %v4996
        %v4998 = vlaneseq
        %v4999 = vshrl.u32 %v4998, 7
        %v5000 = vsub.s32 %v4997, %v4999
        %v5001 = vrot.slane %v4993, %v5000
        %v5003 = vunpack.c.l.s4 1934713408
        %v5004 = vunpack.c.0.s8 %v5003
        %v5005 = vlaneseq
        %v5006 = vshrl.u32 %v5005, 7
        %v5007 = vsub.s32 %v5004, %v5006
        %v5008 = vrot.slane %v4994, %v5007
        %v5009 = vcombine.low %v4953, %v4969
        %v5010 = vcombine.high %v4953, %v4969
        %v5012 = vunpack.c.l.s4 1934713408
        %v5013 = vunpack.c.0.s8 %v5012
        %v5014 = vlaneseq
        %v5015 = vshrl.u32 %v5014, 7
        %v5016 = vsub.s32 %v5013, %v5015
        %v5017 = vrot.slane %v5009, %v5016
        %v5019 = vunpack.c.l.s4 1934713408
        %v5020 = vunpack.c.0.s8 %v5019
        %v5021 = vlaneseq
        %v5022 = vshrl.u32 %v5021, 7
        %v5023 = vsub.s32 %v5020, %v5022
        %v5024 = vrot.slane %v5010, %v5023
        %v5025 = vcombine.low %v4960, %v4976
        %v5026 = vcombine.high %v4960, %v4976
        %v5028 = vunpack.c.l.s4 1934713408
        %v5029 = vunpack.c.0.s8 %v5028
        %v5030 = vlaneseq
        %v5031 = vshrl.u32 %v5030, 7
        %v5032 = vsub.s32 %v5029, %v5031
        %v5033 = vrot.slane %v5025, %v5032
        %v5035 = vunpack.c.l.s4 1934713408
        %v5036 = vunpack.c.0.s8 %v5035
        %v5037 = vlaneseq
        %v5038 = vshrl.u32 %v5037, 7
        %v5039 = vsub.s32 %v5036, %v5038
        %v5040 = vrot.slane %v5026, %v5039
        %v5041 = vcombine.low %v4985, %v5017
        %v5042 = vcombine.high %v4985, %v5017
        %v5043 = vcombine.low %v4992, %v5024
        %v5044 = vcombine.high %v4992, %v5024
        %v5045 = vcombine.low %v5001, %v5033
        %v5046 = vcombine.high %v5001, %v5033
        %v5047 = vcombine.low %v5008, %v5040
        %v5048 = vcombine.high %v5008, %v5040
        %5050 = vrot.lane.b32.xlu0 %v5042, 8
        %v5051 = vpop.permute.xlu0 %5050
        %5054 = vrot.lane.b32.xlu0 %v5043, 16
        %v5055 = vpop.permute.xlu0 %5054
        %5058 = vrot.lane.b32.xlu0 %v5044, 24
        %v5059 = vpop.permute.xlu0 %5058
        %5062 = vrot.lane.b32.xlu0 %v5045, 32
        %v5063 = vpop.permute.xlu0 %5062
        %5066 = vrot.lane.b32.xlu0 %v5046, 40
        %v5067 = vpop.permute.xlu0 %5066
        %5070 = vrot.lane.b32.xlu0 %v5047, 48
        %v5071 = vpop.permute.xlu0 %5070
        %5074 = vrot.lane.b32.xlu0 %v5048, 56
        %v5075 = vpop.permute.xlu0 %5074
        %v5077 = vsel %vm2131, %v5041, %v5051
        %v5078 = vsel %vm2133, %v5077, %v5055
        %v5079 = vsel %vm2135, %v5078, %v5059
        %v5080 = vsel %vm2137, %v5079, %v5063
        %v5081 = vsel %vm2139, %v5080, %v5067
        %v5082 = vsel %vm2141, %v5081, %v5071
        %v5083 = vsel %vm2143, %v5082, %v5075
        %s5084 = scalar_lea.vmem %s4, 32
        %v5085 = vld [vmem:[%s5084] sm:$0xff]
        %5087 = vset.pattern.permute.xlu0 0
        %5088 = vperm.xlu0 %5087, %v5085
        %v5089 = vpop.permute.xlu0 %5088
        %v5091 = vlaneseq
        %v5092 = vshrl.u32 %v5091, 7
        %v5093 = vsub.s32 0, %v5092
        %v5094 = vrot.slane %v5083, %v5093
        %v5095 = vmul.f32 %v5089, %v5094
        %v5096 = vadd.f32 %v4888, %v5095
        %5097 = vset.pattern.permute.xlu0 1
        %5098 = vperm.xlu0 %5097, %v5085
        %v5099 = vpop.permute.xlu0 %5098
        %v5101 = vlaneseq
        %v5102 = vshrl.u32 %v5101, 7
        %v5103 = vsub.s32 1, %v5102
        %v5104 = vrot.slane %v5083, %v5103
        %v5105 = vmul.f32 %v5099, %v5104
        %v5106 = vadd.f32 %v5096, %v5105
        %5107 = vset.pattern.permute.xlu0 2
        %5108 = vperm.xlu0 %5107, %v5085
        %v5109 = vpop.permute.xlu0 %5108
        %v5111 = vlaneseq
        %v5112 = vshrl.u32 %v5111, 7
        %v5113 = vsub.s32 2, %v5112
        %v5114 = vrot.slane %v5083, %v5113
        %v5115 = vmul.f32 %v5109, %v5114
        %v5116 = vadd.f32 %v5106, %v5115
        %5117 = vset.pattern.permute.xlu0 3
        %5118 = vperm.xlu0 %5117, %v5085
        %v5119 = vpop.permute.xlu0 %5118
        %v5121 = vlaneseq
        %v5122 = vshrl.u32 %v5121, 7
        %v5123 = vsub.s32 3, %v5122
        %v5124 = vrot.slane %v5083, %v5123
        %v5125 = vmul.f32 %v5119, %v5124
        %v5126 = vadd.f32 %v5116, %v5125
        %5127 = vset.pattern.permute.xlu0 4
        %5128 = vperm.xlu0 %5127, %v5085
        %v5129 = vpop.permute.xlu0 %5128
        %v5131 = vlaneseq
        %v5132 = vshrl.u32 %v5131, 7
        %v5133 = vsub.s32 4, %v5132
        %v5134 = vrot.slane %v5083, %v5133
        %v5135 = vmul.f32 %v5129, %v5134
        %v5136 = vadd.f32 %v5126, %v5135
        %5137 = vset.pattern.permute.xlu0 5
        %5138 = vperm.xlu0 %5137, %v5085
        %v5139 = vpop.permute.xlu0 %5138
        %v5141 = vlaneseq
        %v5142 = vshrl.u32 %v5141, 7
        %v5143 = vsub.s32 5, %v5142
        %v5144 = vrot.slane %v5083, %v5143
        %v5145 = vmul.f32 %v5139, %v5144
        %v5146 = vadd.f32 %v5136, %v5145
        %5147 = vset.pattern.permute.xlu0 6
        %5148 = vperm.xlu0 %5147, %v5085
        %v5149 = vpop.permute.xlu0 %5148
        %v5151 = vlaneseq
        %v5152 = vshrl.u32 %v5151, 7
        %v5153 = vsub.s32 6, %v5152
        %v5154 = vrot.slane %v5083, %v5153
        %v5155 = vmul.f32 %v5149, %v5154
        %v5156 = vadd.f32 %v5146, %v5155
        %5157 = vset.pattern.permute.xlu0 7
        %5158 = vperm.xlu0 %5157, %v5085
        %v5159 = vpop.permute.xlu0 %5158
        %v5161 = vlaneseq
        %v5162 = vshrl.u32 %v5161, 7
        %v5163 = vsub.s32 7, %v5162
        %v5164 = vrot.slane %v5083, %v5163
        %v5165 = vmul.f32 %v5159, %v5164
        %v5166 = vadd.f32 %v5156, %v5165
        %5167 = vrot.lane.b32.xlu0 %v4605, 126
        %v5168 = vpop.permute.xlu0 %5167
        %5169 = vrot.lane.b32.xlu0 %v4608, 126
        %v5170 = vpop.permute.xlu0 %5169
        %5171 = vrot.lane.b32.xlu0 %v4611, 126
        %v5172 = vpop.permute.xlu0 %5171
        %5173 = vrot.lane.b32.xlu0 %v4614, 126
        %v5174 = vpop.permute.xlu0 %5173
        %5175 = vrot.lane.b32.xlu0 %v4617, 126
        %v5176 = vpop.permute.xlu0 %5175
        %5177 = vrot.lane.b32.xlu0 %v4620, 126
        %v5178 = vpop.permute.xlu0 %5177
        %5179 = vrot.lane.b32.xlu0 %v4623, 126
        %v5180 = vpop.permute.xlu0 %5179
        %5181 = vrot.lane.b32.xlu0 %v4626, 126
        %v5182 = vpop.permute.xlu0 %5181
        %v5191 = vcombine.low %v5168, %v5172
        %v5192 = vcombine.high %v5168, %v5172
        %v5194 = vunpack.c.l.s4 1983009808
        %v5195 = vunpack.c.0.s8 %v5194
        %v5196 = vlaneseq
        %v5197 = vshrl.u32 %v5196, 7
        %v5198 = vsub.s32 %v5195, %v5197
        %v5199 = vrot.slane %v5191, %v5198
        %v5201 = vunpack.c.l.s4 1983009808
        %v5202 = vunpack.c.0.s8 %v5201
        %v5203 = vlaneseq
        %v5204 = vshrl.u32 %v5203, 7
        %v5205 = vsub.s32 %v5202, %v5204
        %v5206 = vrot.slane %v5192, %v5205
        %v5207 = vcombine.low %v5170, %v5174
        %v5208 = vcombine.high %v5170, %v5174
        %v5210 = vunpack.c.l.s4 1983009808
        %v5211 = vunpack.c.0.s8 %v5210
        %v5212 = vlaneseq
        %v5213 = vshrl.u32 %v5212, 7
        %v5214 = vsub.s32 %v5211, %v5213
        %v5215 = vrot.slane %v5207, %v5214
        %v5217 = vunpack.c.l.s4 1983009808
        %v5218 = vunpack.c.0.s8 %v5217
        %v5219 = vlaneseq
        %v5220 = vshrl.u32 %v5219, 7
        %v5221 = vsub.s32 %v5218, %v5220
        %v5222 = vrot.slane %v5208, %v5221
        %v5223 = vcombine.low %v5176, %v5180
        %v5224 = vcombine.high %v5176, %v5180
        %v5226 = vunpack.c.l.s4 1983009808
        %v5227 = vunpack.c.0.s8 %v5226
        %v5228 = vlaneseq
        %v5229 = vshrl.u32 %v5228, 7
        %v5230 = vsub.s32 %v5227, %v5229
        %v5231 = vrot.slane %v5223, %v5230
        %v5233 = vunpack.c.l.s4 1983009808
        %v5234 = vunpack.c.0.s8 %v5233
        %v5235 = vlaneseq
        %v5236 = vshrl.u32 %v5235, 7
        %v5237 = vsub.s32 %v5234, %v5236
        %v5238 = vrot.slane %v5224, %v5237
        %v5239 = vcombine.low %v5178, %v5182
        %v5240 = vcombine.high %v5178, %v5182
        %v5242 = vunpack.c.l.s4 1983009808
        %v5243 = vunpack.c.0.s8 %v5242
        %v5244 = vlaneseq
        %v5245 = vshrl.u32 %v5244, 7
        %v5246 = vsub.s32 %v5243, %v5245
        %v5247 = vrot.slane %v5239, %v5246
        %v5249 = vunpack.c.l.s4 1983009808
        %v5250 = vunpack.c.0.s8 %v5249
        %v5251 = vlaneseq
        %v5252 = vshrl.u32 %v5251, 7
        %v5253 = vsub.s32 %v5250, %v5252
        %v5254 = vrot.slane %v5240, %v5253
        %v5255 = vcombine.low %v5199, %v5215
        %v5256 = vcombine.high %v5199, %v5215
        %v5258 = vunpack.c.l.s4 1934713408
        %v5259 = vunpack.c.0.s8 %v5258
        %v5260 = vlaneseq
        %v5261 = vshrl.u32 %v5260, 7
        %v5262 = vsub.s32 %v5259, %v5261
        %v5263 = vrot.slane %v5255, %v5262
        %v5265 = vunpack.c.l.s4 1934713408
        %v5266 = vunpack.c.0.s8 %v5265
        %v5267 = vlaneseq
        %v5268 = vshrl.u32 %v5267, 7
        %v5269 = vsub.s32 %v5266, %v5268
        %v5270 = vrot.slane %v5256, %v5269
        %v5271 = vcombine.low %v5206, %v5222
        %v5272 = vcombine.high %v5206, %v5222
        %v5274 = vunpack.c.l.s4 1934713408
        %v5275 = vunpack.c.0.s8 %v5274
        %v5276 = vlaneseq
        %v5277 = vshrl.u32 %v5276, 7
        %v5278 = vsub.s32 %v5275, %v5277
        %v5279 = vrot.slane %v5271, %v5278
        %v5281 = vunpack.c.l.s4 1934713408
        %v5282 = vunpack.c.0.s8 %v5281
        %v5283 = vlaneseq
        %v5284 = vshrl.u32 %v5283, 7
        %v5285 = vsub.s32 %v5282, %v5284
        %v5286 = vrot.slane %v5272, %v5285
        %v5287 = vcombine.low %v5231, %v5247
        %v5288 = vcombine.high %v5231, %v5247
        %v5290 = vunpack.c.l.s4 1934713408
        %v5291 = vunpack.c.0.s8 %v5290
        %v5292 = vlaneseq
        %v5293 = vshrl.u32 %v5292, 7
        %v5294 = vsub.s32 %v5291, %v5293
        %v5295 = vrot.slane %v5287, %v5294
        %v5297 = vunpack.c.l.s4 1934713408
        %v5298 = vunpack.c.0.s8 %v5297
        %v5299 = vlaneseq
        %v5300 = vshrl.u32 %v5299, 7
        %v5301 = vsub.s32 %v5298, %v5300
        %v5302 = vrot.slane %v5288, %v5301
        %v5303 = vcombine.low %v5238, %v5254
        %v5304 = vcombine.high %v5238, %v5254
        %v5306 = vunpack.c.l.s4 1934713408
        %v5307 = vunpack.c.0.s8 %v5306
        %v5308 = vlaneseq
        %v5309 = vshrl.u32 %v5308, 7
        %v5310 = vsub.s32 %v5307, %v5309
        %v5311 = vrot.slane %v5303, %v5310
        %v5313 = vunpack.c.l.s4 1934713408
        %v5314 = vunpack.c.0.s8 %v5313
        %v5315 = vlaneseq
        %v5316 = vshrl.u32 %v5315, 7
        %v5317 = vsub.s32 %v5314, %v5316
        %v5318 = vrot.slane %v5304, %v5317
        %v5319 = vcombine.low %v5263, %v5295
        %v5320 = vcombine.high %v5263, %v5295
        %v5321 = vcombine.low %v5270, %v5302
        %v5322 = vcombine.high %v5270, %v5302
        %v5323 = vcombine.low %v5279, %v5311
        %v5324 = vcombine.high %v5279, %v5311
        %v5325 = vcombine.low %v5286, %v5318
        %v5326 = vcombine.high %v5286, %v5318
        %5328 = vrot.lane.b32.xlu0 %v5320, 8
        %v5329 = vpop.permute.xlu0 %5328
        %5332 = vrot.lane.b32.xlu0 %v5321, 16
        %v5333 = vpop.permute.xlu0 %5332
        %5336 = vrot.lane.b32.xlu0 %v5322, 24
        %v5337 = vpop.permute.xlu0 %5336
        %5340 = vrot.lane.b32.xlu0 %v5323, 32
        %v5341 = vpop.permute.xlu0 %5340
        %5344 = vrot.lane.b32.xlu0 %v5324, 40
        %v5345 = vpop.permute.xlu0 %5344
        %5348 = vrot.lane.b32.xlu0 %v5325, 48
        %v5349 = vpop.permute.xlu0 %5348
        %5352 = vrot.lane.b32.xlu0 %v5326, 56
        %v5353 = vpop.permute.xlu0 %5352
        %v5355 = vsel %vm2131, %v5319, %v5329
        %v5356 = vsel %vm2133, %v5355, %v5333
        %v5357 = vsel %vm2135, %v5356, %v5337
        %v5358 = vsel %vm2137, %v5357, %v5341
        %v5359 = vsel %vm2139, %v5358, %v5345
        %v5360 = vsel %vm2141, %v5359, %v5349
        %v5361 = vsel %vm2143, %v5360, %v5353
        %s5362 = scalar_lea.vmem %s4, 40
        %v5363 = vld [vmem:[%s5362] sm:$0xff]
        %5365 = vset.pattern.permute.xlu0 0
        %5366 = vperm.xlu0 %5365, %v5363
        %v5367 = vpop.permute.xlu0 %5366
        %v5369 = vlaneseq
        %v5370 = vshrl.u32 %v5369, 7
        %v5371 = vsub.s32 0, %v5370
        %v5372 = vrot.slane %v5361, %v5371
        %v5373 = vmul.f32 %v5367, %v5372
        %v5374 = vadd.f32 %v5166, %v5373
        %5375 = vset.pattern.permute.xlu0 1
        %5376 = vperm.xlu0 %5375, %v5363
        %v5377 = vpop.permute.xlu0 %5376
        %v5379 = vlaneseq
        %v5380 = vshrl.u32 %v5379, 7
        %v5381 = vsub.s32 1, %v5380
        %v5382 = vrot.slane %v5361, %v5381
        %v5383 = vmul.f32 %v5377, %v5382
        %v5384 = vadd.f32 %v5374, %v5383
        %5385 = vset.pattern.permute.xlu0 2
        %5386 = vperm.xlu0 %5385, %v5363
        %v5387 = vpop.permute.xlu0 %5386
        %v5389 = vlaneseq
        %v5390 = vshrl.u32 %v5389, 7
        %v5391 = vsub.s32 2, %v5390
        %v5392 = vrot.slane %v5361, %v5391
        %v5393 = vmul.f32 %v5387, %v5392
        %v5394 = vadd.f32 %v5384, %v5393
        %5395 = vset.pattern.permute.xlu0 3
        %5396 = vperm.xlu0 %5395, %v5363
        %v5397 = vpop.permute.xlu0 %5396
        %v5399 = vlaneseq
        %v5400 = vshrl.u32 %v5399, 7
        %v5401 = vsub.s32 3, %v5400
        %v5402 = vrot.slane %v5361, %v5401
        %v5403 = vmul.f32 %v5397, %v5402
        %v5404 = vadd.f32 %v5394, %v5403
        %5405 = vset.pattern.permute.xlu0 4
        %5406 = vperm.xlu0 %5405, %v5363
        %v5407 = vpop.permute.xlu0 %5406
        %v5409 = vlaneseq
        %v5410 = vshrl.u32 %v5409, 7
        %v5411 = vsub.s32 4, %v5410
        %v5412 = vrot.slane %v5361, %v5411
        %v5413 = vmul.f32 %v5407, %v5412
        %v5414 = vadd.f32 %v5404, %v5413
        %5415 = vset.pattern.permute.xlu0 5
        %5416 = vperm.xlu0 %5415, %v5363
        %v5417 = vpop.permute.xlu0 %5416
        %v5419 = vlaneseq
        %v5420 = vshrl.u32 %v5419, 7
        %v5421 = vsub.s32 5, %v5420
        %v5422 = vrot.slane %v5361, %v5421
        %v5423 = vmul.f32 %v5417, %v5422
        %v5424 = vadd.f32 %v5414, %v5423
        %5425 = vset.pattern.permute.xlu0 6
        %5426 = vperm.xlu0 %5425, %v5363
        %v5427 = vpop.permute.xlu0 %5426
        %v5429 = vlaneseq
        %v5430 = vshrl.u32 %v5429, 7
        %v5431 = vsub.s32 6, %v5430
        %v5432 = vrot.slane %v5361, %v5431
        %v5433 = vmul.f32 %v5427, %v5432
        %v5434 = vadd.f32 %v5424, %v5433
        %5435 = vset.pattern.permute.xlu0 7
        %5436 = vperm.xlu0 %5435, %v5363
        %v5437 = vpop.permute.xlu0 %5436
        %v5439 = vlaneseq
        %v5440 = vshrl.u32 %v5439, 7
        %v5441 = vsub.s32 7, %v5440
        %v5442 = vrot.slane %v5361, %v5441
        %v5443 = vmul.f32 %v5437, %v5442
        %v5444 = vadd.f32 %v5434, %v5443
        %v5445 = vrot.slane %v3762, 2
        %v5446 = vrot.slane %v3763, 2
        %v5447 = vsel %vm2990, %v5445, %v5446
        %v5448 = vrot.slane %v3764, 2
        %v5449 = vrot.slane %v3765, 2
        %v5450 = vsel %vm2990, %v5448, %v5449
        %v5451 = vrot.slane %v3766, 2
        %v5452 = vrot.slane %v3767, 2
        %v5453 = vsel %vm2990, %v5451, %v5452
        %v5454 = vrot.slane %v3768, 2
        %v5455 = vrot.slane %v3769, 2
        %v5456 = vsel %vm2990, %v5454, %v5455
        %v5457 = vrot.slane %v3770, 2
        %v5458 = vrot.slane %v3771, 2
        %v5459 = vsel %vm2990, %v5457, %v5458
        %v5460 = vrot.slane %v3772, 2
        %v5461 = vrot.slane %v3773, 2
        %v5462 = vsel %vm2990, %v5460, %v5461
        %v5463 = vrot.slane %v3774, 2
        %v5464 = vrot.slane %v3775, 2
        %v5465 = vsel %vm2990, %v5463, %v5464
        %v5466 = vrot.slane %v3776, 2
        %v5467 = vrot.slane %v3777, 2
        %v5468 = vsel %vm2990, %v5466, %v5467
        %v5477 = vcombine.low %v5447, %v5453
        %v5478 = vcombine.high %v5447, %v5453
        %v5480 = vunpack.c.l.s4 1983009808
        %v5481 = vunpack.c.0.s8 %v5480
        %v5482 = vlaneseq
        %v5483 = vshrl.u32 %v5482, 7
        %v5484 = vsub.s32 %v5481, %v5483
        %v5485 = vrot.slane %v5477, %v5484
        %v5487 = vunpack.c.l.s4 1983009808
        %v5488 = vunpack.c.0.s8 %v5487
        %v5489 = vlaneseq
        %v5490 = vshrl.u32 %v5489, 7
        %v5491 = vsub.s32 %v5488, %v5490
        %v5492 = vrot.slane %v5478, %v5491
        %v5493 = vcombine.low %v5450, %v5456
        %v5494 = vcombine.high %v5450, %v5456
        %v5496 = vunpack.c.l.s4 1983009808
        %v5497 = vunpack.c.0.s8 %v5496
        %v5498 = vlaneseq
        %v5499 = vshrl.u32 %v5498, 7
        %v5500 = vsub.s32 %v5497, %v5499
        %v5501 = vrot.slane %v5493, %v5500
        %v5503 = vunpack.c.l.s4 1983009808
        %v5504 = vunpack.c.0.s8 %v5503
        %v5505 = vlaneseq
        %v5506 = vshrl.u32 %v5505, 7
        %v5507 = vsub.s32 %v5504, %v5506
        %v5508 = vrot.slane %v5494, %v5507
        %v5509 = vcombine.low %v5459, %v5465
        %v5510 = vcombine.high %v5459, %v5465
        %v5512 = vunpack.c.l.s4 1983009808
        %v5513 = vunpack.c.0.s8 %v5512
        %v5514 = vlaneseq
        %v5515 = vshrl.u32 %v5514, 7
        %v5516 = vsub.s32 %v5513, %v5515
        %v5517 = vrot.slane %v5509, %v5516
        %v5519 = vunpack.c.l.s4 1983009808
        %v5520 = vunpack.c.0.s8 %v5519
        %v5521 = vlaneseq
        %v5522 = vshrl.u32 %v5521, 7
        %v5523 = vsub.s32 %v5520, %v5522
        %v5524 = vrot.slane %v5510, %v5523
        %v5525 = vcombine.low %v5462, %v5468
        %v5526 = vcombine.high %v5462, %v5468
        %v5528 = vunpack.c.l.s4 1983009808
        %v5529 = vunpack.c.0.s8 %v5528
        %v5530 = vlaneseq
        %v5531 = vshrl.u32 %v5530, 7
        %v5532 = vsub.s32 %v5529, %v5531
        %v5533 = vrot.slane %v5525, %v5532
        %v5535 = vunpack.c.l.s4 1983009808
        %v5536 = vunpack.c.0.s8 %v5535
        %v5537 = vlaneseq
        %v5538 = vshrl.u32 %v5537, 7
        %v5539 = vsub.s32 %v5536, %v5538
        %v5540 = vrot.slane %v5526, %v5539
        %v5541 = vcombine.low %v5485, %v5501
        %v5542 = vcombine.high %v5485, %v5501
        %v5544 = vunpack.c.l.s4 1934713408
        %v5545 = vunpack.c.0.s8 %v5544
        %v5546 = vlaneseq
        %v5547 = vshrl.u32 %v5546, 7
        %v5548 = vsub.s32 %v5545, %v5547
        %v5549 = vrot.slane %v5541, %v5548
        %v5551 = vunpack.c.l.s4 1934713408
        %v5552 = vunpack.c.0.s8 %v5551
        %v5553 = vlaneseq
        %v5554 = vshrl.u32 %v5553, 7
        %v5555 = vsub.s32 %v5552, %v5554
        %v5556 = vrot.slane %v5542, %v5555
        %v5557 = vcombine.low %v5492, %v5508
        %v5558 = vcombine.high %v5492, %v5508
        %v5560 = vunpack.c.l.s4 1934713408
        %v5561 = vunpack.c.0.s8 %v5560
        %v5562 = vlaneseq
        %v5563 = vshrl.u32 %v5562, 7
        %v5564 = vsub.s32 %v5561, %v5563
        %v5565 = vrot.slane %v5557, %v5564
        %v5567 = vunpack.c.l.s4 1934713408
        %v5568 = vunpack.c.0.s8 %v5567
        %v5569 = vlaneseq
        %v5570 = vshrl.u32 %v5569, 7
        %v5571 = vsub.s32 %v5568, %v5570
        %v5572 = vrot.slane %v5558, %v5571
        %v5573 = vcombine.low %v5517, %v5533
        %v5574 = vcombine.high %v5517, %v5533
        %v5576 = vunpack.c.l.s4 1934713408
        %v5577 = vunpack.c.0.s8 %v5576
        %v5578 = vlaneseq
        %v5579 = vshrl.u32 %v5578, 7
        %v5580 = vsub.s32 %v5577, %v5579
        %v5581 = vrot.slane %v5573, %v5580
        %v5583 = vunpack.c.l.s4 1934713408
        %v5584 = vunpack.c.0.s8 %v5583
        %v5585 = vlaneseq
        %v5586 = vshrl.u32 %v5585, 7
        %v5587 = vsub.s32 %v5584, %v5586
        %v5588 = vrot.slane %v5574, %v5587
        %v5589 = vcombine.low %v5524, %v5540
        %v5590 = vcombine.high %v5524, %v5540
        %v5592 = vunpack.c.l.s4 1934713408
        %v5593 = vunpack.c.0.s8 %v5592
        %v5594 = vlaneseq
        %v5595 = vshrl.u32 %v5594, 7
        %v5596 = vsub.s32 %v5593, %v5595
        %v5597 = vrot.slane %v5589, %v5596
        %v5599 = vunpack.c.l.s4 1934713408
        %v5600 = vunpack.c.0.s8 %v5599
        %v5601 = vlaneseq
        %v5602 = vshrl.u32 %v5601, 7
        %v5603 = vsub.s32 %v5600, %v5602
        %v5604 = vrot.slane %v5590, %v5603
        %v5605 = vcombine.low %v5549, %v5581
        %v5606 = vcombine.high %v5549, %v5581
        %v5607 = vcombine.low %v5556, %v5588
        %v5608 = vcombine.high %v5556, %v5588
        %v5609 = vcombine.low %v5565, %v5597
        %v5610 = vcombine.high %v5565, %v5597
        %v5611 = vcombine.low %v5572, %v5604
        %v5612 = vcombine.high %v5572, %v5604
        %5614 = vrot.lane.b32.xlu0 %v5606, 8
        %v5615 = vpop.permute.xlu0 %5614
        %5618 = vrot.lane.b32.xlu0 %v5607, 16
        %v5619 = vpop.permute.xlu0 %5618
        %5622 = vrot.lane.b32.xlu0 %v5608, 24
        %v5623 = vpop.permute.xlu0 %5622
        %5626 = vrot.lane.b32.xlu0 %v5609, 32
        %v5627 = vpop.permute.xlu0 %5626
        %5630 = vrot.lane.b32.xlu0 %v5610, 40
        %v5631 = vpop.permute.xlu0 %5630
        %5634 = vrot.lane.b32.xlu0 %v5611, 48
        %v5635 = vpop.permute.xlu0 %5634
        %5638 = vrot.lane.b32.xlu0 %v5612, 56
        %v5639 = vpop.permute.xlu0 %5638
        %v5641 = vsel %vm2131, %v5605, %v5615
        %v5642 = vsel %vm2133, %v5641, %v5619
        %v5643 = vsel %vm2135, %v5642, %v5623
        %v5644 = vsel %vm2137, %v5643, %v5627
        %v5645 = vsel %vm2139, %v5644, %v5631
        %v5646 = vsel %vm2141, %v5645, %v5635
        %v5647 = vsel %vm2143, %v5646, %v5639
        %s5648 = scalar_lea.vmem %s4, 48
        %v5649 = vld [vmem:[%s5648] sm:$0xff]
        %5651 = vset.pattern.permute.xlu0 0
        %5652 = vperm.xlu0 %5651, %v5649
        %v5653 = vpop.permute.xlu0 %5652
        %v5655 = vlaneseq
        %v5656 = vshrl.u32 %v5655, 7
        %v5657 = vsub.s32 0, %v5656
        %v5658 = vrot.slane %v5647, %v5657
        %v5659 = vmul.f32 %v5653, %v5658
        %v5660 = vadd.f32 %v5444, %v5659
        %5661 = vset.pattern.permute.xlu0 1
        %5662 = vperm.xlu0 %5661, %v5649
        %v5663 = vpop.permute.xlu0 %5662
        %v5665 = vlaneseq
        %v5666 = vshrl.u32 %v5665, 7
        %v5667 = vsub.s32 1, %v5666
        %v5668 = vrot.slane %v5647, %v5667
        %v5669 = vmul.f32 %v5663, %v5668
        %v5670 = vadd.f32 %v5660, %v5669
        %5671 = vset.pattern.permute.xlu0 2
        %5672 = vperm.xlu0 %5671, %v5649
        %v5673 = vpop.permute.xlu0 %5672
        %v5675 = vlaneseq
        %v5676 = vshrl.u32 %v5675, 7
        %v5677 = vsub.s32 2, %v5676
        %v5678 = vrot.slane %v5647, %v5677
        %v5679 = vmul.f32 %v5673, %v5678
        %v5680 = vadd.f32 %v5670, %v5679
        %5681 = vset.pattern.permute.xlu0 3
        %5682 = vperm.xlu0 %5681, %v5649
        %v5683 = vpop.permute.xlu0 %5682
        %v5685 = vlaneseq
        %v5686 = vshrl.u32 %v5685, 7
        %v5687 = vsub.s32 3, %v5686
        %v5688 = vrot.slane %v5647, %v5687
        %v5689 = vmul.f32 %v5683, %v5688
        %v5690 = vadd.f32 %v5680, %v5689
        %5691 = vset.pattern.permute.xlu0 4
        %5692 = vperm.xlu0 %5691, %v5649
        %v5693 = vpop.permute.xlu0 %5692
        %v5695 = vlaneseq
        %v5696 = vshrl.u32 %v5695, 7
        %v5697 = vsub.s32 4, %v5696
        %v5698 = vrot.slane %v5647, %v5697
        %v5699 = vmul.f32 %v5693, %v5698
        %v5700 = vadd.f32 %v5690, %v5699
        %5701 = vset.pattern.permute.xlu0 5
        %5702 = vperm.xlu0 %5701, %v5649
        %v5703 = vpop.permute.xlu0 %5702
        %v5705 = vlaneseq
        %v5706 = vshrl.u32 %v5705, 7
        %v5707 = vsub.s32 5, %v5706
        %v5708 = vrot.slane %v5647, %v5707
        %v5709 = vmul.f32 %v5703, %v5708
        %v5710 = vadd.f32 %v5700, %v5709
        %5711 = vset.pattern.permute.xlu0 6
        %5712 = vperm.xlu0 %5711, %v5649
        %v5713 = vpop.permute.xlu0 %5712
        %v5715 = vlaneseq
        %v5716 = vshrl.u32 %v5715, 7
        %v5717 = vsub.s32 6, %v5716
        %v5718 = vrot.slane %v5647, %v5717
        %v5719 = vmul.f32 %v5713, %v5718
        %v5720 = vadd.f32 %v5710, %v5719
        %5721 = vset.pattern.permute.xlu0 7
        %5722 = vperm.xlu0 %5721, %v5649
        %v5723 = vpop.permute.xlu0 %5722
        %v5725 = vlaneseq
        %v5726 = vshrl.u32 %v5725, 7
        %v5727 = vsub.s32 7, %v5726
        %v5728 = vrot.slane %v5647, %v5727
        %v5729 = vmul.f32 %v5723, %v5728
        %v5730 = vadd.f32 %v5720, %v5729
        %5731 = vrot.lane.b32.xlu0 %v5447, 127
        %v5732 = vpop.permute.xlu0 %5731
        %5733 = vrot.lane.b32.xlu0 %v5450, 127
        %v5734 = vpop.permute.xlu0 %5733
        %5735 = vrot.lane.b32.xlu0 %v5453, 127
        %v5736 = vpop.permute.xlu0 %5735
        %5737 = vrot.lane.b32.xlu0 %v5456, 127
        %v5738 = vpop.permute.xlu0 %5737
        %5739 = vrot.lane.b32.xlu0 %v5459, 127
        %v5740 = vpop.permute.xlu0 %5739
        %5741 = vrot.lane.b32.xlu0 %v5462, 127
        %v5742 = vpop.permute.xlu0 %5741
        %5743 = vrot.lane.b32.xlu0 %v5465, 127
        %v5744 = vpop.permute.xlu0 %5743
        %5745 = vrot.lane.b32.xlu0 %v5468, 127
        %v5746 = vpop.permute.xlu0 %5745
        %v5755 = vcombine.low %v5732, %v5736
        %v5756 = vcombine.high %v5732, %v5736
        %v5758 = vunpack.c.l.s4 1983009808
        %v5759 = vunpack.c.0.s8 %v5758
        %v5760 = vlaneseq
        %v5761 = vshrl.u32 %v5760, 7
        %v5762 = vsub.s32 %v5759, %v5761
        %v5763 = vrot.slane %v5755, %v5762
        %v5765 = vunpack.c.l.s4 1983009808
        %v5766 = vunpack.c.0.s8 %v5765
        %v5767 = vlaneseq
        %v5768 = vshrl.u32 %v5767, 7
        %v5769 = vsub.s32 %v5766, %v5768
        %v5770 = vrot.slane %v5756, %v5769
        %v5771 = vcombine.low %v5734, %v5738
        %v5772 = vcombine.high %v5734, %v5738
        %v5774 = vunpack.c.l.s4 1983009808
        %v5775 = vunpack.c.0.s8 %v5774
        %v5776 = vlaneseq
        %v5777 = vshrl.u32 %v5776, 7
        %v5778 = vsub.s32 %v5775, %v5777
        %v5779 = vrot.slane %v5771, %v5778
        %v5781 = vunpack.c.l.s4 1983009808
        %v5782 = vunpack.c.0.s8 %v5781
        %v5783 = vlaneseq
        %v5784 = vshrl.u32 %v5783, 7
        %v5785 = vsub.s32 %v5782, %v5784
        %v5786 = vrot.slane %v5772, %v5785
        %v5787 = vcombine.low %v5740, %v5744
        %v5788 = vcombine.high %v5740, %v5744
        %v5790 = vunpack.c.l.s4 1983009808
        %v5791 = vunpack.c.0.s8 %v5790
        %v5792 = vlaneseq
        %v5793 = vshrl.u32 %v5792, 7
        %v5794 = vsub.s32 %v5791, %v5793
        %v5795 = vrot.slane %v5787, %v5794
        %v5797 = vunpack.c.l.s4 1983009808
        %v5798 = vunpack.c.0.s8 %v5797
        %v5799 = vlaneseq
        %v5800 = vshrl.u32 %v5799, 7
        %v5801 = vsub.s32 %v5798, %v5800
        %v5802 = vrot.slane %v5788, %v5801
        %v5803 = vcombine.low %v5742, %v5746
        %v5804 = vcombine.high %v5742, %v5746
        %v5806 = vunpack.c.l.s4 1983009808
        %v5807 = vunpack.c.0.s8 %v5806
        %v5808 = vlaneseq
        %v5809 = vshrl.u32 %v5808, 7
        %v5810 = vsub.s32 %v5807, %v5809
        %v5811 = vrot.slane %v5803, %v5810
        %v5813 = vunpack.c.l.s4 1983009808
        %v5814 = vunpack.c.0.s8 %v5813
        %v5815 = vlaneseq
        %v5816 = vshrl.u32 %v5815, 7
        %v5817 = vsub.s32 %v5814, %v5816
        %v5818 = vrot.slane %v5804, %v5817
        %v5819 = vcombine.low %v5763, %v5779
        %v5820 = vcombine.high %v5763, %v5779
        %v5822 = vunpack.c.l.s4 1934713408
        %v5823 = vunpack.c.0.s8 %v5822
        %v5824 = vlaneseq
        %v5825 = vshrl.u32 %v5824, 7
        %v5826 = vsub.s32 %v5823, %v5825
        %v5827 = vrot.slane %v5819, %v5826
        %v5829 = vunpack.c.l.s4 1934713408
        %v5830 = vunpack.c.0.s8 %v5829
        %v5831 = vlaneseq
        %v5832 = vshrl.u32 %v5831, 7
        %v5833 = vsub.s32 %v5830, %v5832
        %v5834 = vrot.slane %v5820, %v5833
        %v5835 = vcombine.low %v5770, %v5786
        %v5836 = vcombine.high %v5770, %v5786
        %v5838 = vunpack.c.l.s4 1934713408
        %v5839 = vunpack.c.0.s8 %v5838
        %v5840 = vlaneseq
        %v5841 = vshrl.u32 %v5840, 7
        %v5842 = vsub.s32 %v5839, %v5841
        %v5843 = vrot.slane %v5835, %v5842
        %v5845 = vunpack.c.l.s4 1934713408
        %v5846 = vunpack.c.0.s8 %v5845
        %v5847 = vlaneseq
        %v5848 = vshrl.u32 %v5847, 7
        %v5849 = vsub.s32 %v5846, %v5848
        %v5850 = vrot.slane %v5836, %v5849
        %v5851 = vcombine.low %v5795, %v5811
        %v5852 = vcombine.high %v5795, %v5811
        %v5854 = vunpack.c.l.s4 1934713408
        %v5855 = vunpack.c.0.s8 %v5854
        %v5856 = vlaneseq
        %v5857 = vshrl.u32 %v5856, 7
        %v5858 = vsub.s32 %v5855, %v5857
        %v5859 = vrot.slane %v5851, %v5858
        %v5861 = vunpack.c.l.s4 1934713408
        %v5862 = vunpack.c.0.s8 %v5861
        %v5863 = vlaneseq
        %v5864 = vshrl.u32 %v5863, 7
        %v5865 = vsub.s32 %v5862, %v5864
        %v5866 = vrot.slane %v5852, %v5865
        %v5867 = vcombine.low %v5802, %v5818
        %v5868 = vcombine.high %v5802, %v5818
        %v5870 = vunpack.c.l.s4 1934713408
        %v5871 = vunpack.c.0.s8 %v5870
        %v5872 = vlaneseq
        %v5873 = vshrl.u32 %v5872, 7
        %v5874 = vsub.s32 %v5871, %v5873
        %v5875 = vrot.slane %v5867, %v5874
        %v5877 = vunpack.c.l.s4 1934713408
        %v5878 = vunpack.c.0.s8 %v5877
        %v5879 = vlaneseq
        %v5880 = vshrl.u32 %v5879, 7
        %v5881 = vsub.s32 %v5878, %v5880
        %v5882 = vrot.slane %v5868, %v5881
        %v5883 = vcombine.low %v5827, %v5859
        %v5884 = vcombine.high %v5827, %v5859
        %v5885 = vcombine.low %v5834, %v5866
        %v5886 = vcombine.high %v5834, %v5866
        %v5887 = vcombine.low %v5843, %v5875
        %v5888 = vcombine.high %v5843, %v5875
        %v5889 = vcombine.low %v5850, %v5882
        %v5890 = vcombine.high %v5850, %v5882
        %5892 = vrot.lane.b32.xlu0 %v5884, 8
        %v5893 = vpop.permute.xlu0 %5892
        %5896 = vrot.lane.b32.xlu0 %v5885, 16
        %v5897 = vpop.permute.xlu0 %5896
        %5900 = vrot.lane.b32.xlu0 %v5886, 24
        %v5901 = vpop.permute.xlu0 %5900
        %5904 = vrot.lane.b32.xlu0 %v5887, 32
        %v5905 = vpop.permute.xlu0 %5904
        %5908 = vrot.lane.b32.xlu0 %v5888, 40
        %v5909 = vpop.permute.xlu0 %5908
        %5912 = vrot.lane.b32.xlu0 %v5889, 48
        %v5913 = vpop.permute.xlu0 %5912
        %5916 = vrot.lane.b32.xlu0 %v5890, 56
        %v5917 = vpop.permute.xlu0 %5916
        %v5919 = vsel %vm2131, %v5883, %v5893
        %v5920 = vsel %vm2133, %v5919, %v5897
        %v5921 = vsel %vm2135, %v5920, %v5901
        %v5922 = vsel %vm2137, %v5921, %v5905
        %v5923 = vsel %vm2139, %v5922, %v5909
        %v5924 = vsel %vm2141, %v5923, %v5913
        %v5925 = vsel %vm2143, %v5924, %v5917
        %s5926 = scalar_lea.vmem %s4, 56
        %v5927 = vld [vmem:[%s5926] sm:$0xff]
        %5929 = vset.pattern.permute.xlu0 0
        %5930 = vperm.xlu0 %5929, %v5927
        %v5931 = vpop.permute.xlu0 %5930
        %v5933 = vlaneseq
        %v5934 = vshrl.u32 %v5933, 7
        %v5935 = vsub.s32 0, %v5934
        %v5936 = vrot.slane %v5925, %v5935
        %v5937 = vmul.f32 %v5931, %v5936
        %v5938 = vadd.f32 %v5730, %v5937
        %5939 = vset.pattern.permute.xlu0 1
        %5940 = vperm.xlu0 %5939, %v5927
        %v5941 = vpop.permute.xlu0 %5940
        %v5943 = vlaneseq
        %v5944 = vshrl.u32 %v5943, 7
        %v5945 = vsub.s32 1, %v5944
        %v5946 = vrot.slane %v5925, %v5945
        %v5947 = vmul.f32 %v5941, %v5946
        %v5948 = vadd.f32 %v5938, %v5947
        %5949 = vset.pattern.permute.xlu0 2
        %5950 = vperm.xlu0 %5949, %v5927
        %v5951 = vpop.permute.xlu0 %5950
        %v5953 = vlaneseq
        %v5954 = vshrl.u32 %v5953, 7
        %v5955 = vsub.s32 2, %v5954
        %v5956 = vrot.slane %v5925, %v5955
        %v5957 = vmul.f32 %v5951, %v5956
        %v5958 = vadd.f32 %v5948, %v5957
        %5959 = vset.pattern.permute.xlu0 3
        %5960 = vperm.xlu0 %5959, %v5927
        %v5961 = vpop.permute.xlu0 %5960
        %v5963 = vlaneseq
        %v5964 = vshrl.u32 %v5963, 7
        %v5965 = vsub.s32 3, %v5964
        %v5966 = vrot.slane %v5925, %v5965
        %v5967 = vmul.f32 %v5961, %v5966
        %v5968 = vadd.f32 %v5958, %v5967
        %5969 = vset.pattern.permute.xlu0 4
        %5970 = vperm.xlu0 %5969, %v5927
        %v5971 = vpop.permute.xlu0 %5970
        %v5973 = vlaneseq
        %v5974 = vshrl.u32 %v5973, 7
        %v5975 = vsub.s32 4, %v5974
        %v5976 = vrot.slane %v5925, %v5975
        %v5977 = vmul.f32 %v5971, %v5976
        %v5978 = vadd.f32 %v5968, %v5977
        %5979 = vset.pattern.permute.xlu0 5
        %5980 = vperm.xlu0 %5979, %v5927
        %v5981 = vpop.permute.xlu0 %5980
        %v5983 = vlaneseq
        %v5984 = vshrl.u32 %v5983, 7
        %v5985 = vsub.s32 5, %v5984
        %v5986 = vrot.slane %v5925, %v5985
        %v5987 = vmul.f32 %v5981, %v5986
        %v5988 = vadd.f32 %v5978, %v5987
        %5989 = vset.pattern.permute.xlu0 6
        %5990 = vperm.xlu0 %5989, %v5927
        %v5991 = vpop.permute.xlu0 %5990
        %v5993 = vlaneseq
        %v5994 = vshrl.u32 %v5993, 7
        %v5995 = vsub.s32 6, %v5994
        %v5996 = vrot.slane %v5925, %v5995
        %v5997 = vmul.f32 %v5991, %v5996
        %v5998 = vadd.f32 %v5988, %v5997
        %5999 = vset.pattern.permute.xlu0 7
        %6000 = vperm.xlu0 %5999, %v5927
        %v6001 = vpop.permute.xlu0 %6000
        %v6003 = vlaneseq
        %v6004 = vshrl.u32 %v6003, 7
        %v6005 = vsub.s32 7, %v6004
        %v6006 = vrot.slane %v5925, %v6005
        %v6007 = vmul.f32 %v6001, %v6006
        %v6008 = vadd.f32 %v5998, %v6007
        %6009 = vrot.lane.b32.xlu0 %v5447, 126
        %v6010 = vpop.permute.xlu0 %6009
        %6011 = vrot.lane.b32.xlu0 %v5450, 126
        %v6012 = vpop.permute.xlu0 %6011
        %6013 = vrot.lane.b32.xlu0 %v5453, 126
        %v6014 = vpop.permute.xlu0 %6013
        %6015 = vrot.lane.b32.xlu0 %v5456, 126
        %v6016 = vpop.permute.xlu0 %6015
        %6017 = vrot.lane.b32.xlu0 %v5459, 126
        %v6018 = vpop.permute.xlu0 %6017
        %6019 = vrot.lane.b32.xlu0 %v5462, 126
        %v6020 = vpop.permute.xlu0 %6019
        %6021 = vrot.lane.b32.xlu0 %v5465, 126
        %v6022 = vpop.permute.xlu0 %6021
        %6023 = vrot.lane.b32.xlu0 %v5468, 126
        %v6024 = vpop.permute.xlu0 %6023
        %v6033 = vcombine.low %v6010, %v6014
        %v6034 = vcombine.high %v6010, %v6014
        %v6036 = vunpack.c.l.s4 1983009808
        %v6037 = vunpack.c.0.s8 %v6036
        %v6038 = vlaneseq
        %v6039 = vshrl.u32 %v6038, 7
        %v6040 = vsub.s32 %v6037, %v6039
        %v6041 = vrot.slane %v6033, %v6040
        %v6043 = vunpack.c.l.s4 1983009808
        %v6044 = vunpack.c.0.s8 %v6043
        %v6045 = vlaneseq
        %v6046 = vshrl.u32 %v6045, 7
        %v6047 = vsub.s32 %v6044, %v6046
        %v6048 = vrot.slane %v6034, %v6047
        %v6049 = vcombine.low %v6012, %v6016
        %v6050 = vcombine.high %v6012, %v6016
        %v6052 = vunpack.c.l.s4 1983009808
        %v6053 = vunpack.c.0.s8 %v6052
        %v6054 = vlaneseq
        %v6055 = vshrl.u32 %v6054, 7
        %v6056 = vsub.s32 %v6053, %v6055
        %v6057 = vrot.slane %v6049, %v6056
        %v6059 = vunpack.c.l.s4 1983009808
        %v6060 = vunpack.c.0.s8 %v6059
        %v6061 = vlaneseq
        %v6062 = vshrl.u32 %v6061, 7
        %v6063 = vsub.s32 %v6060, %v6062
        %v6064 = vrot.slane %v6050, %v6063
        %v6065 = vcombine.low %v6018, %v6022
        %v6066 = vcombine.high %v6018, %v6022
        %v6068 = vunpack.c.l.s4 1983009808
        %v6069 = vunpack.c.0.s8 %v6068
        %v6070 = vlaneseq
        %v6071 = vshrl.u32 %v6070, 7
        %v6072 = vsub.s32 %v6069, %v6071
        %v6073 = vrot.slane %v6065, %v6072
        %v6075 = vunpack.c.l.s4 1983009808
        %v6076 = vunpack.c.0.s8 %v6075
        %v6077 = vlaneseq
        %v6078 = vshrl.u32 %v6077, 7
        %v6079 = vsub.s32 %v6076, %v6078
        %v6080 = vrot.slane %v6066, %v6079
        %v6081 = vcombine.low %v6020, %v6024
        %v6082 = vcombine.high %v6020, %v6024
        %v6084 = vunpack.c.l.s4 1983009808
        %v6085 = vunpack.c.0.s8 %v6084
        %v6086 = vlaneseq
        %v6087 = vshrl.u32 %v6086, 7
        %v6088 = vsub.s32 %v6085, %v6087
        %v6089 = vrot.slane %v6081, %v6088
        %v6091 = vunpack.c.l.s4 1983009808
        %v6092 = vunpack.c.0.s8 %v6091
        %v6093 = vlaneseq
        %v6094 = vshrl.u32 %v6093, 7
        %v6095 = vsub.s32 %v6092, %v6094
        %v6096 = vrot.slane %v6082, %v6095
        %v6097 = vcombine.low %v6041, %v6057
        %v6098 = vcombine.high %v6041, %v6057
        %v6100 = vunpack.c.l.s4 1934713408
        %v6101 = vunpack.c.0.s8 %v6100
        %v6102 = vlaneseq
        %v6103 = vshrl.u32 %v6102, 7
        %v6104 = vsub.s32 %v6101, %v6103
        %v6105 = vrot.slane %v6097, %v6104
        %v6107 = vunpack.c.l.s4 1934713408
        %v6108 = vunpack.c.0.s8 %v6107
        %v6109 = vlaneseq
        %v6110 = vshrl.u32 %v6109, 7
        %v6111 = vsub.s32 %v6108, %v6110
        %v6112 = vrot.slane %v6098, %v6111
        %v6113 = vcombine.low %v6048, %v6064
        %v6114 = vcombine.high %v6048, %v6064
        %v6116 = vunpack.c.l.s4 1934713408
        %v6117 = vunpack.c.0.s8 %v6116
        %v6118 = vlaneseq
        %v6119 = vshrl.u32 %v6118, 7
        %v6120 = vsub.s32 %v6117, %v6119
        %v6121 = vrot.slane %v6113, %v6120
        %v6123 = vunpack.c.l.s4 1934713408
        %v6124 = vunpack.c.0.s8 %v6123
        %v6125 = vlaneseq
        %v6126 = vshrl.u32 %v6125, 7
        %v6127 = vsub.s32 %v6124, %v6126
        %v6128 = vrot.slane %v6114, %v6127
        %v6129 = vcombine.low %v6073, %v6089
        %v6130 = vcombine.high %v6073, %v6089
        %v6132 = vunpack.c.l.s4 1934713408
        %v6133 = vunpack.c.0.s8 %v6132
        %v6134 = vlaneseq
        %v6135 = vshrl.u32 %v6134, 7
        %v6136 = vsub.s32 %v6133, %v6135
        %v6137 = vrot.slane %v6129, %v6136
        %v6139 = vunpack.c.l.s4 1934713408
        %v6140 = vunpack.c.0.s8 %v6139
        %v6141 = vlaneseq
        %v6142 = vshrl.u32 %v6141, 7
        %v6143 = vsub.s32 %v6140, %v6142
        %v6144 = vrot.slane %v6130, %v6143
        %v6145 = vcombine.low %v6080, %v6096
        %v6146 = vcombine.high %v6080, %v6096
        %v6148 = vunpack.c.l.s4 1934713408
        %v6149 = vunpack.c.0.s8 %v6148
        %v6150 = vlaneseq
        %v6151 = vshrl.u32 %v6150, 7
        %v6152 = vsub.s32 %v6149, %v6151
        %v6153 = vrot.slane %v6145, %v6152
        %v6155 = vunpack.c.l.s4 1934713408
        %v6156 = vunpack.c.0.s8 %v6155
        %v6157 = vlaneseq
        %v6158 = vshrl.u32 %v6157, 7
        %v6159 = vsub.s32 %v6156, %v6158
        %v6160 = vrot.slane %v6146, %v6159
        %v6161 = vcombine.low %v6105, %v6137
        %v6162 = vcombine.high %v6105, %v6137
        %v6163 = vcombine.low %v6112, %v6144
        %v6164 = vcombine.high %v6112, %v6144
        %v6165 = vcombine.low %v6121, %v6153
        %v6166 = vcombine.high %v6121, %v6153
        %v6167 = vcombine.low %v6128, %v6160
        %v6168 = vcombine.high %v6128, %v6160
        %6170 = vrot.lane.b32.xlu0 %v6162, 8
        %v6171 = vpop.permute.xlu0 %6170
        %6174 = vrot.lane.b32.xlu0 %v6163, 16
        %v6175 = vpop.permute.xlu0 %6174
        %6178 = vrot.lane.b32.xlu0 %v6164, 24
        %v6179 = vpop.permute.xlu0 %6178
        %6182 = vrot.lane.b32.xlu0 %v6165, 32
        %v6183 = vpop.permute.xlu0 %6182
        %6186 = vrot.lane.b32.xlu0 %v6166, 40
        %v6187 = vpop.permute.xlu0 %6186
        %6190 = vrot.lane.b32.xlu0 %v6167, 48
        %v6191 = vpop.permute.xlu0 %6190
        %6194 = vrot.lane.b32.xlu0 %v6168, 56
        %v6195 = vpop.permute.xlu0 %6194
        %v6197 = vsel %vm2131, %v6161, %v6171
        %v6198 = vsel %vm2133, %v6197, %v6175
        %v6199 = vsel %vm2135, %v6198, %v6179
        %v6200 = vsel %vm2137, %v6199, %v6183
        %v6201 = vsel %vm2139, %v6200, %v6187
        %v6202 = vsel %vm2141, %v6201, %v6191
        %v6203 = vsel %vm2143, %v6202, %v6195
        %s6204 = scalar_lea.vmem %s4, 64
        %v6205 = vld [vmem:[%s6204] sm:$0xff]
        %6207 = vset.pattern.permute.xlu0 0
        %6208 = vperm.xlu0 %6207, %v6205
        %v6209 = vpop.permute.xlu0 %6208
        %v6211 = vlaneseq
        %v6212 = vshrl.u32 %v6211, 7
        %v6213 = vsub.s32 0, %v6212
        %v6214 = vrot.slane %v6203, %v6213
        %v6215 = vmul.f32 %v6209, %v6214
        %v6216 = vadd.f32 %v6008, %v6215
        %6217 = vset.pattern.permute.xlu0 1
        %6218 = vperm.xlu0 %6217, %v6205
        %v6219 = vpop.permute.xlu0 %6218
        %v6221 = vlaneseq
        %v6222 = vshrl.u32 %v6221, 7
        %v6223 = vsub.s32 1, %v6222
        %v6224 = vrot.slane %v6203, %v6223
        %v6225 = vmul.f32 %v6219, %v6224
        %v6226 = vadd.f32 %v6216, %v6225
        %6227 = vset.pattern.permute.xlu0 2
        %6228 = vperm.xlu0 %6227, %v6205
        %v6229 = vpop.permute.xlu0 %6228
        %v6231 = vlaneseq
        %v6232 = vshrl.u32 %v6231, 7
        %v6233 = vsub.s32 2, %v6232
        %v6234 = vrot.slane %v6203, %v6233
        %v6235 = vmul.f32 %v6229, %v6234
        %v6236 = vadd.f32 %v6226, %v6235
        %6237 = vset.pattern.permute.xlu0 3
        %6238 = vperm.xlu0 %6237, %v6205
        %v6239 = vpop.permute.xlu0 %6238
        %v6241 = vlaneseq
        %v6242 = vshrl.u32 %v6241, 7
        %v6243 = vsub.s32 3, %v6242
        %v6244 = vrot.slane %v6203, %v6243
        %v6245 = vmul.f32 %v6239, %v6244
        %v6246 = vadd.f32 %v6236, %v6245
        %6247 = vset.pattern.permute.xlu0 4
        %6248 = vperm.xlu0 %6247, %v6205
        %v6249 = vpop.permute.xlu0 %6248
        %v6251 = vlaneseq
        %v6252 = vshrl.u32 %v6251, 7
        %v6253 = vsub.s32 4, %v6252
        %v6254 = vrot.slane %v6203, %v6253
        %v6255 = vmul.f32 %v6249, %v6254
        %v6256 = vadd.f32 %v6246, %v6255
        %6257 = vset.pattern.permute.xlu0 5
        %6258 = vperm.xlu0 %6257, %v6205
        %v6259 = vpop.permute.xlu0 %6258
        %v6261 = vlaneseq
        %v6262 = vshrl.u32 %v6261, 7
        %v6263 = vsub.s32 5, %v6262
        %v6264 = vrot.slane %v6203, %v6263
        %v6265 = vmul.f32 %v6259, %v6264
        %v6266 = vadd.f32 %v6256, %v6265
        %6267 = vset.pattern.permute.xlu0 6
        %6268 = vperm.xlu0 %6267, %v6205
        %v6269 = vpop.permute.xlu0 %6268
        %v6271 = vlaneseq
        %v6272 = vshrl.u32 %v6271, 7
        %v6273 = vsub.s32 6, %v6272
        %v6274 = vrot.slane %v6203, %v6273
        %v6275 = vmul.f32 %v6269, %v6274
        %v6276 = vadd.f32 %v6266, %v6275
        %6277 = vset.pattern.permute.xlu0 7
        %6278 = vperm.xlu0 %6277, %v6205
        %v6279 = vpop.permute.xlu0 %6278
        %v6281 = vlaneseq
        %v6282 = vshrl.u32 %v6281, 7
        %v6283 = vsub.s32 7, %v6282
        %v6284 = vrot.slane %v6203, %v6283
        %v6285 = vmul.f32 %v6279, %v6284
        %v6286 = vadd.f32 %v6276, %v6285
        %6288 = vset.pattern.permute.xlu0 0
        %6289 = vperm.xlu0 %6288, %v3640
        %v6290 = vpop.permute.xlu0 %6289
        %v6292 = vmul.f32 %v6286, %v6290
        %6294 = vset.pattern.permute.xlu0 0
        %6295 = vperm.xlu0 %6294, %v3641
        %v6296 = vpop.permute.xlu0 %6295
        %v6298 = vadd.f32 %v6292, %v6296
        %v6299 = vmax.f32 %v6298, 0.0
        %vm6300 = vcmask 523264
        %6301 = vst.msk [vmem:[%s271] sm:$0xff] %vm6300, %v6299
        %s6302 = sand.u32 %s181, 1
        %s6303 = scalar_lea.sflag [#allocation3], %s6302
        %s6304 = sand.u32 %s181, 1
        %s6305 = smul.addr %s6304, 8
        %s6306 = scalar_lea.vmem [#allocation2], %s6305
        // Predicated region
        $region49: #{tpu_custom_call.1} parent=47 // pred_check
          %p6307 = pneg %p191
        $region50: #{tpu_custom_call.1} parent=47 // pred_check_branch
          %6309 = sbr.rel (%p6307) target = $region52
        $region51: #{tpu_custom_call.1} parent=47 // pred_region
          %s6311 = ssub.s32 128, 128
          %6312 = vsyncadd %s6303, %s6311
          %s6313 = smul.addr %s21, 128
          %s6314 = scalar_lea.hbm %s7, %s6313
          %s6316 = sshll.u32 %s6306, 4
          %s6317 = int_to_ptr.vmem [resolvable:$true] %s6316
          %6319 = dma.vmem_to_hbm [thread:$0]  %s6317, 128, %s6314, %s6303
        $region52: #{tpu_custom_call.1} parent=47 // pred_fallthru
          _
      $region48: #{tpu_custom_call.1} parent=5 // pred_fallthru
        _
      %p6320 = scmp.le.s32.totalorder 2, %s16
      // Predicated region
      $region53: #{tpu_custom_call.1} parent=5 // pred_check
        %p6321 = pneg %p6320
      $region54: #{tpu_custom_call.1} parent=5 // pred_check_branch
        %6323 = sbr.rel (%p6321) target = $region56
      $region55: #{tpu_custom_call.1} parent=5 // pred_region
        %s6324 = ssub.s32 %s16, 2
        // Predicated region
        $region57: #{tpu_custom_call.1} parent=55 // pred_check
          %p6325 = pneg %p197
        $region58: #{tpu_custom_call.1} parent=55 // pred_check_branch
          %6327 = sbr.rel (%p6325) target = $region60
        $region59: #{tpu_custom_call.1} parent=55 // pred_region
          %s6328 = sand.u32 %s182, 1
          %s6329 = scalar_lea.sflag [#allocation3], %s6328
          %s6330 = sand.u32 %s182, 1
          %s6331 = smul.addr %s6330, 8
          %s6332 = scalar_lea.vmem [#allocation2], %s6331
          %6333 = dma.done %s6329, 128
        $region60: #{tpu_custom_call.1} parent=55 // pred_fallthru
          _
      $region56: #{tpu_custom_call.1} parent=5 // pred_fallthru
        _
    $region6: #{tpu_custom_call.1} parent=1 // loop_footer
      %s20 = sadd.s32 1, %s16
    $region7: #{tpu_custom_call.1} parent=1 // loop_footer_branch
      %15 = sbr.rel target = $region3
    $region8: #{tpu_custom_call.1} parent=1 // loop_exit
      _
    %6334 = vsyncpa [#allocation3], 1
    %s6335 = scalar_lea.sflag [#allocation3], 1
    %6336 = vsyncpa %s6335, 1

</llo_original>
